<compile_context>
chip_gen: v7x
topology: tpu7x:2x2x1
jax: 0.10.0
libtpu: 0.0.40
codegen_flags: <defaults>
</compile_context>

<pallas_src>
import numpy as np
import jax
import jax.numpy as jnp
from jax.experimental import pallas as pl
from jax.experimental.pallas import tpu as pltpu

NEG = -1e30  # additive mask sentinel (f32-safe)


def _elu(v):
    # ELU(alpha=1); clamp exp arg so the unselected branch stays finite.
    return jnp.where(v > 0, v, jnp.exp(jnp.minimum(v, 0.0)) - 1.0)


def _mm(a, w):
    return jnp.dot(a, w, preferred_element_type=jnp.float32)


def _pad8(r):
    return -(-r // 8) * 8


# --------------------------------------------------------------------------
# PointNetConv kernel: one target-node tile per grid step
# --------------------------------------------------------------------------
_CONV1_ROWS = [3, 3, 1, 32, 1, 32, 1, 32, 1, 32, 1, 32, 1]   # widths 32
_CONV2_ROWS = [32, 3, 1, 35, 1, 35, 1, 35, 1, 35, 1, 35, 1]  # widths 35


def _make_conv_kernel(row_sizes):
    """row_sizes: raw row counts of [w1x, w1p, b1, w2, b2, w3, b3,
    gw1, gb1, gw2, gb2, gw3, gb3] inside the packed weight slab (each padded to
    a multiple of 8 rows when packed, so every slice start is sublane-aligned)."""
    offs, off = [], 0
    for r in row_sizes:
        offs.append(off)
        off += _pad8(r)
    total_rows = off

    def kernel(x_ref, pos_ref, post_ref, bias_ref, w_ref, o_ref):
        def W(k):                                   # static slice -> cheap view load
            o = offs[k]
            return w_ref[o:o + row_sizes[k], :]

        w1x, w1p, b1 = W(0), W(1), W(2)
        w2, b2, w3, b3 = W(3), W(4), W(5), W(6)
        gw1, gb1, gw2, gb2, gw3, gb3 = W(7), W(8), W(9), W(10), W(11), W(12)

        x = x_ref[...]                  # [Np, Fin]  all source nodes (resident)
        pos = pos_ref[...]              # [Np, 3]
        pos_t = post_ref[...]           # [TILE, 3]  this tile's target nodes
        tile, np_ = bias_ref.shape
        h_dim = w1x.shape[1]

        # local_nn layer 1 is affine in [x_j, pos_j - pos_i]:
        #   h1[i, j] = (x[j] @ w1x + pos[j] @ w1p + b1) - pos[i] @ w1p
        u = _mm(x, w1x) + _mm(pos, w1p) + b1        # per-source term   [Np, H]
        v = _mm(pos_t, w1p)                         # per-target term   [TILE, H]
        h = _elu(u[None, :, :] - v[:, None, :])     # [TILE, Np, H]

        # Remaining local_nn layers on the flattened pair axis (MXU matmuls).
        # Np is a multiple of 8, so these reshapes are layout no-ops.
        hf = h.reshape(tile * np_, h_dim)
        hf = _elu(_mm(hf, w2) + b2)
        hf = _mm(hf, w3) + b3
        msgs = hf.reshape(tile, np_, h_dim)

        # Max-aggregate over sources using the precomputed additive -inf mask.
        aggr = jnp.max(msgs + bias_ref[...][:, :, None], axis=1)     # [TILE, H]

        # global_nn
        out = _elu(_mm(aggr, gw1) + gb1)
        out = _elu(_mm(out, gw2) + gb2)
        out = _mm(out, gw3) + gb3
        o_ref[...] = _elu(out)          # outer F.elu of GNN_v6.forward folded in

    return kernel, total_rows


def _conv_call(kernel, x, pos, adj_bias, w_slab, hout, tile):
    np_, fin = x.shape
    grid = (np_ // tile,)
    return pl.pallas_call(
        kernel,
        out_shape=jax.ShapeDtypeStruct((np_, hout), jnp.float32),
        grid_spec=pltpu.PrefetchScalarGridSpec(
            num_scalar_prefetch=0,
            grid=grid,
            in_specs=[
                pl.BlockSpec((np_, fin), lambda i: (0, 0)),    # x        (resident)
                pl.BlockSpec((np_, 3), lambda i: (0, 0)),      # pos      (resident)
                pl.BlockSpec((tile, 3), lambda i: (i, 0)),     # pos of this tile's targets
                pl.BlockSpec((tile, np_), lambda i: (i, 0)),   # additive adjacency mask rows
                pl.BlockSpec(w_slab.shape, lambda i: (0, 0)),  # packed weights (resident)
            ],
            out_specs=pl.BlockSpec((tile, hout), lambda i: (i, 0)),
        ),
        # v7x: split target tiles across the 2 TensorCores (no-op on v5e/v6e).
        compiler_params=pltpu.CompilerParams(dimension_semantics=("parallel",)),
    )(x, pos, pos, adj_bias, w_slab)


# --------------------------------------------------------------------------
# global_max_pool + lin1 (tiny, grid-less)
# --------------------------------------------------------------------------
def _pool_lin_kernel(x_ref, segb_ref, w_ref, b_ref, o_ref):
    pooled = jnp.max(x_ref[...][None, :, :] + segb_ref[...][:, :, None], axis=1)  # [B, 35]
    o_ref[...] = _mm(pooled, w_ref[...]) + b_ref[...]                             # [B, 2]


# --------------------------------------------------------------------------
# Parameter packing (done once, outside jit)
# --------------------------------------------------------------------------
def pack_params(p):
    def pack(arrs):
        parts = []
        for a in arrs:
            rp = _pad8(a.shape[0])
            if rp > a.shape[0]:
                a = jnp.concatenate(
                    [a, jnp.zeros((rp - a.shape[0], a.shape[1]), a.dtype)], axis=0)
            parts.append(a)
        return jnp.concatenate(parts, axis=0)

    # first local_nn layer weight pre-split: rows [:Fin] act on x_j, rest on pos_j - pos_i
    slab1 = pack([p['l1w1'][:3], p['l1w1'][3:], p['l1b1'],
                  p['l1w2'], p['l1b2'], p['l1w3'], p['l1b3'],
                  p['g1w1'], p['g1b1'], p['g1w2'], p['g1b2'], p['g1w3'], p['g1b3']])
    slab2 = pack([p['l2w1'][:32], p['l2w1'][32:], p['l2b1'],
                  p['l2w2'], p['l2b2'], p['l2w3'], p['l2b3'],
                  p['g2w1'], p['g2b1'], p['g2w2'], p['g2b2'], p['g2w3'], p['g2b3']])
    return {'conv1': slab1, 'conv2': slab2, 'lin1w': p['lin1w'], 'lin1b': p['lin1b']}


# --------------------------------------------------------------------------
# Forward wrapper (jitted end-to-end; batch_size / tile are static)
# --------------------------------------------------------------------------
def make_forward(batch_size: int, tile: int = 8):
    # TODO(synk): for non-toy graphs, size `tile` per generation VMEM
    # (~half on v7x's 64 MiB) and switch the dense N^2 pairs to a CSR gather.
    conv1_kernel, rows1 = _make_conv_kernel(_CONV1_ROWS)
    conv2_kernel, rows2 = _make_conv_kernel(_CONV2_ROWS)

    @jax.jit
    def forward(packed, x, pos, edge_index, batch):
        assert packed['conv1'].shape == (rows1, 32)
        assert packed['conv2'].shape == (rows2, 35)

        n = x.shape[0]
        np_ = -(-n // tile) * tile
        pad = np_ - n
        if pad:  # pad node axis so tile grid / reshapes are layout no-ops
            x = jnp.concatenate([x, jnp.zeros((pad, x.shape[1]), x.dtype)], 0)
            pos = jnp.concatenate([pos, jnp.zeros((pad, pos.shape[1]), pos.dtype)], 0)
            batch = jnp.concatenate([batch, jnp.full((pad,), -1, batch.dtype)], 0)

        # Dense adjacency (edge src=j -> dst=i => adj[i,j]=1), self-loops folded in
        # (PointNetConv default add_self_loops=True), converted ONCE to an
        # additive -inf mask shared by both conv calls.
        adj = jnp.zeros((np_, np_), jnp.float32).at[edge_index[1], edge_index[0]].add(1.0)
        adj = jnp.maximum(adj, jnp.eye(np_, dtype=jnp.float32))
        adj_bias = jnp.where(adj > 0, 0.0, NEG).astype(jnp.float32)

        # Graph-membership additive mask for global_max_pool (padded nodes: batch=-1).
        # NOTE: an empty graph slot would pool to ~-1e30 (no NaN guard).
        seg_bias = jnp.where(
            batch[None, :] == jnp.arange(batch_size, dtype=batch.dtype)[:, None],
            0.0, NEG).astype(jnp.float32)

        x1 = _conv_call(conv1_kernel, x, pos, adj_bias, packed['conv1'], 32, tile)
        x2 = _conv_call(conv2_kernel, x1, pos, adj_bias, packed['conv2'], 35, tile)

        return pl.pallas_call(
            _pool_lin_kernel,
            out_shape=jax.ShapeDtypeStruct((batch_size, 2), jnp.float32),
            in_specs=[pl.BlockSpec(memory_space=pltpu.MemorySpace.VMEM)] * 4,
            out_specs=pl.BlockSpec(memory_space=pltpu.MemorySpace.VMEM),
        )(x2, seg_bias, packed['lin1w'], packed['lin1b'])

    return forward


# --------------------------------------------------------------------------
# Parameters (torch.nn.Linear-style init, weights stored as [in, out])
# --------------------------------------------------------------------------
def _linear_init(key, fin, fout):
    kw, kb = jax.random.split(key)
    lim = 1.0 / float(np.sqrt(fin))
    w = jax.random.uniform(kw, (fin, fout), jnp.float32, -lim, lim)
    b = jax.random.uniform(kb, (1, fout), jnp.float32, -lim, lim)
    return w, b


def init_params(key):
    ks = jax.random.split(key, 13)
    p = {}
    p['l1w1'], p['l1b1'] = _linear_init(ks[0], 6, 32)    # Linear(3*2, 32)
    p['l1w2'], p['l1b2'] = _linear_init(ks[1], 32, 32)
    p['l1w3'], p['l1b3'] = _linear_init(ks[2], 32, 32)
    p['g1w1'], p['g1b1'] = _linear_init(ks[3], 32, 32)
    p['g1w2'], p['g1b2'] = _linear_init(ks[4], 32, 32)
    p['g1w3'], p['g1b3'] = _linear_init(ks[5], 32, 32)
    p['l2w1'], p['l2b1'] = _linear_init(ks[6], 35, 35)   # Linear(35, 35)
    p['l2w2'], p['l2b2'] = _linear_init(ks[7], 35, 35)
    p['l2w3'], p['l2b3'] = _linear_init(ks[8], 35, 35)
    p['g2w1'], p['g2b1'] = _linear_init(ks[9], 35, 35)
    p['g2w2'], p['g2b2'] = _linear_init(ks[10], 35, 35)
    p['g2w3'], p['g2b3'] = _linear_init(ks[11], 35, 35)
    p['lin1w'], p['lin1b'] = _linear_init(ks[12], 35, 2)
    return p


# --------------------------------------------------------------------------
# Plain-JAX reference (original concat formulation) for a correctness check
# --------------------------------------------------------------------------
def reference_forward(p, x, pos, edge_index, batch, batch_size):
    n = x.shape[0]
    adj = jnp.zeros((n, n), jnp.float32).at[edge_index[1], edge_index[0]].add(1.0)
    adj = jnp.maximum(adj, jnp.eye(n, dtype=jnp.float32))
    seg = (batch[None, :] ==
           jnp.arange(batch_size, dtype=batch.dtype)[:, None]).astype(jnp.float32)

    def elu(v):
        return jnp.where(v > 0, v, jnp.exp(jnp.minimum(v, 0.0)) - 1.0)

    def mm(a, w):
        return jnp.dot(a, w, precision='highest')

    def conv(feat, lw1, lb1, lw2, lb2, lw3, lb3, gw1, gb1, gw2, gb2, gw3, gb3):
        fdim = feat.shape[1]
        rel = pos[None, :, :] - pos[:, None, :]                       # [N, N, 3]
        fj = jnp.broadcast_to(feat[None, :, :], (n, n, fdim))
        m = jnp.concatenate([fj, rel], axis=-1).reshape(n * n, fdim + 3)
        m = elu(mm(m, lw1) + lb1)
        m = elu(mm(m, lw2) + lb2)
        m = (mm(m, lw3) + lb3).reshape(n, n, -1)
        aggr = jnp.max(jnp.where(adj[:, :, None] > 0, m, -1e30), axis=1)
        o = elu(mm(aggr, gw1) + gb1)
        o = elu(mm(o, gw2) + gb2)
        return mm(o, gw3) + gb3

    x1 = elu(conv(x, p['l1w1'], p['l1b1'], p['l1w2'], p['l1b2'], p['l1w3'], p['l1b3'],
                  p['g1w1'], p['g1b1'], p['g1w2'], p['g1b2'], p['g1w3'], p['g1b3']))
    x2 = elu(conv(x1, p['l2w1'], p['l2b1'], p['l2w2'], p['l2b2'], p['l2w3'], p['l2b3'],
                  p['g2w1'], p['g2b1'], p['g2w2'], p['g2b2'], p['g2w3'], p['g2b3']))
    pooled = jnp.max(jnp.where(seg[:, :, None] > 0, x2[None, :, :], -1e30), axis=1)
    return mm(pooled, p['lin1w']) + p['lin1b']
    # NOTE: TopKPooling / SortAggregation / mean+add pooling in GNN_v6.forward do
    # not influence the returned tensor and are intentionally omitted.


# --------------------------------------------------------------------------
if __name__ == "__main__":
    B = 2
    NODES_PER_GRAPH = 8
    N = B * NODES_PER_GRAPH

    key = jax.random.PRNGKey(0)
    k_x, k_pos, k_p = jax.random.split(key, 3)

    x = jax.random.normal(k_x, (N, 3), jnp.float32)
    pos = jax.random.normal(k_pos, (N, 3), jnp.float32)
    batch = jnp.repeat(jnp.arange(B, dtype=jnp.int32), NODES_PER_GRAPH)

    # Deterministic bidirectional ring within each graph.
    edges = []
    for g in range(B):
        off = g * NODES_PER_GRAPH
        for i in range(NODES_PER_GRAPH):
            j = (i + 1) % NODES_PER_GRAPH
            edges.append((off + i, off + j))
            edges.append((off + j, off + i))
    edge_index = jnp.asarray(np.array(edges, dtype=np.int32).T)   # [2, E]

    params = init_params(k_p)
    packed = pack_params(params)                                  # packed once
    forward = make_forward(B, tile=8)                             # jitted, static batch/tile

    out = forward(packed, x, pos, edge_index, batch)
    out = jax.block_until_ready(out)

    assert out.shape == (B, 2), out.shape
    assert bool(jnp.all(jnp.isfinite(out)))

    ref = reference_forward(params, x, pos, edge_index, batch, B)
    np.testing.assert_allclose(np.asarray(out), np.asarray(ref), rtol=5e-2, atol=5e-2)

    print("KERNEL_OK")
</pallas_src>

<mosaic_0001>
module attributes {stable_mosaic.version = 11 : i64} {
  func.func private @main(%arg0: i32) attributes {dimension_semantics = [#tpu.dimension_semantics<core_parallel>], iteration_bounds = array<i64: 2>, tpu.core_type = #tpu.core_type<sc_scalar_subcore>, window_params = []} {
    return
  }
}

module attributes {stable_mosaic.version = 11 : i64} {
  func.func private @main(%arg0: i32) attributes {dimension_semantics = [#tpu.dimension_semantics<core_parallel>], iteration_bounds = array<i64: 2>, tpu.core_type = #tpu.core_type<sc_scalar_subcore>, window_params = []} {
    return
  }
}

module attributes {stable_mosaic.version = 11 : i64} {
  func.func @_pool_lin_kernel(%arg0: memref<16x35xf32, #tpu.memory_space<vmem>>, %arg1: memref<2x16xf32, #tpu.memory_space<vmem>>, %arg2: memref<35x2xf32, #tpu.memory_space<vmem>>, %arg3: memref<1x2xf32, #tpu.memory_space<vmem>>, %arg4: memref<2x2xf32, #tpu.memory_space<vmem>>) attributes {dimension_semantics = [], scalar_prefetch = 0 : i64, scratch_operands = 0 : i64, tpu.core_type = #tpu.core_type<tc>} {
    %c0 = arith.constant 0 : index
    %c0_0 = arith.constant 0 : index
    %0 = vector.load %arg0[%c0, %c0_0] : memref<16x35xf32, #tpu.memory_space<vmem>>, vector<16x35xf32>
    %1 = vector.shape_cast %0 : vector<16x35xf32> to vector<1x16x35xf32>
    %c0_1 = arith.constant 0 : index
    %c0_2 = arith.constant 0 : index
    %2 = vector.load %arg1[%c0_1, %c0_2] : memref<2x16xf32, #tpu.memory_space<vmem>>, vector<2x16xf32>
    %3 = vector.shape_cast %2 : vector<2x16xf32> to vector<2x16x1xf32>
    %4 = vector.broadcast %1 : vector<1x16x35xf32> to vector<2x16x35xf32>
    %5 = vector.broadcast %3 : vector<2x16x1xf32> to vector<2x16x35xf32>
    %6 = arith.addf %4, %5 : vector<2x16x35xf32>
    %cst = arith.constant dense<0xFF800000> : vector<2x35xf32>
    %7 = vector.multi_reduction <maximumf>, %6, %cst [1] : vector<2x16x35xf32> to vector<2x35xf32>
    %c0_3 = arith.constant 0 : index
    %c0_4 = arith.constant 0 : index
    %8 = vector.load %arg2[%c0_3, %c0_4] : memref<35x2xf32, #tpu.memory_space<vmem>>, vector<35x2xf32>
    %cst_5 = arith.constant dense<0.000000e+00> : vector<2x2xf32>
    %9 = tpu.matmul %7, %8, %cst_5 {dimension_numbers = #tpu.dot_dimension_numbers<[1], [0], [0], [1], [0, 0, 1, 1], [], []>} : vector<2x35xf32>, vector<35x2xf32>, vector<2x2xf32> -> vector<2x2xf32>
    %c0_6 = arith.constant 0 : index
    %c0_7 = arith.constant 0 : index
    %10 = vector.load %arg3[%c0_6, %c0_7] : memref<1x2xf32, #tpu.memory_space<vmem>>, vector<1x2xf32>
    %11 = vector.broadcast %10 : vector<1x2xf32> to vector<2x2xf32>
    %12 = arith.addf %9, %11 : vector<2x2xf32>
    %c0_8 = arith.constant 0 : index
    %c0_9 = arith.constant 0 : index
    %13 = vector.load %arg4[%c0_8, %c0_9] : memref<2x2xf32, #tpu.memory_space<vmem>>, vector<2x2xf32>
    tpu.vector_store %arg4[%c0_8, %c0_9], %12 {strides = array<i32>} : memref<2x2xf32, #tpu.memory_space<vmem>>, vector<2x2xf32>,
    return
  }
}

module attributes {stable_mosaic.version = 11 : i64} {
  func.func @kernel(%arg0: i32, %arg1: memref<16x32xf32, #tpu.memory_space<vmem>>, %arg2: memref<16x3xf32, #tpu.memory_space<vmem>>, %arg3: memref<8x3xf32, #tpu.memory_space<vmem>>, %arg4: memref<8x16xf32, #tpu.memory_space<vmem>>, %arg5: memref<288x35xf32, #tpu.memory_space<vmem>>, %arg6: memref<8x35xf32, #tpu.memory_space<vmem>>) attributes {dimension_semantics = [#tpu.dimension_semantics<parallel>], iteration_bounds = array<i64: 2>, scalar_prefetch = 0 : i64, scratch_operands = 0 : i64, tpu.core_type = #tpu.core_type<tc>, window_params = [{pipeline_mode = #tpu.pipeline_mode<synchronous>, transform_indices = @transform_0, window_bounds = array<i64: 16, 32>}, {pipeline_mode = #tpu.pipeline_mode<synchronous>, transform_indices = @transform_1, window_bounds = array<i64: 16, 3>}, {transform_indices = @transform_2, window_bounds = array<i64: 8, 3>}, {transform_indices = @transform_3, window_bounds = array<i64: 8, 16>}, {pipeline_mode = #tpu.pipeline_mode<synchronous>, transform_indices = @transform_4, window_bounds = array<i64: 288, 35>}, {transform_indices = @transform_5, window_bounds = array<i64: 8, 35>}]} {
    %c0 = arith.constant 0 : index
    %c0_0 = arith.constant 0 : index
    %0 = vector.load %arg5[%c0, %c0_0] : memref<288x35xf32, #tpu.memory_space<vmem>>, vector<32x35xf32>
    %c32 = arith.constant 32 : index
    %c0_1 = arith.constant 0 : index
    %1 = vector.load %arg5[%c32, %c0_1] : memref<288x35xf32, #tpu.memory_space<vmem>>, vector<3x35xf32>
    %c40 = arith.constant 40 : index
    %c0_2 = arith.constant 0 : index
    %2 = vector.load %arg5[%c40, %c0_2] : memref<288x35xf32, #tpu.memory_space<vmem>>, vector<1x35xf32>
    %c48 = arith.constant 48 : index
    %c0_3 = arith.constant 0 : index
    %3 = vector.load %arg5[%c48, %c0_3] : memref<288x35xf32, #tpu.memory_space<vmem>>, vector<35x35xf32>
    %c88 = arith.constant 88 : index
    %c0_4 = arith.constant 0 : index
    %4 = vector.load %arg5[%c88, %c0_4] : memref<288x35xf32, #tpu.memory_space<vmem>>, vector<1x35xf32>
    %c96 = arith.constant 96 : index
    %c0_5 = arith.constant 0 : index
    %5 = vector.load %arg5[%c96, %c0_5] : memref<288x35xf32, #tpu.memory_space<vmem>>, vector<35x35xf32>
    %c136 = arith.constant 136 : index
    %c0_6 = arith.constant 0 : index
    %6 = vector.load %arg5[%c136, %c0_6] : memref<288x35xf32, #tpu.memory_space<vmem>>, vector<1x35xf32>
    %c144 = arith.constant 144 : index
    %c0_7 = arith.constant 0 : index
    %7 = vector.load %arg5[%c144, %c0_7] : memref<288x35xf32, #tpu.memory_space<vmem>>, vector<35x35xf32>
    %c184 = arith.constant 184 : index
    %c0_8 = arith.constant 0 : index
    %8 = vector.load %arg5[%c184, %c0_8] : memref<288x35xf32, #tpu.memory_space<vmem>>, vector<1x35xf32>
    %c192 = arith.constant 192 : index
    %c0_9 = arith.constant 0 : index
    %9 = vector.load %arg5[%c192, %c0_9] : memref<288x35xf32, #tpu.memory_space<vmem>>, vector<35x35xf32>
    %c232 = arith.constant 232 : index
    %c0_10 = arith.constant 0 : index
    %10 = vector.load %arg5[%c232, %c0_10] : memref<288x35xf32, #tpu.memory_space<vmem>>, vector<1x35xf32>
    %c240 = arith.constant 240 : index
    %c0_11 = arith.constant 0 : index
    %11 = vector.load %arg5[%c240, %c0_11] : memref<288x35xf32, #tpu.memory_space<vmem>>, vector<35x35xf32>
    %c280 = arith.constant 280 : index
    %c0_12 = arith.constant 0 : index
    %12 = vector.load %arg5[%c280, %c0_12] : memref<288x35xf32, #tpu.memory_space<vmem>>, vector<1x35xf32>
    %c0_13 = arith.constant 0 : index
    %c0_14 = arith.constant 0 : index
    %13 = vector.load %arg1[%c0_13, %c0_14] : memref<16x32xf32, #tpu.memory_space<vmem>>, vector<16x32xf32>
    %c0_15 = arith.constant 0 : index
    %c0_16 = arith.constant 0 : index
    %14 = vector.load %arg2[%c0_15, %c0_16] : memref<16x3xf32, #tpu.memory_space<vmem>>, vector<16x3xf32>
    %c0_17 = arith.constant 0 : index
    %c0_18 = arith.constant 0 : index
    %15 = vector.load %arg3[%c0_17, %c0_18] : memref<8x3xf32, #tpu.memory_space<vmem>>, vector<8x3xf32>
    %cst = arith.constant dense<0.000000e+00> : vector<16x35xf32>
    %16 = tpu.matmul %13, %0, %cst {dimension_numbers = #tpu.dot_dimension_numbers<[1], [0], [0], [1], [0, 0, 1, 1], [], []>} : vector<16x32xf32>, vector<32x35xf32>, vector<16x35xf32> -> vector<16x35xf32>
    %cst_19 = arith.constant dense<0.000000e+00> : vector<16x35xf32>
    %17 = tpu.matmul %14, %1, %cst_19 {dimension_numbers = #tpu.dot_dimension_numbers<[1], [0], [0], [1], [0, 0, 1, 1], [], []>} : vector<16x3xf32>, vector<3x35xf32>, vector<16x35xf32> -> vector<16x35xf32>
    %18 = arith.addf %16, %17 : vector<16x35xf32>
    %19 = vector.broadcast %2 : vector<1x35xf32> to vector<16x35xf32>
    %20 = arith.addf %18, %19 : vector<16x35xf32>
    %cst_20 = arith.constant dense<0.000000e+00> : vector<8x35xf32>
    %21 = tpu.matmul %15, %1, %cst_20 {dimension_numbers = #tpu.dot_dimension_numbers<[1], [0], [0], [1], [0, 0, 1, 1], [], []>} : vector<8x3xf32>, vector<3x35xf32>, vector<8x35xf32> -> vector<8x35xf32>
    %22 = vector.shape_cast %20 : vector<16x35xf32> to vector<1x16x35xf32>
    %23 = vector.shape_cast %21 : vector<8x35xf32> to vector<8x1x35xf32>
    %24 = vector.broadcast %22 : vector<1x16x35xf32> to vector<8x16x35xf32>
    %25 = vector.broadcast %23 : vector<8x1x35xf32> to vector<8x16x35xf32>
    %26 = arith.subf %24, %25 : vector<8x16x35xf32>
    %cst_21 = arith.constant 0.000000e+00 : f32
    %27 = vector.broadcast %cst_21 : f32 to vector<8x16x35xf32>
    %28 = arith.cmpf ogt, %26, %27 : vector<8x16x35xf32>
    %cst_22 = arith.constant 0.000000e+00 : f32
    %29 = vector.broadcast %cst_22 : f32 to vector<8x16x35xf32>
    %30 = arith.minimumf %26, %29 : vector<8x16x35xf32>
    %31 = math.exp %30 : vector<8x16x35xf32>
    %cst_23 = arith.constant 1.000000e+00 : f32
    %32 = vector.broadcast %cst_23 : f32 to vector<8x16x35xf32>
    %33 = arith.subf %31, %32 : vector<8x16x35xf32>
    %34 = arith.select %28, %26, %33 : vector<8x16x35xi1>, vector<8x16x35xf32>
    %35 = vector.shape_cast %34 : vector<8x16x35xf32> to vector<128x35xf32>
    %cst_24 = arith.constant dense<0.000000e+00> : vector<128x35xf32>
    %36 = tpu.matmul %35, %3, %cst_24 {dimension_numbers = #tpu.dot_dimension_numbers<[1], [0], [0], [1], [0, 0, 1, 1], [], []>} : vector<128x35xf32>, vector<35x35xf32>, vector<128x35xf32> -> vector<128x35xf32>
    %37 = vector.broadcast %4 : vector<1x35xf32> to vector<128x35xf32>
    %38 = arith.addf %36, %37 : vector<128x35xf32>
    %cst_25 = arith.constant 0.000000e+00 : f32
    %39 = vector.broadcast %cst_25 : f32 to vector<128x35xf32>
    %40 = arith.cmpf ogt, %38, %39 : vector<128x35xf32>
    %cst_26 = arith.constant 0.000000e+00 : f32
    %41 = vector.broadcast %cst_26 : f32 to vector<128x35xf32>
    %42 = arith.minimumf %38, %41 : vector<128x35xf32>
    %43 = math.exp %42 : vector<128x35xf32>
    %cst_27 = arith.constant 1.000000e+00 : f32
    %44 = vector.broadcast %cst_27 : f32 to vector<128x35xf32>
    %45 = arith.subf %43, %44 : vector<128x35xf32>
    %46 = arith.select %40, %38, %45 : vector<128x35xi1>, vector<128x35xf32>
    %cst_28 = arith.constant dense<0.000000e+00> : vector<128x35xf32>
    %47 = tpu.matmul %46, %5, %cst_28 {dimension_numbers = #tpu.dot_dimension_numbers<[1], [0], [0], [1], [0, 0, 1, 1], [], []>} : vector<128x35xf32>, vector<35x35xf32>, vector<128x35xf32> -> vector<128x35xf32>
    %48 = vector.broadcast %6 : vector<1x35xf32> to vector<128x35xf32>
    %49 = arith.addf %47, %48 : vector<128x35xf32>
    %50 = vector.shape_cast %49 : vector<128x35xf32> to vector<8x16x35xf32>
    %c0_29 = arith.constant 0 : index
    %c0_30 = arith.constant 0 : index
    %51 = vector.load %arg4[%c0_29, %c0_30] : memref<8x16xf32, #tpu.memory_space<vmem>>, vector<8x16xf32>
    %52 = vector.shape_cast %51 : vector<8x16xf32> to vector<8x16x1xf32>
    %53 = vector.broadcast %52 : vector<8x16x1xf32> to vector<8x16x35xf32>
    %54 = arith.addf %50, %53 : vector<8x16x35xf32>
    %cst_31 = arith.constant dense<0xFF800000> : vector<8x35xf32>
    %55 = vector.multi_reduction <maximumf>, %54, %cst_31 [1] : vector<8x16x35xf32> to vector<8x35xf32>
    %cst_32 = arith.constant dense<0.000000e+00> : vector<8x35xf32>
    %56 = tpu.matmul %55, %7, %cst_32 {dimension_numbers = #tpu.dot_dimension_numbers<[1], [0], [0], [1], [0, 0, 1, 1], [], []>} : vector<8x35xf32>, vector<35x35xf32>, vector<8x35xf32> -> vector<8x35xf32>
    %57 = vector.broadcast %8 : vector<1x35xf32> to vector<8x35xf32>
    %58 = arith.addf %56, %57 : vector<8x35xf32>
    %cst_33 = arith.constant 0.000000e+00 : f32
    %59 = vector.broadcast %cst_33 : f32 to vector<8x35xf32>
    %60 = arith.cmpf ogt, %58, %59 : vector<8x35xf32>
    %cst_34 = arith.constant 0.000000e+00 : f32
    %61 = vector.broadcast %cst_34 : f32 to vector<8x35xf32>
    %62 = arith.minimumf %58, %61 : vector<8x35xf32>
    %63 = math.exp %62 : vector<8x35xf32>
    %cst_35 = arith.constant 1.000000e+00 : f32
    %64 = vector.broadcast %cst_35 : f32 to vector<8x35xf32>
    %65 = arith.subf %63, %64 : vector<8x35xf32>
    %66 = arith.select %60, %58, %65 : vector<8x35xi1>, vector<8x35xf32>
    %cst_36 = arith.constant dense<0.000000e+00> : vector<8x35xf32>
    %67 = tpu.matmul %66, %9, %cst_36 {dimension_numbers = #tpu.dot_dimension_numbers<[1], [0], [0], [1], [0, 0, 1, 1], [], []>} : vector<8x35xf32>, vector<35x35xf32>, vector<8x35xf32> -> vector<8x35xf32>
    %68 = vector.broadcast %10 : vector<1x35xf32> to vector<8x35xf32>
    %69 = arith.addf %67, %68 : vector<8x35xf32>
    %cst_37 = arith.constant 0.000000e+00 : f32
    %70 = vector.broadcast %cst_37 : f32 to vector<8x35xf32>
    %71 = arith.cmpf ogt, %69, %70 : vector<8x35xf32>
    %cst_38 = arith.constant 0.000000e+00 : f32
    %72 = vector.broadcast %cst_38 : f32 to vector<8x35xf32>
    %73 = arith.minimumf %69, %72 : vector<8x35xf32>
    %74 = math.exp %73 : vector<8x35xf32>
    %cst_39 = arith.constant 1.000000e+00 : f32
    %75 = vector.broadcast %cst_39 : f32 to vector<8x35xf32>
    %76 = arith.subf %74, %75 : vector<8x35xf32>
    %77 = arith.select %71, %69, %76 : vector<8x35xi1>, vector<8x35xf32>
    %cst_40 = arith.constant dense<0.000000e+00> : vector<8x35xf32>
    %78 = tpu.matmul %77, %11, %cst_40 {dimension_numbers = #tpu.dot_dimension_numbers<[1], [0], [0], [1], [0, 0, 1, 1], [], []>} : vector<8x35xf32>, vector<35x35xf32>, vector<8x35xf32> -> vector<8x35xf32>
    %79 = vector.broadcast %12 : vector<1x35xf32> to vector<8x35xf32>
    %80 = arith.addf %78, %79 : vector<8x35xf32>
    %cst_41 = arith.constant 0.000000e+00 : f32
    %81 = vector.broadcast %cst_41 : f32 to vector<8x35xf32>
    %82 = arith.cmpf ogt, %80, %81 : vector<8x35xf32>
    %cst_42 = arith.constant 0.000000e+00 : f32
    %83 = vector.broadcast %cst_42 : f32 to vector<8x35xf32>
    %84 = arith.minimumf %80, %83 : vector<8x35xf32>
    %85 = math.exp %84 : vector<8x35xf32>
    %cst_43 = arith.constant 1.000000e+00 : f32
    %86 = vector.broadcast %cst_43 : f32 to vector<8x35xf32>
    %87 = arith.subf %85, %86 : vector<8x35xf32>
    %88 = arith.select %82, %80, %87 : vector<8x35xi1>, vector<8x35xf32>
    %c0_44 = arith.constant 0 : index
    %c0_45 = arith.constant 0 : index
    %89 = vector.load %arg6[%c0_44, %c0_45] : memref<8x35xf32, #tpu.memory_space<vmem>>, vector<8x35xf32>
    tpu.vector_store %arg6[%c0_44, %c0_45], %88 {strides = array<i32>} : memref<8x35xf32, #tpu.memory_space<vmem>>, vector<8x35xf32>,
    return
  }
  func.func @transform_0(%arg0: i32) -> (i32, i32) {
    %c0_i32 = arith.constant 0 : i32
    %c0_i32_0 = arith.constant 0 : i32
    %c0_i32_1 = arith.constant 0 : i32
    return %c0_i32, %c0_i32_0 : i32, i32
  }
  func.func @transform_1(%arg0: i32) -> (i32, i32) {
    %c0_i32 = arith.constant 0 : i32
    %c0_i32_0 = arith.constant 0 : i32
    %c0_i32_1 = arith.constant 0 : i32
    return %c0_i32, %c0_i32_0 : i32, i32
  }
  func.func @transform_2(%arg0: i32) -> (i32, i32) {
    %c0_i32 = arith.constant 0 : i32
    %c0_i32_0 = arith.constant 0 : i32
    return %arg0, %c0_i32 : i32, i32
  }
  func.func @transform_3(%arg0: i32) -> (i32, i32) {
    %c0_i32 = arith.constant 0 : i32
    %c0_i32_0 = arith.constant 0 : i32
    return %arg0, %c0_i32 : i32, i32
  }
  func.func @transform_4(%arg0: i32) -> (i32, i32) {
    %c0_i32 = arith.constant 0 : i32
    %c0_i32_0 = arith.constant 0 : i32
    %c0_i32_1 = arith.constant 0 : i32
    return %c0_i32, %c0_i32_0 : i32, i32
  }
  func.func @transform_5(%arg0: i32) -> (i32, i32) {
    %c0_i32 = arith.constant 0 : i32
    %c0_i32_0 = arith.constant 0 : i32
    return %arg0, %c0_i32 : i32, i32
  }
}

module attributes {stable_mosaic.version = 11 : i64} {
  func.func @kernel(%arg0: i32, %arg1: memref<16x3xf32, #tpu.memory_space<vmem>>, %arg2: memref<16x3xf32, #tpu.memory_space<vmem>>, %arg3: memref<8x3xf32, #tpu.memory_space<vmem>>, %arg4: memref<8x16xf32, #tpu.memory_space<vmem>>, %arg5: memref<224x32xf32, #tpu.memory_space<vmem>>, %arg6: memref<8x32xf32, #tpu.memory_space<vmem>>) attributes {dimension_semantics = [#tpu.dimension_semantics<parallel>], iteration_bounds = array<i64: 2>, scalar_prefetch = 0 : i64, scratch_operands = 0 : i64, tpu.core_type = #tpu.core_type<tc>, window_params = [{pipeline_mode = #tpu.pipeline_mode<synchronous>, transform_indices = @transform_0, window_bounds = array<i64: 16, 3>}, {pipeline_mode = #tpu.pipeline_mode<synchronous>, transform_indices = @transform_1, window_bounds = array<i64: 16, 3>}, {transform_indices = @transform_2, window_bounds = array<i64: 8, 3>}, {transform_indices = @transform_3, window_bounds = array<i64: 8, 16>}, {pipeline_mode = #tpu.pipeline_mode<synchronous>, transform_indices = @transform_4, window_bounds = array<i64: 224, 32>}, {transform_indices = @transform_5, window_bounds = array<i64: 8, 32>}]} {
    %c0 = arith.constant 0 : index
    %c0_0 = arith.constant 0 : index
    %0 = vector.load %arg5[%c0, %c0_0] : memref<224x32xf32, #tpu.memory_space<vmem>>, vector<3x32xf32>
    %c8 = arith.constant 8 : index
    %c0_1 = arith.constant 0 : index
    %1 = vector.load %arg5[%c8, %c0_1] : memref<224x32xf32, #tpu.memory_space<vmem>>, vector<3x32xf32>
    %c16 = arith.constant 16 : index
    %c0_2 = arith.constant 0 : index
    %2 = vector.load %arg5[%c16, %c0_2] : memref<224x32xf32, #tpu.memory_space<vmem>>, vector<1x32xf32>
    %c24 = arith.constant 24 : index
    %c0_3 = arith.constant 0 : index
    %3 = vector.load %arg5[%c24, %c0_3] : memref<224x32xf32, #tpu.memory_space<vmem>>, vector<32x32xf32>
    %c56 = arith.constant 56 : index
    %c0_4 = arith.constant 0 : index
    %4 = vector.load %arg5[%c56, %c0_4] : memref<224x32xf32, #tpu.memory_space<vmem>>, vector<1x32xf32>
    %c64 = arith.constant 64 : index
    %c0_5 = arith.constant 0 : index
    %5 = vector.load %arg5[%c64, %c0_5] : memref<224x32xf32, #tpu.memory_space<vmem>>, vector<32x32xf32>
    %c96 = arith.constant 96 : index
    %c0_6 = arith.constant 0 : index
    %6 = vector.load %arg5[%c96, %c0_6] : memref<224x32xf32, #tpu.memory_space<vmem>>, vector<1x32xf32>
    %c104 = arith.constant 104 : index
    %c0_7 = arith.constant 0 : index
    %7 = vector.load %arg5[%c104, %c0_7] : memref<224x32xf32, #tpu.memory_space<vmem>>, vector<32x32xf32>
    %c136 = arith.constant 136 : index
    %c0_8 = arith.constant 0 : index
    %8 = vector.load %arg5[%c136, %c0_8] : memref<224x32xf32, #tpu.memory_space<vmem>>, vector<1x32xf32>
    %c144 = arith.constant 144 : index
    %c0_9 = arith.constant 0 : index
    %9 = vector.load %arg5[%c144, %c0_9] : memref<224x32xf32, #tpu.memory_space<vmem>>, vector<32x32xf32>
    %c176 = arith.constant 176 : index
    %c0_10 = arith.constant 0 : index
    %10 = vector.load %arg5[%c176, %c0_10] : memref<224x32xf32, #tpu.memory_space<vmem>>, vector<1x32xf32>
    %c184 = arith.constant 184 : index
    %c0_11 = arith.constant 0 : index
    %11 = vector.load %arg5[%c184, %c0_11] : memref<224x32xf32, #tpu.memory_space<vmem>>, vector<32x32xf32>
    %c216 = arith.constant 216 : index
    %c0_12 = arith.constant 0 : index
    %12 = vector.load %arg5[%c216, %c0_12] : memref<224x32xf32, #tpu.memory_space<vmem>>, vector<1x32xf32>
    %c0_13 = arith.constant 0 : index
    %c0_14 = arith.constant 0 : index
    %13 = vector.load %arg1[%c0_13, %c0_14] : memref<16x3xf32, #tpu.memory_space<vmem>>, vector<16x3xf32>
    %c0_15 = arith.constant 0 : index
    %c0_16 = arith.constant 0 : index
    %14 = vector.load %arg2[%c0_15, %c0_16] : memref<16x3xf32, #tpu.memory_space<vmem>>, vector<16x3xf32>
    %c0_17 = arith.constant 0 : index
    %c0_18 = arith.constant 0 : index
    %15 = vector.load %arg3[%c0_17, %c0_18] : memref<8x3xf32, #tpu.memory_space<vmem>>, vector<8x3xf32>
    %cst = arith.constant dense<0.000000e+00> : vector<16x32xf32>
    %16 = tpu.matmul %13, %0, %cst {dimension_numbers = #tpu.dot_dimension_numbers<[1], [0], [0], [1], [0, 0, 1, 1], [], []>} : vector<16x3xf32>, vector<3x32xf32>, vector<16x32xf32> -> vector<16x32xf32>
    %cst_19 = arith.constant dense<0.000000e+00> : vector<16x32xf32>
    %17 = tpu.matmul %14, %1, %cst_19 {dimension_numbers = #tpu.dot_dimension_numbers<[1], [0], [0], [1], [0, 0, 1, 1], [], []>} : vector<16x3xf32>, vector<3x32xf32>, vector<16x32xf32> -> vector<16x32xf32>
    %18 = arith.addf %16, %17 : vector<16x32xf32>
    %19 = vector.broadcast %2 : vector<1x32xf32> to vector<16x32xf32>
    %20 = arith.addf %18, %19 : vector<16x32xf32>
    %cst_20 = arith.constant dense<0.000000e+00> : vector<8x32xf32>
    %21 = tpu.matmul %15, %1, %cst_20 {dimension_numbers = #tpu.dot_dimension_numbers<[1], [0], [0], [1], [0, 0, 1, 1], [], []>} : vector<8x3xf32>, vector<3x32xf32>, vector<8x32xf32> -> vector<8x32xf32>
    %22 = vector.shape_cast %20 : vector<16x32xf32> to vector<1x16x32xf32>
    %23 = vector.shape_cast %21 : vector<8x32xf32> to vector<8x1x32xf32>
    %24 = vector.broadcast %22 : vector<1x16x32xf32> to vector<8x16x32xf32>
    %25 = vector.broadcast %23 : vector<8x1x32xf32> to vector<8x16x32xf32>
    %26 = arith.subf %24, %25 : vector<8x16x32xf32>
    %cst_21 = arith.constant 0.000000e+00 : f32
    %27 = vector.broadcast %cst_21 : f32 to vector<8x16x32xf32>
    %28 = arith.cmpf ogt, %26, %27 : vector<8x16x32xf32>
    %cst_22 = arith.constant 0.000000e+00 : f32
    %29 = vector.broadcast %cst_22 : f32 to vector<8x16x32xf32>
    %30 = arith.minimumf %26, %29 : vector<8x16x32xf32>
    %31 = math.exp %30 : vector<8x16x32xf32>
    %cst_23 = arith.constant 1.000000e+00 : f32
    %32 = vector.broadcast %cst_23 : f32 to vector<8x16x32xf32>
    %33 = arith.subf %31, %32 : vector<8x16x32xf32>
    %34 = arith.select %28, %26, %33 : vector<8x16x32xi1>, vector<8x16x32xf32>
    %35 = vector.shape_cast %34 : vector<8x16x32xf32> to vector<128x32xf32>
    %cst_24 = arith.constant dense<0.000000e+00> : vector<128x32xf32>
    %36 = tpu.matmul %35, %3, %cst_24 {dimension_numbers = #tpu.dot_dimension_numbers<[1], [0], [0], [1], [0, 0, 1, 1], [], []>} : vector<128x32xf32>, vector<32x32xf32>, vector<128x32xf32> -> vector<128x32xf32>
    %37 = vector.broadcast %4 : vector<1x32xf32> to vector<128x32xf32>
    %38 = arith.addf %36, %37 : vector<128x32xf32>
    %cst_25 = arith.constant 0.000000e+00 : f32
    %39 = vector.broadcast %cst_25 : f32 to vector<128x32xf32>
    %40 = arith.cmpf ogt, %38, %39 : vector<128x32xf32>
    %cst_26 = arith.constant 0.000000e+00 : f32
    %41 = vector.broadcast %cst_26 : f32 to vector<128x32xf32>
    %42 = arith.minimumf %38, %41 : vector<128x32xf32>
    %43 = math.exp %42 : vector<128x32xf32>
    %cst_27 = arith.constant 1.000000e+00 : f32
    %44 = vector.broadcast %cst_27 : f32 to vector<128x32xf32>
    %45 = arith.subf %43, %44 : vector<128x32xf32>
    %46 = arith.select %40, %38, %45 : vector<128x32xi1>, vector<128x32xf32>
    %cst_28 = arith.constant dense<0.000000e+00> : vector<128x32xf32>
    %47 = tpu.matmul %46, %5, %cst_28 {dimension_numbers = #tpu.dot_dimension_numbers<[1], [0], [0], [1], [0, 0, 1, 1], [], []>} : vector<128x32xf32>, vector<32x32xf32>, vector<128x32xf32> -> vector<128x32xf32>
    %48 = vector.broadcast %6 : vector<1x32xf32> to vector<128x32xf32>
    %49 = arith.addf %47, %48 : vector<128x32xf32>
    %50 = vector.shape_cast %49 : vector<128x32xf32> to vector<8x16x32xf32>
    %c0_29 = arith.constant 0 : index
    %c0_30 = arith.constant 0 : index
    %51 = vector.load %arg4[%c0_29, %c0_30] : memref<8x16xf32, #tpu.memory_space<vmem>>, vector<8x16xf32>
    %52 = vector.shape_cast %51 : vector<8x16xf32> to vector<8x16x1xf32>
    %53 = vector.broadcast %52 : vector<8x16x1xf32> to vector<8x16x32xf32>
    %54 = arith.addf %50, %53 : vector<8x16x32xf32>
    %cst_31 = arith.constant dense<0xFF800000> : vector<8x32xf32>
    %55 = vector.multi_reduction <maximumf>, %54, %cst_31 [1] : vector<8x16x32xf32> to vector<8x32xf32>
    %cst_32 = arith.constant dense<0.000000e+00> : vector<8x32xf32>
    %56 = tpu.matmul %55, %7, %cst_32 {dimension_numbers = #tpu.dot_dimension_numbers<[1], [0], [0], [1], [0, 0, 1, 1], [], []>} : vector<8x32xf32>, vector<32x32xf32>, vector<8x32xf32> -> vector<8x32xf32>
    %57 = vector.broadcast %8 : vector<1x32xf32> to vector<8x32xf32>
    %58 = arith.addf %56, %57 : vector<8x32xf32>
    %cst_33 = arith.constant 0.000000e+00 : f32
    %59 = vector.broadcast %cst_33 : f32 to vector<8x32xf32>
    %60 = arith.cmpf ogt, %58, %59 : vector<8x32xf32>
    %cst_34 = arith.constant 0.000000e+00 : f32
    %61 = vector.broadcast %cst_34 : f32 to vector<8x32xf32>
    %62 = arith.minimumf %58, %61 : vector<8x32xf32>
    %63 = math.exp %62 : vector<8x32xf32>
    %cst_35 = arith.constant 1.000000e+00 : f32
    %64 = vector.broadcast %cst_35 : f32 to vector<8x32xf32>
    %65 = arith.subf %63, %64 : vector<8x32xf32>
    %66 = arith.select %60, %58, %65 : vector<8x32xi1>, vector<8x32xf32>
    %cst_36 = arith.constant dense<0.000000e+00> : vector<8x32xf32>
    %67 = tpu.matmul %66, %9, %cst_36 {dimension_numbers = #tpu.dot_dimension_numbers<[1], [0], [0], [1], [0, 0, 1, 1], [], []>} : vector<8x32xf32>, vector<32x32xf32>, vector<8x32xf32> -> vector<8x32xf32>
    %68 = vector.broadcast %10 : vector<1x32xf32> to vector<8x32xf32>
    %69 = arith.addf %67, %68 : vector<8x32xf32>
    %cst_37 = arith.constant 0.000000e+00 : f32
    %70 = vector.broadcast %cst_37 : f32 to vector<8x32xf32>
    %71 = arith.cmpf ogt, %69, %70 : vector<8x32xf32>
    %cst_38 = arith.constant 0.000000e+00 : f32
    %72 = vector.broadcast %cst_38 : f32 to vector<8x32xf32>
    %73 = arith.minimumf %69, %72 : vector<8x32xf32>
    %74 = math.exp %73 : vector<8x32xf32>
    %cst_39 = arith.constant 1.000000e+00 : f32
    %75 = vector.broadcast %cst_39 : f32 to vector<8x32xf32>
    %76 = arith.subf %74, %75 : vector<8x32xf32>
    %77 = arith.select %71, %69, %76 : vector<8x32xi1>, vector<8x32xf32>
    %cst_40 = arith.constant dense<0.000000e+00> : vector<8x32xf32>
    %78 = tpu.matmul %77, %11, %cst_40 {dimension_numbers = #tpu.dot_dimension_numbers<[1], [0], [0], [1], [0, 0, 1, 1], [], []>} : vector<8x32xf32>, vector<32x32xf32>, vector<8x32xf32> -> vector<8x32xf32>
    %79 = vector.broadcast %12 : vector<1x32xf32> to vector<8x32xf32>
    %80 = arith.addf %78, %79 : vector<8x32xf32>
    %cst_41 = arith.constant 0.000000e+00 : f32
    %81 = vector.broadcast %cst_41 : f32 to vector<8x32xf32>
    %82 = arith.cmpf ogt, %80, %81 : vector<8x32xf32>
    %cst_42 = arith.constant 0.000000e+00 : f32
    %83 = vector.broadcast %cst_42 : f32 to vector<8x32xf32>
    %84 = arith.minimumf %80, %83 : vector<8x32xf32>
    %85 = math.exp %84 : vector<8x32xf32>
    %cst_43 = arith.constant 1.000000e+00 : f32
    %86 = vector.broadcast %cst_43 : f32 to vector<8x32xf32>
    %87 = arith.subf %85, %86 : vector<8x32xf32>
    %88 = arith.select %82, %80, %87 : vector<8x32xi1>, vector<8x32xf32>
    %c0_44 = arith.constant 0 : index
    %c0_45 = arith.constant 0 : index
    %89 = vector.load %arg6[%c0_44, %c0_45] : memref<8x32xf32, #tpu.memory_space<vmem>>, vector<8x32xf32>
    tpu.vector_store %arg6[%c0_44, %c0_45], %88 {strides = array<i32>} : memref<8x32xf32, #tpu.memory_space<vmem>>, vector<8x32xf32>,
    return
  }
  func.func @transform_0(%arg0: i32) -> (i32, i32) {
    %c0_i32 = arith.constant 0 : i32
    %c0_i32_0 = arith.constant 0 : i32
    %c0_i32_1 = arith.constant 0 : i32
    return %c0_i32, %c0_i32_0 : i32, i32
  }
  func.func @transform_1(%arg0: i32) -> (i32, i32) {
    %c0_i32 = arith.constant 0 : i32
    %c0_i32_0 = arith.constant 0 : i32
    %c0_i32_1 = arith.constant 0 : i32
    return %c0_i32, %c0_i32_0 : i32, i32
  }
  func.func @transform_2(%arg0: i32) -> (i32, i32) {
    %c0_i32 = arith.constant 0 : i32
    %c0_i32_0 = arith.constant 0 : i32
    return %arg0, %c0_i32 : i32, i32
  }
  func.func @transform_3(%arg0: i32) -> (i32, i32) {
    %c0_i32 = arith.constant 0 : i32
    %c0_i32_0 = arith.constant 0 : i32
    return %arg0, %c0_i32 : i32, i32
  }
  func.func @transform_4(%arg0: i32) -> (i32, i32) {
    %c0_i32 = arith.constant 0 : i32
    %c0_i32_0 = arith.constant 0 : i32
    %c0_i32_1 = arith.constant 0 : i32
    return %c0_i32, %c0_i32_0 : i32, i32
  }
  func.func @transform_5(%arg0: i32) -> (i32, i32) {
    %c0_i32 = arith.constant 0 : i32
    %c0_i32_0 = arith.constant 0 : i32
    return %arg0, %c0_i32 : i32, i32
  }
}

</mosaic_0001>

<llo_original>
// kernel: forward.5
$region0: #{forward.5}
  #allocation0 [shape = 'u32[]', space=smem, size = 0x4, offset = 0x4, fixed_abs, tag = 'smem constant byte address 0x4 - core index']
  #allocation1 [shape = 'u32[144,128]{1,0:T(1,128)}', space=vmem, size = 0x12000, scoped, tag = 'internal scratch']
  %s0 = inlined_call_operand.vmem [shape: f32[16,35], index: 0, kind: input, shape index: {}]
  %s1 = inlined_call_operand.vmem [shape: f32[2,16], index: 1, kind: input, shape index: {}]
  %s2 = inlined_call_operand.vmem [shape: f32[35,2], index: 2, kind: input, shape index: {}]
  %s3 = inlined_call_operand.vmem [shape: f32[1,2], index: 3, kind: input, shape index: {}]
  %s4 = inlined_call_operand.hbm [shape: f32[2,2], index: 4, kind: output, shape index: {}]
  %s5 = sld [smem:[#allocation0]]
  $region26: #{forward.5} parent=0
    _
  %s7 = ssub.s32 1, %s5
  %s8 = scalar_select 0, %s7, %s5
  $region1: #{forward.5} parent=0
    #allocation2 [shape = 'u8[1024]{0}', space=vmem, size = 0x400, scoped, tag = 'output window, operand 0, single buffered']
    #allocation3 [shape = 's32[1]{0}', space=sflag, size = 0x4, scoped, tag = 'scoped memory for forward.5']
    %9 = vsyncpa [#allocation3], 0
    // Predicated region
    $region2: #{forward.5} parent=1 // pred_check
      _
    $region3: #{forward.5} parent=1 // pred_check_branch
      %11 = sbr.rel (0) target = $region5
    $region4: #{forward.5} parent=1 // pred_region
      _
    $region5: #{forward.5} parent=1 // pred_fallthru
      _
    // Predicated region
    $region6: #{forward.5} parent=1 // pred_check
      _
    $region7: #{forward.5} parent=1 // pred_check_branch
      %13 = sbr.rel (0) target = $region9
    $region8: #{forward.5} parent=1 // pred_region
      _
    $region9: #{forward.5} parent=1 // pred_fallthru
      _
    // Predicated region
    $region10: #{forward.5} parent=1 // pred_check
      _
    $region11: #{forward.5} parent=1 // pred_check_branch
      %15 = sbr.rel (0) target = $region13
    $region12: #{forward.5} parent=1 // pred_region
      _
    $region13: #{forward.5} parent=1 // pred_fallthru
      _
    // Predicated region
    $region14: #{forward.5} parent=1 // pred_check
      _
    $region15: #{forward.5} parent=1 // pred_check_branch
      %17 = sbr.rel (0) target = $region17
    $region16: #{forward.5} parent=1 // pred_region
      _
    $region17: #{forward.5} parent=1 // pred_fallthru
      _
    %v18 = vld [vmem:[%s0] sm:$0xff]
    %v19 = vld [vmem:[%s0 + $0x8] sm:$0xff]
    %v20 = vld [vmem:[%s1] sm:$0x3]
    %v21 = vlaneseq
    %v22 = vshrl.u32 %v21, 7
    %v23 = vsub.s32 0, %v22
    %v24 = vrot.slane %v20, %v23
    %26 = vbcast.lane.b32.xlu0 %v24, 256
    %v27 = vpop.permute.xlu0 %26
    %s29 = sor.u32 256, 8
    %30 = vbcast.lane.b32.xlu0 %v24, %s29
    %v31 = vpop.permute.xlu0 %30
    %v32 = vlaneseq
    %v33 = vshrl.u32 %v32, 7
    %v34 = vsub.s32 1, %v33
    %v35 = vrot.slane %v20, %v34
    %37 = vbcast.lane.b32.xlu0 %v35, 256
    %v38 = vpop.permute.xlu0 %37
    %s40 = sor.u32 256, 8
    %41 = vbcast.lane.b32.xlu0 %v35, %s40
    %v42 = vpop.permute.xlu0 %41
    %v43 = vadd.f32 %v18, %v27
    %v44 = vadd.f32 %v19, %v31
    %v45 = vadd.f32 %v18, %v38
    %v46 = vadd.f32 %v19, %v42
    %vm47 = vcmask 285696
    %v48 = vsel %vm47, %v43, -inf
    %v49 = vsel %vm47, %v44, -inf
    %v50 = vmax.f32 %v48, %v49
    %v51 = vrot.slane %v50, 4
    %v52 = vmax.f32 %v50, %v51
    %v53 = vrot.slane %v52, 2
    %v54 = vmax.f32 %v52, %v53
    %v55 = vrot.slane %v54, 1
    %v56 = vmax.f32 %v54, %v55
    %v57 = vsel %vm47, %v45, -inf
    %v58 = vsel %vm47, %v46, -inf
    %v59 = vmax.f32 %v57, %v58
    %v60 = vrot.slane %v59, 4
    %v61 = vmax.f32 %v59, %v60
    %v62 = vrot.slane %v61, 2
    %v63 = vmax.f32 %v61, %v62
    %v64 = vrot.slane %v63, 1
    %v65 = vmax.f32 %v63, %v64
    %v66 = vld [vmem:[%s2] sm:$0xff]
    %v67 = vld [vmem:[%s2 + $0x8] sm:$0xff]
    %v68 = vld [vmem:[%s2 + $0x10] sm:$0xff]
    %v69 = vld [vmem:[%s2 + $0x18] sm:$0xff]
    %v70 = vld [vmem:[%s2 + $0x20] sm:$0x7]
    %v71 = vld [vmem:[%s3] sm:$0x1]
    %v73 = vlaneseq
    %v74 = vshrl.u32 %v73, 7
    %v75 = vsub.s32 0, %v74
    %v76 = vrot.slane %v71, %v75
    %vm80 = vcmask 1041409
    %v81 = vsel %vm80, %v65, %v56
    %v82 = vsel %vm47, %v81, 0
    %vm84 = vcmask 1042432
    %v86 = vsel %vm84, %v70, 0
    %88 = vmatprep.subr.mxu0 0.0
    %89 = vmatpush1.msra.mxu0 %v66
    %90 = vmatprep.subr.mxu0 0.0
    %91 = vmatpush1.msra.mxu0 %v67
    %92 = vmatprep.subr.mxu0 0.0
    %93 = vmatpush1.msra.mxu0 %v68
    %94 = vmatprep.subr.mxu0 0.0
    %95 = vmatpush1.msra.mxu0 %v69
    %96 = vmatprep.subr.mxu0 0.0
    %97 = vmatpush1.msra.mxu0 %v86
    %98 = vmatprep.subr.mxu0 0.0
    %99 = vmatpush1.msra.mxu0 0.0
    %100 = vmatprep.subr.mxu0 0.0
    %101 = vmatpush1.msra.mxu0 0.0
    %102 = vmatprep.subr.mxu0 0.0
    %103 = vmatpush1.msra.mxu0 0.0
    %104 = vmatprep.subr.mxu0 0.0
    %105 = vmatpush1.msra.mxu0 0.0
    %106 = vmatprep.subr.mxu0 0.0
    %107 = vmatpush1.msra.mxu0 0.0
    %108 = vmatprep.subr.mxu0 0.0
    %109 = vmatpush1.msra.mxu0 0.0
    %110 = vmatprep.subr.mxu0 0.0
    %111 = vmatpush1.msra.mxu0 0.0
    %112 = vmatprep.subr.mxu0 0.0
    %113 = vmatpush1.msra.mxu0 0.0
    %114 = vmatprep.subr.mxu0 0.0
    %115 = vmatpush1.msra.mxu0 0.0
    %116 = vmatprep.subr.mxu0 0.0
    %117 = vmatpush1.msra.mxu0 0.0
    %118 = vmatprep.subr.mxu0 0.0
    %119 = vmatpush1.msra.mxu0 0.0
    %120 = vmatprep.subr.mxu0 0.0
    %121 = vmatpush1.msra.mxu0 0.0
    %122 = vmatprep.subr.mxu0 0.0
    %123 = vmatpush1.msra.mxu0 0.0
    %124 = vmatprep.subr.mxu0 0.0
    %125 = vmatpush1.msra.mxu0 0.0
    %126 = vmatprep.subr.mxu0 0.0
    %127 = vmatpush1.msra.mxu0 0.0
    %128 = vmatprep.subr.mxu0 0.0
    %129 = vmatpush1.msra.mxu0 0.0
    %130 = vmatprep.subr.mxu0 0.0
    %131 = vmatpush1.msra.mxu0 0.0
    %132 = vmatprep.subr.mxu0 0.0
    %133 = vmatpush1.msra.mxu0 0.0
    %134 = vmatprep.subr.mxu0 0.0
    %135 = vmatpush1.msra.mxu0 0.0
    %136 = vmatprep.subr.mxu0 0.0
    %137 = vmatpush1.msra.mxu0 0.0
    %138 = vmatprep.subr.mxu0 0.0
    %139 = vmatpush1.msra.mxu0 0.0
    %140 = vmatprep.subr.mxu0 0.0
    %141 = vmatpush1.msra.mxu0 0.0
    %142 = vmatprep.subr.mxu0 0.0
    %143 = vmatpush1.msra.mxu0 0.0
    %144 = vmatprep.subr.mxu0 0.0
    %145 = vmatpush1.msra.mxu0 0.0
    %146 = vmatprep.subr.mxu0 0.0
    %147 = vmatpush1.msra.mxu0 0.0
    %148 = vmatprep.subr.mxu0 0.0
    %149 = vmatpush1.msra.mxu0 0.0
    %150 = vmatprep.subr.mxu0 0.0
    %151 = vmatpush1.msra.mxu0 0.0
    %152 = vmatprep.mubr.f32.mxu0 0.0
    %153 = vmatmul.mubr.f32.gmra.mrb[0].mxu0 %v82
    %v154 = vpop.f32.mrb[0].mxu0
    %v155 = vadd.f32 %v76, %v154
    %v156 = vpop.f32.mrb[0].mxu0
    %157 = vdwg.mxu0
    %vm158 = vcmask 9216
    %159 = vst.msk [vmem:[#allocation2] sm:$0x3] %vm158, %v155
    // Predicated region
    $region18: #{forward.5} parent=1 // pred_check
      _
    $region19: #{forward.5} parent=1 // pred_check_branch
      %161 = sbr.rel (0) target = $region21
    $region20: #{forward.5} parent=1 // pred_region
      %s163 = ssub.s32 32, 32
      %164 = vsyncadd [#allocation3], %s163
      %s166 = sshll.u32 [#allocation2], 4
      %s167 = int_to_ptr.vmem [resolvable:$true] %s166
      %169 = dma.vmem_to_hbm [thread:$0]  %s167, 32, %s4, [#allocation3]
    $region21: #{forward.5} parent=1 // pred_fallthru
      _
    // Predicated region
    $region22: #{forward.5} parent=1 // pred_check
      _
    $region23: #{forward.5} parent=1 // pred_check_branch
      %171 = sbr.rel (0) target = $region25
    $region24: #{forward.5} parent=1 // pred_region
      %172 = dma.done [#allocation3], 32
    $region25: #{forward.5} parent=1 // pred_fallthru
      _
    %173 = vsyncpa [#allocation3], 1

// kernel: forward.4
$region0: #{forward.4}
  #allocation0 [shape = 'u32[]', space=smem, size = 0x4, offset = 0x4, fixed_abs, tag = 'smem constant byte address 0x4 - core index']
  #allocation1 [shape = 'u32[144,128]{1,0:T(1,128)}', space=vmem, size = 0x12000, scoped, tag = 'internal scratch']
  %s0 = inlined_call_operand.vmem [shape: f32[16,32], index: 0, kind: input, shape index: {}]
  %s1 = inlined_call_operand.vmem [shape: f32[16,3], index: 1, kind: input, shape index: {}, may-alias: {1,2}]
  %s2 = inlined_call_operand.vmem [shape: f32[16,3], index: 2, kind: input, shape index: {}, may-alias: {1,2}]
  %s3 = inlined_call_operand.vmem [shape: f32[16,16], index: 3, kind: input, shape index: {}]
  %s4 = inlined_call_operand.vmem [shape: f32[288,35], index: 4, kind: input, shape index: {}]
  %s5 = inlined_call_operand.vmem [shape: f32[16,35], index: 5, kind: output, shape index: {}]
  %s6 = sld [smem:[#allocation0]]
  $region53: #{forward.4} parent=0
    _
  %s8 = ssub.s32 1, %s6
  %s9 = scalar_select 0, %s8, %s6
  loop: start=0, step=1, limit=4
  $region2: #{forward.4} parent=0 // loop_pre_header
    _
  $region3: #{forward.4} parent=0 // loop_header
    %s11 = sphi 0, %s15
    %p12 = scmp.ge.s32.totalorder %s11, 4
    %s19 = sphi 0, %s19
    %s21 = sphi 0, %s19
    %s22 = sphi 0, %s21
    %s36 = sphi 0, %s22
    %s40 = sphi 0, %s40
    %s42 = sphi 0, %s40
    %s43 = sphi 0, %s42
    %s57 = sphi 0, %s43
    %s63 = sphi 0, %s65
    %s66 = sphi 0, %s63
    %s67 = sphi 0, %s66
    %s83 = sphi 0, %s67
    %s89 = sphi 0, %s91
    %s92 = sphi 0, %s89
    %s93 = sphi 0, %s92
    %s109 = sphi 0, %s93
    %s113 = sphi 0, %s113
    %s115 = sphi 0, %s113
    %s116 = sphi 0, %s115
    %s130 = sphi 0, %s116
    %s136 = sphi 0, %s138
    %s139 = sphi 0, %s136
    %s140 = sphi 0, %s139
    %s156 = sphi 0, %s140
  $region4: #{forward.4} parent=0 // loop_header_branch
    %14 = sbr.rel (%p12) target = $region8
  $region5: #{forward.4} parent=0 // loop_body
    %s16 = ssub.s32 %s11, 1
    %s17 = ssub.s32 %s11, 2
    %s18 = sadd.s32 %s11, 1
    %s20 = sadd.s32 %s19, 1
    %p23 = scmp.eq.s32.totalorder %s11, 1
    %p24 = scmp.ne.s32.totalorder %s19, %s21
    %p25 = scmp.eq.s32.totalorder %s11, 0
    %p26 = por %p24, %p25
    %p27 = scmp.ne.s32.totalorder %s19, %s21
    %p28 = scmp.eq.s32.totalorder %s16, 1
    %p29 = por %p27, %p28
    %p30 = scmp.ne.s32.totalorder %s21, %s22
    %p31 = scmp.eq.s32.totalorder %s16, 0
    %p32 = por %p30, %p31
    %p33 = scmp.ne.s32.totalorder %s21, %s22
    %p34 = scmp.eq.s32.totalorder %s17, 1
    %p35 = por %p33, %p34
    %p37 = scmp.ne.s32.totalorder %s22, %s36
    %p38 = scmp.eq.s32.totalorder %s17, 0
    %p39 = por %p37, %p38
    %s41 = sadd.s32 %s40, 1
    %p44 = scmp.eq.s32.totalorder %s11, 1
    %p45 = scmp.ne.s32.totalorder %s40, %s42
    %p46 = scmp.eq.s32.totalorder %s11, 0
    %p47 = por %p45, %p46
    %p48 = scmp.ne.s32.totalorder %s40, %s42
    %p49 = scmp.eq.s32.totalorder %s16, 1
    %p50 = por %p48, %p49
    %p51 = scmp.ne.s32.totalorder %s42, %s43
    %p52 = scmp.eq.s32.totalorder %s16, 0
    %p53 = por %p51, %p52
    %p54 = scmp.ne.s32.totalorder %s42, %s43
    %p55 = scmp.eq.s32.totalorder %s17, 1
    %p56 = por %p54, %p55
    %p58 = scmp.ne.s32.totalorder %s43, %s57
    %p59 = scmp.eq.s32.totalorder %s17, 0
    %p60 = por %p58, %p59
    %s61 = ssub.s32 %s11, %s18
    %p62 = scmp.eq.s32.totalorder %s61, 0
    %s64 = sadd.s32 %s63, 1
    %s65 = scalar_select %p62, %s63, %s64
    %p68 = pneg %p62
    %p69 = scmp.eq.s32.totalorder %s11, 1
    %p70 = por %p68, %p69
    %p71 = scmp.ne.s32.totalorder %s63, %s66
    %p72 = scmp.eq.s32.totalorder %s11, 0
    %p73 = por %p71, %p72
    %p74 = scmp.ne.s32.totalorder %s63, %s66
    %p75 = scmp.eq.s32.totalorder %s16, 1
    %p76 = por %p74, %p75
    %p77 = scmp.ne.s32.totalorder %s66, %s67
    %p78 = scmp.eq.s32.totalorder %s16, 0
    %p79 = por %p77, %p78
    %p80 = scmp.ne.s32.totalorder %s66, %s67
    %p81 = scmp.eq.s32.totalorder %s17, 1
    %p82 = por %p80, %p81
    %p84 = scmp.ne.s32.totalorder %s67, %s83
    %p85 = scmp.eq.s32.totalorder %s17, 0
    %p86 = por %p84, %p85
    %s87 = ssub.s32 %s11, %s18
    %p88 = scmp.eq.s32.totalorder %s87, 0
    %s90 = sadd.s32 %s89, 1
    %s91 = scalar_select %p88, %s89, %s90
    %p94 = pneg %p88
    %p95 = scmp.eq.s32.totalorder %s11, 1
    %p96 = por %p94, %p95
    %p97 = scmp.ne.s32.totalorder %s89, %s92
    %p98 = scmp.eq.s32.totalorder %s11, 0
    %p99 = por %p97, %p98
    %p100 = scmp.ne.s32.totalorder %s89, %s92
    %p101 = scmp.eq.s32.totalorder %s16, 1
    %p102 = por %p100, %p101
    %p103 = scmp.ne.s32.totalorder %s92, %s93
    %p104 = scmp.eq.s32.totalorder %s16, 0
    %p105 = por %p103, %p104
    %p106 = scmp.ne.s32.totalorder %s92, %s93
    %p107 = scmp.eq.s32.totalorder %s17, 1
    %p108 = por %p106, %p107
    %p110 = scmp.ne.s32.totalorder %s93, %s109
    %p111 = scmp.eq.s32.totalorder %s17, 0
    %p112 = por %p110, %p111
    %s114 = sadd.s32 %s113, 1
    %p117 = scmp.eq.s32.totalorder %s11, 1
    %p118 = scmp.ne.s32.totalorder %s113, %s115
    %p119 = scmp.eq.s32.totalorder %s11, 0
    %p120 = por %p118, %p119
    %p121 = scmp.ne.s32.totalorder %s113, %s115
    %p122 = scmp.eq.s32.totalorder %s16, 1
    %p123 = por %p121, %p122
    %p124 = scmp.ne.s32.totalorder %s115, %s116
    %p125 = scmp.eq.s32.totalorder %s16, 0
    %p126 = por %p124, %p125
    %p127 = scmp.ne.s32.totalorder %s115, %s116
    %p128 = scmp.eq.s32.totalorder %s17, 1
    %p129 = por %p127, %p128
    %p131 = scmp.ne.s32.totalorder %s116, %s130
    %p132 = scmp.eq.s32.totalorder %s17, 0
    %p133 = por %p131, %p132
    %s134 = ssub.s32 %s11, %s18
    %p135 = scmp.eq.s32.totalorder %s134, 0
    %s137 = sadd.s32 %s136, 1
    %s138 = scalar_select %p135, %s136, %s137
    %p141 = pneg %p135
    %p142 = scmp.eq.s32.totalorder %s11, 1
    %p143 = por %p141, %p142
    %p144 = scmp.ne.s32.totalorder %s136, %s139
    %p145 = scmp.eq.s32.totalorder %s11, 0
    %p146 = por %p144, %p145
    %p147 = scmp.ne.s32.totalorder %s136, %s139
    %p148 = scmp.eq.s32.totalorder %s16, 1
    %p149 = por %p147, %p148
    %p150 = scmp.ne.s32.totalorder %s139, %s140
    %p151 = scmp.eq.s32.totalorder %s16, 0
    %p152 = por %p150, %p151
    %p153 = scmp.ne.s32.totalorder %s139, %s140
    %p154 = scmp.eq.s32.totalorder %s17, 1
    %p155 = por %p153, %p154
    %p157 = scmp.ne.s32.totalorder %s140, %s156
    %p158 = scmp.eq.s32.totalorder %s17, 0
    %p159 = por %p157, %p158
    %p160 = scmp.le.s32.totalorder 1, %s11
    %p161 = scmp.lt.s32.totalorder %s11, 3
    %p162 = pnand %p160, %p161
    %p163 = pneg %p162
    // Predicated region
    $region9: #{forward.4} parent=5 // pred_check
      _
    $region10: #{forward.4} parent=5 // pred_check_branch
      %165 = sbr.rel (%p162) target = $region12
    $region11: #{forward.4} parent=5 // pred_region
      %s166 = ssub.s32 %s11, 1
      // Predicated region
      $region13: #{forward.4} parent=11 // pred_check
        %p167 = pneg %p32
      $region14: #{forward.4} parent=11 // pred_check_branch
        %169 = sbr.rel (%p167) target = $region16
      $region15: #{forward.4} parent=11 // pred_region
        _
      $region16: #{forward.4} parent=11 // pred_fallthru
        _
      // Predicated region
      $region17: #{forward.4} parent=11 // pred_check
        %p170 = pneg %p53
      $region18: #{forward.4} parent=11 // pred_check_branch
        %172 = sbr.rel (%p170) target = $region20
      $region19: #{forward.4} parent=11 // pred_region
        _
      $region20: #{forward.4} parent=11 // pred_fallthru
        _
      // Predicated region
      $region21: #{forward.4} parent=11 // pred_check
        %p173 = pneg %p126
      $region22: #{forward.4} parent=11 // pred_check_branch
        %175 = sbr.rel (%p173) target = $region24
      $region23: #{forward.4} parent=11 // pred_region
        _
      $region24: #{forward.4} parent=11 // pred_fallthru
        _
    $region12: #{forward.4} parent=5 // pred_fallthru
      _
    %p176 = scmp.lt.s32.totalorder %s11, 2
    // Predicated region
    $region25: #{forward.4} parent=5 // pred_check
      %p177 = pneg %p176
    $region26: #{forward.4} parent=5 // pred_check_branch
      %179 = sbr.rel (%p177) target = $region28
    $region27: #{forward.4} parent=5 // pred_region
      // Predicated region
      $region29: #{forward.4} parent=27 // pred_check
        %p180 = pneg %p73
      $region30: #{forward.4} parent=27 // pred_check_branch
        %182 = sbr.rel (%p180) target = $region32
      $region31: #{forward.4} parent=27 // pred_region
        %p183 = scmp.lt.s32.totalorder %s11, 1
        %s184 = scalar_select %p183, %s11, 1
        %s185 = smul.addr %s184, 8
        %s186 = scalar_lea.vmem %s2, %s185
      $region32: #{forward.4} parent=27 // pred_fallthru
        _
      // Predicated region
      $region33: #{forward.4} parent=27 // pred_check
        %p187 = pneg %p99
      $region34: #{forward.4} parent=27 // pred_check_branch
        %189 = sbr.rel (%p187) target = $region36
      $region35: #{forward.4} parent=27 // pred_region
        %p190 = scmp.lt.s32.totalorder %s11, 1
        %s191 = scalar_select %p190, %s11, 1
        %s192 = smul.addr %s191, 8
        %s193 = scalar_lea.vmem %s3, %s192
      $region36: #{forward.4} parent=27 // pred_fallthru
        _
    $region28: #{forward.4} parent=5 // pred_fallthru
      _
    %p194 = scmp.le.s32.totalorder 1, %s11
    %p195 = scmp.lt.s32.totalorder %s11, 3
    %p196 = pnand %p194, %p195
    %p197 = pneg %p196
    // Predicated region
    $region37: #{forward.4} parent=5 // pred_check
      _
    $region38: #{forward.4} parent=5 // pred_check_branch
      %199 = sbr.rel (%p196) target = $region40
    $region39: #{forward.4} parent=5 // pred_region
      %s200 = ssub.s32 %s11, 1
      %p201 = pneg %p32
      %p202 = pneg %p29
      %p203 = pneg %p53
      %p204 = pneg %p50
      %p205 = scmp.lt.s32.totalorder %s16, 1
      %s206 = scalar_select %p205, %s16, 1
      %s207 = smul.addr %s206, 8
      %s208 = scalar_lea.vmem %s2, %s207
      %p209 = pneg %p79
      %p210 = pneg %p76
      %p211 = scmp.lt.s32.totalorder %s16, 1
      %s212 = scalar_select %p211, %s16, 1
      %s213 = smul.addr %s212, 8
      %s214 = scalar_lea.vmem %s3, %s213
      %p215 = pneg %p105
      %p216 = pneg %p102
      %p217 = pneg %p126
      %p218 = pneg %p123
      %p219 = pneg %p152
      %p220 = pneg %p149
      %p221 = scmp.lt.s32.totalorder %s16, 1
      %s222 = scalar_select %p221, %s16, 1
      %s223 = smul.addr %s222, 8
      %s224 = scalar_lea.vmem %s5, %s223
      %p225 = scmp.lt.s32.totalorder %s16, 1
      %s226 = scalar_select %p225, %s16, 1
      %s227 = smul.addr %s226, 8
      %s228 = scalar_lea.vmem %s2, %s227
      %p229 = scmp.lt.s32.totalorder %s16, 1
      %s230 = scalar_select %p229, %s16, 1
      %s231 = smul.addr %s230, 8
      %s232 = scalar_lea.vmem %s3, %s231
      %p233 = scmp.lt.s32.totalorder %s16, 1
      %s234 = scalar_select %p233, %s16, 1
      %s235 = smul.addr %s234, 8
      %s236 = scalar_lea.vmem %s5, %s235
      %v237 = vld [vmem:[%s4] sm:$0xff]
      %v238 = vld [vmem:[%s4 + $0x8] sm:$0xff]
      %v239 = vld [vmem:[%s4 + $0x10] sm:$0xff]
      %v240 = vld [vmem:[%s4 + $0x18] sm:$0xff]
      %v241 = vld [vmem:[%s4 + $0x20] sm:$0x7]
      %v242 = vld [vmem:[%s4 + $0x28] sm:$0x1]
      %v243 = vld [vmem:[%s4 + $0x30] sm:$0xff]
      %v244 = vld [vmem:[%s4 + $0x38] sm:$0xff]
      %v245 = vld [vmem:[%s4 + $0x40] sm:$0xff]
      %v246 = vld [vmem:[%s4 + $0x48] sm:$0xff]
      %v247 = vld [vmem:[%s4 + $0x50] sm:$0x7]
      %v248 = vld [vmem:[%s4 + $0x58] sm:$0x1]
      %v249 = vld [vmem:[%s4 + $0x60] sm:$0xff]
      %v250 = vld [vmem:[%s4 + $0x68] sm:$0xff]
      %v251 = vld [vmem:[%s4 + $0x70] sm:$0xff]
      %v252 = vld [vmem:[%s4 + $0x78] sm:$0xff]
      %v253 = vld [vmem:[%s4 + $0x80] sm:$0x7]
      %v254 = vld [vmem:[%s4 + $0x88] sm:$0x1]
      %v255 = vld [vmem:[%s4 + $0x90] sm:$0xff]
      %v256 = vld [vmem:[%s4 + $0x98] sm:$0xff]
      %v257 = vld [vmem:[%s4 + $0xa0] sm:$0xff]
      %v258 = vld [vmem:[%s4 + $0xa8] sm:$0xff]
      %v259 = vld [vmem:[%s4 + $0xb0] sm:$0x7]
      %v260 = vld [vmem:[%s4 + $0xb8] sm:$0x1]
      %v261 = vld [vmem:[%s4 + $0xc0] sm:$0xff]
      %v262 = vld [vmem:[%s4 + $0xc8] sm:$0xff]
      %v263 = vld [vmem:[%s4 + $0xd0] sm:$0xff]
      %v264 = vld [vmem:[%s4 + $0xd8] sm:$0xff]
      %v265 = vld [vmem:[%s4 + $0xe0] sm:$0x7]
      %v266 = vld [vmem:[%s4 + $0xe8] sm:$0x1]
      %v267 = vld [vmem:[%s4 + $0xf0] sm:$0xff]
      %v268 = vld [vmem:[%s4 + $0xf8] sm:$0xff]
      %v269 = vld [vmem:[%s4 + $0x100] sm:$0xff]
      %v270 = vld [vmem:[%s4 + $0x108] sm:$0xff]
      %v271 = vld [vmem:[%s4 + $0x110] sm:$0x7]
      %v272 = vld [vmem:[%s4 + $0x118] sm:$0x1]
      %v273 = vld [vmem:[%s0] sm:$0xff]
      %v274 = vld [vmem:[%s0 + $0x8] sm:$0xff]
      %v275 = vld [vmem:[%s1] sm:$0xff]
      %v276 = vld [vmem:[%s1 + $0x8] sm:$0xff]
      %v277 = vld [vmem:[%s228] sm:$0xff]
      %vm278 = vcmask 23552
      %v280 = vsel %vm278, %v275, 0
      %v283 = vsel %vm278, %v276, 0
      %vm285 = vcmask 1042432
      %v287 = vsel %vm285, %v241, 0
      %289 = vmatprep.subr.mxu0 0.0
      %290 = vmatpush1.msra.mxu0 %v287
      %291 = vmatprep.subr.mxu0 0.0
      %292 = vmatpush1.msra.mxu0 0.0
      %293 = vmatprep.subr.mxu0 0.0
      %294 = vmatpush1.msra.mxu0 0.0
      %295 = vmatprep.subr.mxu0 0.0
      %296 = vmatpush1.msra.mxu0 0.0
      %297 = vmatprep.subr.mxu0 0.0
      %298 = vmatpush1.msra.mxu0 0.0
      %299 = vmatprep.subr.mxu0 0.0
      %300 = vmatpush1.msra.mxu0 0.0
      %301 = vmatprep.subr.mxu0 0.0
      %302 = vmatpush1.msra.mxu0 0.0
      %303 = vmatprep.subr.mxu0 0.0
      %304 = vmatpush1.msra.mxu0 0.0
      %305 = vmatprep.subr.mxu0 0.0
      %306 = vmatpush1.msra.mxu0 0.0
      %307 = vmatprep.subr.mxu0 0.0
      %308 = vmatpush1.msra.mxu0 0.0
      %309 = vmatprep.subr.mxu0 0.0
      %310 = vmatpush1.msra.mxu0 0.0
      %311 = vmatprep.subr.mxu0 0.0
      %312 = vmatpush1.msra.mxu0 0.0
      %313 = vmatprep.subr.mxu0 0.0
      %314 = vmatpush1.msra.mxu0 0.0
      %315 = vmatprep.subr.mxu0 0.0
      %316 = vmatpush1.msra.mxu0 0.0
      %317 = vmatprep.subr.mxu0 0.0
      %318 = vmatpush1.msra.mxu0 0.0
      %319 = vmatprep.subr.mxu0 0.0
      %320 = vmatpush1.msra.mxu0 0.0
      %321 = vmatprep.subr.mxu0 0.0
      %322 = vmatpush1.msra.mxu0 0.0
      %323 = vmatprep.subr.mxu0 0.0
      %324 = vmatpush1.msra.mxu0 0.0
      %325 = vmatprep.subr.mxu0 0.0
      %326 = vmatpush1.msra.mxu0 0.0
      %327 = vmatprep.subr.mxu0 0.0
      %328 = vmatpush1.msra.mxu0 0.0
      %329 = vmatprep.subr.mxu0 0.0
      %330 = vmatpush1.msra.mxu0 0.0
      %331 = vmatprep.subr.mxu0 0.0
      %332 = vmatpush1.msra.mxu0 0.0
      %333 = vmatprep.subr.mxu0 0.0
      %334 = vmatpush1.msra.mxu0 0.0
      %335 = vmatprep.subr.mxu0 0.0
      %336 = vmatpush1.msra.mxu0 0.0
      %337 = vmatprep.subr.mxu0 0.0
      %338 = vmatpush1.msra.mxu0 0.0
      %339 = vmatprep.subr.mxu0 0.0
      %340 = vmatpush1.msra.mxu0 0.0
      %341 = vmatprep.subr.mxu0 0.0
      %342 = vmatpush1.msra.mxu0 0.0
      %343 = vmatprep.subr.mxu0 0.0
      %344 = vmatpush1.msra.mxu0 0.0
      %345 = vmatprep.subr.mxu0 0.0
      %346 = vmatpush1.msra.mxu0 0.0
      %347 = vmatprep.subr.mxu0 0.0
      %348 = vmatpush1.msra.mxu0 0.0
      %349 = vmatprep.subr.mxu0 0.0
      %350 = vmatpush1.msra.mxu0 0.0
      %351 = vmatprep.subr.mxu0 0.0
      %352 = vmatpush1.msra.mxu0 0.0
      %353 = vmatprep.mubr.f32.mxu0 0.0
      %354 = vmatmul.mubr.f32.gmra.mrb[0].mxu0 %v280
      %v355 = vpop.f32.mrb[0].mxu0
      %v356 = vadd.f32 0.0, %v355
      %v357 = vpop.f32.mrb[0].mxu0
      %358 = vmatprep.mubr.f32.mxu0 0.0
      %359 = vmatmul.mubr.f32.gmra.mrb[0].mxu0 %v283
      %v360 = vpop.f32.mrb[0].mxu0
      %v361 = vadd.f32 0.0, %v360
      %v362 = vpop.f32.mrb[0].mxu0
      %363 = vdwg.mxu0
      %vm364 = vcmask 261120
      %v366 = vsel %vm364, %v273, 0
      %v369 = vsel %vm364, %v274, 0
      %371 = vmatprep.subr.mxu0 0.0
      %372 = vmatpush1.msra.mxu0 %v237
      %373 = vmatprep.subr.mxu0 0.0
      %374 = vmatpush1.msra.mxu0 %v238
      %375 = vmatprep.subr.mxu0 0.0
      %376 = vmatpush1.msra.mxu0 %v239
      %377 = vmatprep.subr.mxu0 0.0
      %378 = vmatpush1.msra.mxu0 %v240
      %379 = vmatprep.subr.mxu0 0.0
      %380 = vmatpush1.msra.mxu0 0.0
      %381 = vmatprep.subr.mxu0 0.0
      %382 = vmatpush1.msra.mxu0 0.0
      %383 = vmatprep.subr.mxu0 0.0
      %384 = vmatpush1.msra.mxu0 0.0
      %385 = vmatprep.subr.mxu0 0.0
      %386 = vmatpush1.msra.mxu0 0.0
      %387 = vmatprep.subr.mxu0 0.0
      %388 = vmatpush1.msra.mxu0 0.0
      %389 = vmatprep.subr.mxu0 0.0
      %390 = vmatpush1.msra.mxu0 0.0
      %391 = vmatprep.subr.mxu0 0.0
      %392 = vmatpush1.msra.mxu0 0.0
      %393 = vmatprep.subr.mxu0 0.0
      %394 = vmatpush1.msra.mxu0 0.0
      %395 = vmatprep.subr.mxu0 0.0
      %396 = vmatpush1.msra.mxu0 0.0
      %397 = vmatprep.subr.mxu0 0.0
      %398 = vmatpush1.msra.mxu0 0.0
      %399 = vmatprep.subr.mxu0 0.0
      %400 = vmatpush1.msra.mxu0 0.0
      %401 = vmatprep.subr.mxu0 0.0
      %402 = vmatpush1.msra.mxu0 0.0
      %403 = vmatprep.subr.mxu0 0.0
      %404 = vmatpush1.msra.mxu0 0.0
      %405 = vmatprep.subr.mxu0 0.0
      %406 = vmatpush1.msra.mxu0 0.0
      %407 = vmatprep.subr.mxu0 0.0
      %408 = vmatpush1.msra.mxu0 0.0
      %409 = vmatprep.subr.mxu0 0.0
      %410 = vmatpush1.msra.mxu0 0.0
      %411 = vmatprep.subr.mxu0 0.0
      %412 = vmatpush1.msra.mxu0 0.0
      %413 = vmatprep.subr.mxu0 0.0
      %414 = vmatpush1.msra.mxu0 0.0
      %415 = vmatprep.subr.mxu0 0.0
      %416 = vmatpush1.msra.mxu0 0.0
      %417 = vmatprep.subr.mxu0 0.0
      %418 = vmatpush1.msra.mxu0 0.0
      %419 = vmatprep.subr.mxu0 0.0
      %420 = vmatpush1.msra.mxu0 0.0
      %421 = vmatprep.subr.mxu0 0.0
      %422 = vmatpush1.msra.mxu0 0.0
      %423 = vmatprep.subr.mxu0 0.0
      %424 = vmatpush1.msra.mxu0 0.0
      %425 = vmatprep.subr.mxu0 0.0
      %426 = vmatpush1.msra.mxu0 0.0
      %427 = vmatprep.subr.mxu0 0.0
      %428 = vmatpush1.msra.mxu0 0.0
      %429 = vmatprep.subr.mxu0 0.0
      %430 = vmatpush1.msra.mxu0 0.0
      %431 = vmatprep.subr.mxu0 0.0
      %432 = vmatpush1.msra.mxu0 0.0
      %433 = vmatprep.subr.mxu0 0.0
      %434 = vmatpush1.msra.mxu0 0.0
      %435 = vmatprep.mubr.f32.mxu0 0.0
      %436 = vmatmul.mubr.f32.gmra.mrb[0].mxu0 %v366
      %v437 = vpop.f32.mrb[0].mxu0
      %v438 = vadd.f32 %v356, %v437
      %v439 = vpop.f32.mrb[0].mxu0
      %440 = vmatprep.mubr.f32.mxu0 0.0
      %441 = vmatmul.mubr.f32.gmra.mrb[0].mxu0 %v369
      %v442 = vpop.f32.mrb[0].mxu0
      %v443 = vadd.f32 %v361, %v442
      %v444 = vpop.f32.mrb[0].mxu0
      %445 = vdwg.mxu0
      %v446 = vlaneseq
      %v447 = vshrl.u32 %v446, 7
      %v448 = vsub.s32 0, %v447
      %v449 = vrot.slane %v242, %v448
      %v450 = vadd.f32 %v438, %v449
      %v451 = vadd.f32 %v443, %v449
      %v453 = vsel %vm278, %v277, 0
      %455 = vmatprep.subr.mxu0 0.0
      %456 = vmatpush1.msra.mxu0 %v287
      %457 = vmatprep.subr.mxu0 0.0
      %458 = vmatpush1.msra.mxu0 0.0
      %459 = vmatprep.subr.mxu0 0.0
      %460 = vmatpush1.msra.mxu0 0.0
      %461 = vmatprep.subr.mxu0 0.0
      %462 = vmatpush1.msra.mxu0 0.0
      %463 = vmatprep.subr.mxu0 0.0
      %464 = vmatpush1.msra.mxu0 0.0
      %465 = vmatprep.subr.mxu0 0.0
      %466 = vmatpush1.msra.mxu0 0.0
      %467 = vmatprep.subr.mxu0 0.0
      %468 = vmatpush1.msra.mxu0 0.0
      %469 = vmatprep.subr.mxu0 0.0
      %470 = vmatpush1.msra.mxu0 0.0
      %471 = vmatprep.subr.mxu0 0.0
      %472 = vmatpush1.msra.mxu0 0.0
      %473 = vmatprep.subr.mxu0 0.0
      %474 = vmatpush1.msra.mxu0 0.0
      %475 = vmatprep.subr.mxu0 0.0
      %476 = vmatpush1.msra.mxu0 0.0
      %477 = vmatprep.subr.mxu0 0.0
      %478 = vmatpush1.msra.mxu0 0.0
      %479 = vmatprep.subr.mxu0 0.0
      %480 = vmatpush1.msra.mxu0 0.0
      %481 = vmatprep.subr.mxu0 0.0
      %482 = vmatpush1.msra.mxu0 0.0
      %483 = vmatprep.subr.mxu0 0.0
      %484 = vmatpush1.msra.mxu0 0.0
      %485 = vmatprep.subr.mxu0 0.0
      %486 = vmatpush1.msra.mxu0 0.0
      %487 = vmatprep.subr.mxu0 0.0
      %488 = vmatpush1.msra.mxu0 0.0
      %489 = vmatprep.subr.mxu0 0.0
      %490 = vmatpush1.msra.mxu0 0.0
      %491 = vmatprep.subr.mxu0 0.0
      %492 = vmatpush1.msra.mxu0 0.0
      %493 = vmatprep.subr.mxu0 0.0
      %494 = vmatpush1.msra.mxu0 0.0
      %495 = vmatprep.subr.mxu0 0.0
      %496 = vmatpush1.msra.mxu0 0.0
      %497 = vmatprep.subr.mxu0 0.0
      %498 = vmatpush1.msra.mxu0 0.0
      %499 = vmatprep.subr.mxu0 0.0
      %500 = vmatpush1.msra.mxu0 0.0
      %501 = vmatprep.subr.mxu0 0.0
      %502 = vmatpush1.msra.mxu0 0.0
      %503 = vmatprep.subr.mxu0 0.0
      %504 = vmatpush1.msra.mxu0 0.0
      %505 = vmatprep.subr.mxu0 0.0
      %506 = vmatpush1.msra.mxu0 0.0
      %507 = vmatprep.subr.mxu0 0.0
      %508 = vmatpush1.msra.mxu0 0.0
      %509 = vmatprep.subr.mxu0 0.0
      %510 = vmatpush1.msra.mxu0 0.0
      %511 = vmatprep.subr.mxu0 0.0
      %512 = vmatpush1.msra.mxu0 0.0
      %513 = vmatprep.subr.mxu0 0.0
      %514 = vmatpush1.msra.mxu0 0.0
      %515 = vmatprep.subr.mxu0 0.0
      %516 = vmatpush1.msra.mxu0 0.0
      %517 = vmatprep.subr.mxu0 0.0
      %518 = vmatpush1.msra.mxu0 0.0
      %519 = vmatprep.mubr.f32.mxu0 0.0
      %520 = vmatmul.mubr.f32.gmra.mrb[0].mxu0 %v453
      %v521 = vpop.f32.mrb[0].mxu0
      %v522 = vadd.f32 0.0, %v521
      %v523 = vpop.f32.mrb[0].mxu0
      %524 = vdwg.mxu0
      %v526 = vcombine.high %v522, %v522
      %v528 = vunpack.c.l.s4 1966171168
      %v529 = vunpack.c.0.s8 %v528
      %v530 = vlaneseq
      %v531 = vshrl.u32 %v530, 7
      %v532 = vsub.s32 %v529, %v531
      %v533 = vrot.slane %v522, %v532
      %v535 = vunpack.c.l.s4 1966171168
      %v536 = vunpack.c.0.s8 %v535
      %v537 = vlaneseq
      %v538 = vshrl.u32 %v537, 7
      %v539 = vsub.s32 %v536, %v538
      %v540 = vrot.slane %v526, %v539
      %v541 = vcombine.high %v533, %v533
      %v542 = vcombine.high %v540, %v540
      %v544 = vunpack.c.l.s4 1966171168
      %v545 = vunpack.c.0.s8 %v544
      %v546 = vlaneseq
      %v547 = vshrl.u32 %v546, 7
      %v548 = vsub.s32 %v545, %v547
      %v549 = vrot.slane %v533, %v548
      %v551 = vunpack.c.l.s4 1966171168
      %v552 = vunpack.c.0.s8 %v551
      %v553 = vlaneseq
      %v554 = vshrl.u32 %v553, 7
      %v555 = vsub.s32 %v552, %v554
      %v556 = vrot.slane %v540, %v555
      %v558 = vunpack.c.l.s4 1966171168
      %v559 = vunpack.c.0.s8 %v558
      %v560 = vlaneseq
      %v561 = vshrl.u32 %v560, 7
      %v562 = vsub.s32 %v559, %v561
      %v563 = vrot.slane %v541, %v562
      %v565 = vunpack.c.l.s4 1966171168
      %v566 = vunpack.c.0.s8 %v565
      %v567 = vlaneseq
      %v568 = vshrl.u32 %v567, 7
      %v569 = vsub.s32 %v566, %v568
      %v570 = vrot.slane %v542, %v569
      %v571 = vcombine.high %v549, %v549
      %v572 = vcombine.high %v556, %v556
      %v573 = vcombine.high %v563, %v563
      %v574 = vcombine.high %v570, %v570
      %v575 = vlaneseq
      %v576 = vshrl.u32 %v575, 7
      %v577 = vsub.s32 0, %v576
      %v578 = vrot.slane %v549, %v577
      %v579 = vlaneseq
      %v580 = vshrl.u32 %v579, 7
      %v581 = vsub.s32 0, %v580
      %v582 = vrot.slane %v563, %v581
      %v583 = vlaneseq
      %v584 = vshrl.u32 %v583, 7
      %v585 = vsub.s32 0, %v584
      %v586 = vrot.slane %v571, %v585
      %v587 = vlaneseq
      %v588 = vshrl.u32 %v587, 7
      %v589 = vsub.s32 0, %v588
      %v590 = vrot.slane %v573, %v589
      %v591 = vlaneseq
      %v592 = vshrl.u32 %v591, 7
      %v593 = vsub.s32 0, %v592
      %v594 = vrot.slane %v556, %v593
      %v595 = vlaneseq
      %v596 = vshrl.u32 %v595, 7
      %v597 = vsub.s32 0, %v596
      %v598 = vrot.slane %v570, %v597
      %v599 = vlaneseq
      %v600 = vshrl.u32 %v599, 7
      %v601 = vsub.s32 0, %v600
      %v602 = vrot.slane %v572, %v601
      %v603 = vlaneseq
      %v604 = vshrl.u32 %v603, 7
      %v605 = vsub.s32 0, %v604
      %v606 = vrot.slane %v574, %v605
      %v615 = vsub.f32 %v450, %v578
      %v616 = vsub.f32 %v451, %v578
      %v617 = vsub.f32 %v450, %v582
      %v618 = vsub.f32 %v451, %v582
      %v619 = vsub.f32 %v450, %v586
      %v620 = vsub.f32 %v451, %v586
      %v621 = vsub.f32 %v450, %v590
      %v622 = vsub.f32 %v451, %v590
      %v623 = vsub.f32 %v450, %v594
      %v624 = vsub.f32 %v451, %v594
      %v625 = vsub.f32 %v450, %v598
      %v626 = vsub.f32 %v451, %v598
      %v627 = vsub.f32 %v450, %v602
      %v628 = vsub.f32 %v451, %v602
      %v629 = vsub.f32 %v450, %v606
      %v630 = vsub.f32 %v451, %v606
      %vm631 = vcmp.gt.f32.partialorder %v615, 0.0
      %vm632 = vcmp.gt.f32.partialorder %v616, 0.0
      %vm633 = vcmp.gt.f32.partialorder %v617, 0.0
      %vm634 = vcmp.gt.f32.partialorder %v618, 0.0
      %vm635 = vcmp.gt.f32.partialorder %v619, 0.0
      %vm636 = vcmp.gt.f32.partialorder %v620, 0.0
      %vm637 = vcmp.gt.f32.partialorder %v621, 0.0
      %vm638 = vcmp.gt.f32.partialorder %v622, 0.0
      %vm639 = vcmp.gt.f32.partialorder %v623, 0.0
      %vm640 = vcmp.gt.f32.partialorder %v624, 0.0
      %vm641 = vcmp.gt.f32.partialorder %v625, 0.0
      %vm642 = vcmp.gt.f32.partialorder %v626, 0.0
      %vm643 = vcmp.gt.f32.partialorder %v627, 0.0
      %vm644 = vcmp.gt.f32.partialorder %v628, 0.0
      %vm645 = vcmp.gt.f32.partialorder %v629, 0.0
      %vm646 = vcmp.gt.f32.partialorder %v630, 0.0
      %v647 = vmin.f32 %v615, 0.0
      %v648 = vmin.f32 %v616, 0.0
      %v649 = vmin.f32 %v617, 0.0
      %v650 = vmin.f32 %v618, 0.0
      %v651 = vmin.f32 %v619, 0.0
      %v652 = vmin.f32 %v620, 0.0
      %v653 = vmin.f32 %v621, 0.0
      %v654 = vmin.f32 %v622, 0.0
      %v655 = vmin.f32 %v623, 0.0
      %v656 = vmin.f32 %v624, 0.0
      %v657 = vmin.f32 %v625, 0.0
      %v658 = vmin.f32 %v626, 0.0
      %v659 = vmin.f32 %v627, 0.0
      %v660 = vmin.f32 %v628, 0.0
      %v661 = vmin.f32 %v629, 0.0
      %v662 = vmin.f32 %v630, 0.0
      %v663 = vmul.f32 %v647, 1.442695
      %v664 = vpow.pop %v663
      %v665 = vmul.f32 %v648, 1.442695
      %v666 = vpow.pop %v665
      %v667 = vmul.f32 %v649, 1.442695
      %v668 = vpow.pop %v667
      %v669 = vmul.f32 %v650, 1.442695
      %v670 = vpow.pop %v669
      %v671 = vmul.f32 %v651, 1.442695
      %v672 = vpow.pop %v671
      %v673 = vmul.f32 %v652, 1.442695
      %v674 = vpow.pop %v673
      %v675 = vmul.f32 %v653, 1.442695
      %v676 = vpow.pop %v675
      %v677 = vmul.f32 %v654, 1.442695
      %v678 = vpow.pop %v677
      %v679 = vmul.f32 %v655, 1.442695
      %v680 = vpow.pop %v679
      %v681 = vmul.f32 %v656, 1.442695
      %v682 = vpow.pop %v681
      %v683 = vmul.f32 %v657, 1.442695
      %v684 = vpow.pop %v683
      %v685 = vmul.f32 %v658, 1.442695
      %v686 = vpow.pop %v685
      %v687 = vmul.f32 %v659, 1.442695
      %v688 = vpow.pop %v687
      %v689 = vmul.f32 %v660, 1.442695
      %v690 = vpow.pop %v689
      %v691 = vmul.f32 %v661, 1.442695
      %v692 = vpow.pop %v691
      %v693 = vmul.f32 %v662, 1.442695
      %v694 = vpow.pop %v693
      %v695 = vsub.f32 %v664, 1.0
      %v696 = vsub.f32 %v666, 1.0
      %v697 = vsub.f32 %v668, 1.0
      %v698 = vsub.f32 %v670, 1.0
      %v699 = vsub.f32 %v672, 1.0
      %v700 = vsub.f32 %v674, 1.0
      %v701 = vsub.f32 %v676, 1.0
      %v702 = vsub.f32 %v678, 1.0
      %v703 = vsub.f32 %v680, 1.0
      %v704 = vsub.f32 %v682, 1.0
      %v705 = vsub.f32 %v684, 1.0
      %v706 = vsub.f32 %v686, 1.0
      %v707 = vsub.f32 %v688, 1.0
      %v708 = vsub.f32 %v690, 1.0
      %v709 = vsub.f32 %v692, 1.0
      %v710 = vsub.f32 %v694, 1.0
      %v711 = vsel %vm631, %v615, %v695
      %v712 = vsel %vm632, %v616, %v696
      %v713 = vsel %vm633, %v617, %v697
      %v714 = vsel %vm634, %v618, %v698
      %v715 = vsel %vm635, %v619, %v699
      %v716 = vsel %vm636, %v620, %v700
      %v717 = vsel %vm637, %v621, %v701
      %v718 = vsel %vm638, %v622, %v702
      %v719 = vsel %vm639, %v623, %v703
      %v720 = vsel %vm640, %v624, %v704
      %v721 = vsel %vm641, %v625, %v705
      %v722 = vsel %vm642, %v626, %v706
      %v723 = vsel %vm643, %v627, %v707
      %v724 = vsel %vm644, %v628, %v708
      %v725 = vsel %vm645, %v629, %v709
      %v726 = vsel %vm646, %v630, %v710
      %v727 = vlaneseq
      %v728 = vshrl.u32 %v727, 7
      %v729 = vsub.s32 0, %v728
      %v730 = vrot.slane %v248, %v729
      %vm731 = vcmask 285696
      %v733 = vsel %vm731, %v711, 0
      %v736 = vsel %vm731, %v712, 0
      %v739 = vsel %vm731, %v713, 0
      %v742 = vsel %vm731, %v714, 0
      %v745 = vsel %vm731, %v715, 0
      %v748 = vsel %vm731, %v716, 0
      %v751 = vsel %vm731, %v717, 0
      %v754 = vsel %vm731, %v718, 0
      %v757 = vsel %vm731, %v719, 0
      %v760 = vsel %vm731, %v720, 0
      %v763 = vsel %vm731, %v721, 0
      %v766 = vsel %vm731, %v722, 0
      %v769 = vsel %vm731, %v723, 0
      %v772 = vsel %vm731, %v724, 0
      %v775 = vsel %vm731, %v725, 0
      %v778 = vsel %vm731, %v726, 0
      %v781 = vsel %vm285, %v247, 0
      %783 = vmatprep.subr.mxu0 0.0
      %784 = vmatpush1.msra.mxu0 %v243
      %785 = vmatprep.subr.mxu0 0.0
      %786 = vmatpush1.msra.mxu0 %v244
      %787 = vmatprep.subr.mxu0 0.0
      %788 = vmatpush1.msra.mxu0 %v245
      %789 = vmatprep.subr.mxu0 0.0
      %790 = vmatpush1.msra.mxu0 %v246
      %791 = vmatprep.subr.mxu0 0.0
      %792 = vmatpush1.msra.mxu0 %v781
      %793 = vmatprep.subr.mxu0 0.0
      %794 = vmatpush1.msra.mxu0 0.0
      %795 = vmatprep.subr.mxu0 0.0
      %796 = vmatpush1.msra.mxu0 0.0
      %797 = vmatprep.subr.mxu0 0.0
      %798 = vmatpush1.msra.mxu0 0.0
      %799 = vmatprep.subr.mxu0 0.0
      %800 = vmatpush1.msra.mxu0 0.0
      %801 = vmatprep.subr.mxu0 0.0
      %802 = vmatpush1.msra.mxu0 0.0
      %803 = vmatprep.subr.mxu0 0.0
      %804 = vmatpush1.msra.mxu0 0.0
      %805 = vmatprep.subr.mxu0 0.0
      %806 = vmatpush1.msra.mxu0 0.0
      %807 = vmatprep.subr.mxu0 0.0
      %808 = vmatpush1.msra.mxu0 0.0
      %809 = vmatprep.subr.mxu0 0.0
      %810 = vmatpush1.msra.mxu0 0.0
      %811 = vmatprep.subr.mxu0 0.0
      %812 = vmatpush1.msra.mxu0 0.0
      %813 = vmatprep.subr.mxu0 0.0
      %814 = vmatpush1.msra.mxu0 0.0
      %815 = vmatprep.subr.mxu0 0.0
      %816 = vmatpush1.msra.mxu0 0.0
      %817 = vmatprep.subr.mxu0 0.0
      %818 = vmatpush1.msra.mxu0 0.0
      %819 = vmatprep.subr.mxu0 0.0
      %820 = vmatpush1.msra.mxu0 0.0
      %821 = vmatprep.subr.mxu0 0.0
      %822 = vmatpush1.msra.mxu0 0.0
      %823 = vmatprep.subr.mxu0 0.0
      %824 = vmatpush1.msra.mxu0 0.0
      %825 = vmatprep.subr.mxu0 0.0
      %826 = vmatpush1.msra.mxu0 0.0
      %827 = vmatprep.subr.mxu0 0.0
      %828 = vmatpush1.msra.mxu0 0.0
      %829 = vmatprep.subr.mxu0 0.0
      %830 = vmatpush1.msra.mxu0 0.0
      %831 = vmatprep.subr.mxu0 0.0
      %832 = vmatpush1.msra.mxu0 0.0
      %833 = vmatprep.subr.mxu0 0.0
      %834 = vmatpush1.msra.mxu0 0.0
      %835 = vmatprep.subr.mxu0 0.0
      %836 = vmatpush1.msra.mxu0 0.0
      %837 = vmatprep.subr.mxu0 0.0
      %838 = vmatpush1.msra.mxu0 0.0
      %839 = vmatprep.subr.mxu0 0.0
      %840 = vmatpush1.msra.mxu0 0.0
      %841 = vmatprep.subr.mxu0 0.0
      %842 = vmatpush1.msra.mxu0 0.0
      %843 = vmatprep.subr.mxu0 0.0
      %844 = vmatpush1.msra.mxu0 0.0
      %845 = vmatprep.subr.mxu0 0.0
      %846 = vmatpush1.msra.mxu0 0.0
      %847 = vmatprep.mubr.f32.mxu0 0.0
      %848 = vmatmul.mubr.f32.gmra.mrb[0].mxu0 %v733
      %v849 = vpop.f32.mrb[0].mxu0
      %v850 = vadd.f32 %v730, %v849
      %v851 = vpop.f32.mrb[0].mxu0
      %852 = vmatprep.mubr.f32.mxu0 0.0
      %853 = vmatmul.mubr.f32.gmra.mrb[0].mxu0 %v736
      %v854 = vpop.f32.mrb[0].mxu0
      %v855 = vadd.f32 %v730, %v854
      %v856 = vpop.f32.mrb[0].mxu0
      %857 = vmatprep.mubr.f32.mxu0 0.0
      %858 = vmatmul.mubr.f32.gmra.mrb[0].mxu0 %v739
      %v859 = vpop.f32.mrb[0].mxu0
      %v860 = vadd.f32 %v730, %v859
      %v861 = vpop.f32.mrb[0].mxu0
      %862 = vmatprep.mubr.f32.mxu0 0.0
      %863 = vmatmul.mubr.f32.gmra.mrb[0].mxu0 %v742
      %v864 = vpop.f32.mrb[0].mxu0
      %v865 = vadd.f32 %v730, %v864
      %v866 = vpop.f32.mrb[0].mxu0
      %867 = vmatprep.mubr.f32.mxu0 0.0
      %868 = vmatmul.mubr.f32.gmra.mrb[0].mxu0 %v745
      %v869 = vpop.f32.mrb[0].mxu0
      %v870 = vadd.f32 %v730, %v869
      %v871 = vpop.f32.mrb[0].mxu0
      %872 = vmatprep.mubr.f32.mxu0 0.0
      %873 = vmatmul.mubr.f32.gmra.mrb[0].mxu0 %v748
      %v874 = vpop.f32.mrb[0].mxu0
      %v875 = vadd.f32 %v730, %v874
      %v876 = vpop.f32.mrb[0].mxu0
      %877 = vmatprep.mubr.f32.mxu0 0.0
      %878 = vmatmul.mubr.f32.gmra.mrb[0].mxu0 %v751
      %v879 = vpop.f32.mrb[0].mxu0
      %v880 = vadd.f32 %v730, %v879
      %v881 = vpop.f32.mrb[0].mxu0
      %882 = vmatprep.mubr.f32.mxu0 0.0
      %883 = vmatmul.mubr.f32.gmra.mrb[0].mxu0 %v754
      %v884 = vpop.f32.mrb[0].mxu0
      %v885 = vadd.f32 %v730, %v884
      %v886 = vpop.f32.mrb[0].mxu0
      %887 = vmatprep.mubr.f32.mxu0 0.0
      %888 = vmatmul.mubr.f32.gmra.mrb[0].mxu0 %v757
      %v889 = vpop.f32.mrb[0].mxu0
      %v890 = vadd.f32 %v730, %v889
      %v891 = vpop.f32.mrb[0].mxu0
      %892 = vmatprep.mubr.f32.mxu0 0.0
      %893 = vmatmul.mubr.f32.gmra.mrb[0].mxu0 %v760
      %v894 = vpop.f32.mrb[0].mxu0
      %v895 = vadd.f32 %v730, %v894
      %v896 = vpop.f32.mrb[0].mxu0
      %897 = vmatprep.mubr.f32.mxu0 0.0
      %898 = vmatmul.mubr.f32.gmra.mrb[0].mxu0 %v763
      %v899 = vpop.f32.mrb[0].mxu0
      %v900 = vadd.f32 %v730, %v899
      %v901 = vpop.f32.mrb[0].mxu0
      %902 = vmatprep.mubr.f32.mxu0 0.0
      %903 = vmatmul.mubr.f32.gmra.mrb[0].mxu0 %v766
      %v904 = vpop.f32.mrb[0].mxu0
      %v905 = vadd.f32 %v730, %v904
      %v906 = vpop.f32.mrb[0].mxu0
      %907 = vmatprep.mubr.f32.mxu0 0.0
      %908 = vmatmul.mubr.f32.gmra.mrb[0].mxu0 %v769
      %v909 = vpop.f32.mrb[0].mxu0
      %v910 = vadd.f32 %v730, %v909
      %v911 = vpop.f32.mrb[0].mxu0
      %912 = vmatprep.mubr.f32.mxu0 0.0
      %913 = vmatmul.mubr.f32.gmra.mrb[0].mxu0 %v772
      %v914 = vpop.f32.mrb[0].mxu0
      %v915 = vadd.f32 %v730, %v914
      %v916 = vpop.f32.mrb[0].mxu0
      %917 = vmatprep.mubr.f32.mxu0 0.0
      %918 = vmatmul.mubr.f32.gmra.mrb[0].mxu0 %v775
      %v919 = vpop.f32.mrb[0].mxu0
      %v920 = vadd.f32 %v730, %v919
      %v921 = vpop.f32.mrb[0].mxu0
      %922 = vmatprep.mubr.f32.mxu0 0.0
      %923 = vmatmul.mubr.f32.gmra.mrb[0].mxu0 %v778
      %v924 = vpop.f32.mrb[0].mxu0
      %v925 = vadd.f32 %v730, %v924
      %v926 = vpop.f32.mrb[0].mxu0
      %927 = vdwg.mxu0
      %vm928 = vcmp.gt.f32.partialorder %v850, 0.0
      %vm929 = vcmp.gt.f32.partialorder %v855, 0.0
      %vm930 = vcmp.gt.f32.partialorder %v860, 0.0
      %vm931 = vcmp.gt.f32.partialorder %v865, 0.0
      %vm932 = vcmp.gt.f32.partialorder %v870, 0.0
      %vm933 = vcmp.gt.f32.partialorder %v875, 0.0
      %vm934 = vcmp.gt.f32.partialorder %v880, 0.0
      %vm935 = vcmp.gt.f32.partialorder %v885, 0.0
      %vm936 = vcmp.gt.f32.partialorder %v890, 0.0
      %vm937 = vcmp.gt.f32.partialorder %v895, 0.0
      %vm938 = vcmp.gt.f32.partialorder %v900, 0.0
      %vm939 = vcmp.gt.f32.partialorder %v905, 0.0
      %vm940 = vcmp.gt.f32.partialorder %v910, 0.0
      %vm941 = vcmp.gt.f32.partialorder %v915, 0.0
      %vm942 = vcmp.gt.f32.partialorder %v920, 0.0
      %vm943 = vcmp.gt.f32.partialorder %v925, 0.0
      %v944 = vmin.f32 %v850, 0.0
      %v945 = vmin.f32 %v855, 0.0
      %v946 = vmin.f32 %v860, 0.0
      %v947 = vmin.f32 %v865, 0.0
      %v948 = vmin.f32 %v870, 0.0
      %v949 = vmin.f32 %v875, 0.0
      %v950 = vmin.f32 %v880, 0.0
      %v951 = vmin.f32 %v885, 0.0
      %v952 = vmin.f32 %v890, 0.0
      %v953 = vmin.f32 %v895, 0.0
      %v954 = vmin.f32 %v900, 0.0
      %v955 = vmin.f32 %v905, 0.0
      %v956 = vmin.f32 %v910, 0.0
      %v957 = vmin.f32 %v915, 0.0
      %v958 = vmin.f32 %v920, 0.0
      %v959 = vmin.f32 %v925, 0.0
      %v960 = vmul.f32 %v944, 1.442695
      %v961 = vpow.pop %v960
      %v962 = vmul.f32 %v945, 1.442695
      %v963 = vpow.pop %v962
      %v964 = vmul.f32 %v946, 1.442695
      %v965 = vpow.pop %v964
      %v966 = vmul.f32 %v947, 1.442695
      %v967 = vpow.pop %v966
      %v968 = vmul.f32 %v948, 1.442695
      %v969 = vpow.pop %v968
      %v970 = vmul.f32 %v949, 1.442695
      %v971 = vpow.pop %v970
      %v972 = vmul.f32 %v950, 1.442695
      %v973 = vpow.pop %v972
      %v974 = vmul.f32 %v951, 1.442695
      %v975 = vpow.pop %v974
      %v976 = vmul.f32 %v952, 1.442695
      %v977 = vpow.pop %v976
      %v978 = vmul.f32 %v953, 1.442695
      %v979 = vpow.pop %v978
      %v980 = vmul.f32 %v954, 1.442695
      %v981 = vpow.pop %v980
      %v982 = vmul.f32 %v955, 1.442695
      %v983 = vpow.pop %v982
      %v984 = vmul.f32 %v956, 1.442695
      %v985 = vpow.pop %v984
      %v986 = vmul.f32 %v957, 1.442695
      %v987 = vpow.pop %v986
      %v988 = vmul.f32 %v958, 1.442695
      %v989 = vpow.pop %v988
      %v990 = vmul.f32 %v959, 1.442695
      %v991 = vpow.pop %v990
      %v992 = vsub.f32 %v961, 1.0
      %v993 = vsub.f32 %v963, 1.0
      %v994 = vsub.f32 %v965, 1.0
      %v995 = vsub.f32 %v967, 1.0
      %v996 = vsub.f32 %v969, 1.0
      %v997 = vsub.f32 %v971, 1.0
      %v998 = vsub.f32 %v973, 1.0
      %v999 = vsub.f32 %v975, 1.0
      %v1000 = vsub.f32 %v977, 1.0
      %v1001 = vsub.f32 %v979, 1.0
      %v1002 = vsub.f32 %v981, 1.0
      %v1003 = vsub.f32 %v983, 1.0
      %v1004 = vsub.f32 %v985, 1.0
      %v1005 = vsub.f32 %v987, 1.0
      %v1006 = vsub.f32 %v989, 1.0
      %v1007 = vsub.f32 %v991, 1.0
      %v1008 = vsel %vm928, %v850, %v992
      %v1009 = vsel %vm929, %v855, %v993
      %v1010 = vsel %vm930, %v860, %v994
      %v1011 = vsel %vm931, %v865, %v995
      %v1012 = vsel %vm932, %v870, %v996
      %v1013 = vsel %vm933, %v875, %v997
      %v1014 = vsel %vm934, %v880, %v998
      %v1015 = vsel %vm935, %v885, %v999
      %v1016 = vsel %vm936, %v890, %v1000
      %v1017 = vsel %vm937, %v895, %v1001
      %v1018 = vsel %vm938, %v900, %v1002
      %v1019 = vsel %vm939, %v905, %v1003
      %v1020 = vsel %vm940, %v910, %v1004
      %v1021 = vsel %vm941, %v915, %v1005
      %v1022 = vsel %vm942, %v920, %v1006
      %v1023 = vsel %vm943, %v925, %v1007
      %v1024 = vlaneseq
      %v1025 = vshrl.u32 %v1024, 7
      %v1026 = vsub.s32 0, %v1025
      %v1027 = vrot.slane %v254, %v1026
      %v1029 = vsel %vm731, %v1008, 0
      %v1032 = vsel %vm731, %v1009, 0
      %v1035 = vsel %vm731, %v1010, 0
      %v1038 = vsel %vm731, %v1011, 0
      %v1041 = vsel %vm731, %v1012, 0
      %v1044 = vsel %vm731, %v1013, 0
      %v1047 = vsel %vm731, %v1014, 0
      %v1050 = vsel %vm731, %v1015, 0
      %v1053 = vsel %vm731, %v1016, 0
      %v1056 = vsel %vm731, %v1017, 0
      %v1059 = vsel %vm731, %v1018, 0
      %v1062 = vsel %vm731, %v1019, 0
      %v1065 = vsel %vm731, %v1020, 0
      %v1068 = vsel %vm731, %v1021, 0
      %v1071 = vsel %vm731, %v1022, 0
      %v1074 = vsel %vm731, %v1023, 0
      %v1077 = vsel %vm285, %v253, 0
      %1079 = vmatprep.subr.mxu0 0.0
      %1080 = vmatpush1.msra.mxu0 %v249
      %1081 = vmatprep.subr.mxu0 0.0
      %1082 = vmatpush1.msra.mxu0 %v250
      %1083 = vmatprep.subr.mxu0 0.0
      %1084 = vmatpush1.msra.mxu0 %v251
      %1085 = vmatprep.subr.mxu0 0.0
      %1086 = vmatpush1.msra.mxu0 %v252
      %1087 = vmatprep.subr.mxu0 0.0
      %1088 = vmatpush1.msra.mxu0 %v1077
      %1089 = vmatprep.subr.mxu0 0.0
      %1090 = vmatpush1.msra.mxu0 0.0
      %1091 = vmatprep.subr.mxu0 0.0
      %1092 = vmatpush1.msra.mxu0 0.0
      %1093 = vmatprep.subr.mxu0 0.0
      %1094 = vmatpush1.msra.mxu0 0.0
      %1095 = vmatprep.subr.mxu0 0.0
      %1096 = vmatpush1.msra.mxu0 0.0
      %1097 = vmatprep.subr.mxu0 0.0
      %1098 = vmatpush1.msra.mxu0 0.0
      %1099 = vmatprep.subr.mxu0 0.0
      %1100 = vmatpush1.msra.mxu0 0.0
      %1101 = vmatprep.subr.mxu0 0.0
      %1102 = vmatpush1.msra.mxu0 0.0
      %1103 = vmatprep.subr.mxu0 0.0
      %1104 = vmatpush1.msra.mxu0 0.0
      %1105 = vmatprep.subr.mxu0 0.0
      %1106 = vmatpush1.msra.mxu0 0.0
      %1107 = vmatprep.subr.mxu0 0.0
      %1108 = vmatpush1.msra.mxu0 0.0
      %1109 = vmatprep.subr.mxu0 0.0
      %1110 = vmatpush1.msra.mxu0 0.0
      %1111 = vmatprep.subr.mxu0 0.0
      %1112 = vmatpush1.msra.mxu0 0.0
      %1113 = vmatprep.subr.mxu0 0.0
      %1114 = vmatpush1.msra.mxu0 0.0
      %1115 = vmatprep.subr.mxu0 0.0
      %1116 = vmatpush1.msra.mxu0 0.0
      %1117 = vmatprep.subr.mxu0 0.0
      %1118 = vmatpush1.msra.mxu0 0.0
      %1119 = vmatprep.subr.mxu0 0.0
      %1120 = vmatpush1.msra.mxu0 0.0
      %1121 = vmatprep.subr.mxu0 0.0
      %1122 = vmatpush1.msra.mxu0 0.0
      %1123 = vmatprep.subr.mxu0 0.0
      %1124 = vmatpush1.msra.mxu0 0.0
      %1125 = vmatprep.subr.mxu0 0.0
      %1126 = vmatpush1.msra.mxu0 0.0
      %1127 = vmatprep.subr.mxu0 0.0
      %1128 = vmatpush1.msra.mxu0 0.0
      %1129 = vmatprep.subr.mxu0 0.0
      %1130 = vmatpush1.msra.mxu0 0.0
      %1131 = vmatprep.subr.mxu0 0.0
      %1132 = vmatpush1.msra.mxu0 0.0
      %1133 = vmatprep.subr.mxu0 0.0
      %1134 = vmatpush1.msra.mxu0 0.0
      %1135 = vmatprep.subr.mxu0 0.0
      %1136 = vmatpush1.msra.mxu0 0.0
      %1137 = vmatprep.subr.mxu0 0.0
      %1138 = vmatpush1.msra.mxu0 0.0
      %1139 = vmatprep.subr.mxu0 0.0
      %1140 = vmatpush1.msra.mxu0 0.0
      %1141 = vmatprep.subr.mxu0 0.0
      %1142 = vmatpush1.msra.mxu0 0.0
      %1143 = vmatprep.mubr.f32.mxu0 0.0
      %1144 = vmatmul.mubr.f32.gmra.mrb[0].mxu0 %v1029
      %v1145 = vpop.f32.mrb[0].mxu0
      %v1146 = vadd.f32 %v1027, %v1145
      %v1147 = vpop.f32.mrb[0].mxu0
      %1148 = vmatprep.mubr.f32.mxu0 0.0
      %1149 = vmatmul.mubr.f32.gmra.mrb[0].mxu0 %v1032
      %v1150 = vpop.f32.mrb[0].mxu0
      %v1151 = vadd.f32 %v1027, %v1150
      %v1152 = vpop.f32.mrb[0].mxu0
      %1153 = vmatprep.mubr.f32.mxu0 0.0
      %1154 = vmatmul.mubr.f32.gmra.mrb[0].mxu0 %v1035
      %v1155 = vpop.f32.mrb[0].mxu0
      %v1156 = vadd.f32 %v1027, %v1155
      %v1157 = vpop.f32.mrb[0].mxu0
      %1158 = vmatprep.mubr.f32.mxu0 0.0
      %1159 = vmatmul.mubr.f32.gmra.mrb[0].mxu0 %v1038
      %v1160 = vpop.f32.mrb[0].mxu0
      %v1161 = vadd.f32 %v1027, %v1160
      %v1162 = vpop.f32.mrb[0].mxu0
      %1163 = vmatprep.mubr.f32.mxu0 0.0
      %1164 = vmatmul.mubr.f32.gmra.mrb[0].mxu0 %v1041
      %v1165 = vpop.f32.mrb[0].mxu0
      %v1166 = vadd.f32 %v1027, %v1165
      %v1167 = vpop.f32.mrb[0].mxu0
      %1168 = vmatprep.mubr.f32.mxu0 0.0
      %1169 = vmatmul.mubr.f32.gmra.mrb[0].mxu0 %v1044
      %v1170 = vpop.f32.mrb[0].mxu0
      %v1171 = vadd.f32 %v1027, %v1170
      %v1172 = vpop.f32.mrb[0].mxu0
      %1173 = vmatprep.mubr.f32.mxu0 0.0
      %1174 = vmatmul.mubr.f32.gmra.mrb[0].mxu0 %v1047
      %v1175 = vpop.f32.mrb[0].mxu0
      %v1176 = vadd.f32 %v1027, %v1175
      %v1177 = vpop.f32.mrb[0].mxu0
      %1178 = vmatprep.mubr.f32.mxu0 0.0
      %1179 = vmatmul.mubr.f32.gmra.mrb[0].mxu0 %v1050
      %v1180 = vpop.f32.mrb[0].mxu0
      %v1181 = vadd.f32 %v1027, %v1180
      %v1182 = vpop.f32.mrb[0].mxu0
      %1183 = vmatprep.mubr.f32.mxu0 0.0
      %1184 = vmatmul.mubr.f32.gmra.mrb[0].mxu0 %v1053
      %v1185 = vpop.f32.mrb[0].mxu0
      %v1186 = vadd.f32 %v1027, %v1185
      %v1187 = vpop.f32.mrb[0].mxu0
      %1188 = vmatprep.mubr.f32.mxu0 0.0
      %1189 = vmatmul.mubr.f32.gmra.mrb[0].mxu0 %v1056
      %v1190 = vpop.f32.mrb[0].mxu0
      %v1191 = vadd.f32 %v1027, %v1190
      %v1192 = vpop.f32.mrb[0].mxu0
      %1193 = vmatprep.mubr.f32.mxu0 0.0
      %1194 = vmatmul.mubr.f32.gmra.mrb[0].mxu0 %v1059
      %v1195 = vpop.f32.mrb[0].mxu0
      %v1196 = vadd.f32 %v1027, %v1195
      %v1197 = vpop.f32.mrb[0].mxu0
      %1198 = vmatprep.mubr.f32.mxu0 0.0
      %1199 = vmatmul.mubr.f32.gmra.mrb[0].mxu0 %v1062
      %v1200 = vpop.f32.mrb[0].mxu0
      %v1201 = vadd.f32 %v1027, %v1200
      %v1202 = vpop.f32.mrb[0].mxu0
      %1203 = vmatprep.mubr.f32.mxu0 0.0
      %1204 = vmatmul.mubr.f32.gmra.mrb[0].mxu0 %v1065
      %v1205 = vpop.f32.mrb[0].mxu0
      %v1206 = vadd.f32 %v1027, %v1205
      %v1207 = vpop.f32.mrb[0].mxu0
      %1208 = vmatprep.mubr.f32.mxu0 0.0
      %1209 = vmatmul.mubr.f32.gmra.mrb[0].mxu0 %v1068
      %v1210 = vpop.f32.mrb[0].mxu0
      %v1211 = vadd.f32 %v1027, %v1210
      %v1212 = vpop.f32.mrb[0].mxu0
      %1213 = vmatprep.mubr.f32.mxu0 0.0
      %1214 = vmatmul.mubr.f32.gmra.mrb[0].mxu0 %v1071
      %v1215 = vpop.f32.mrb[0].mxu0
      %v1216 = vadd.f32 %v1027, %v1215
      %v1217 = vpop.f32.mrb[0].mxu0
      %1218 = vmatprep.mubr.f32.mxu0 0.0
      %1219 = vmatmul.mubr.f32.gmra.mrb[0].mxu0 %v1074
      %v1220 = vpop.f32.mrb[0].mxu0
      %v1221 = vadd.f32 %v1027, %v1220
      %v1222 = vpop.f32.mrb[0].mxu0
      %1223 = vdwg.mxu0
      %v1224 = vld [vmem:[%s232] sm:$0xff]
      %v1225 = vlaneseq
      %v1226 = vshrl.u32 %v1225, 7
      %v1227 = vsub.s32 0, %v1226
      %v1228 = vrot.slane %v1224, %v1227
      %1230 = vbcast.lane.b32.xlu0 %v1228, 256
      %v1231 = vpop.permute.xlu0 %1230
      %s1233 = sor.u32 256, 8
      %1234 = vbcast.lane.b32.xlu0 %v1228, %s1233
      %v1235 = vpop.permute.xlu0 %1234
      %v1236 = vlaneseq
      %v1237 = vshrl.u32 %v1236, 7
      %v1238 = vsub.s32 1, %v1237
      %v1239 = vrot.slane %v1224, %v1238
      %1241 = vbcast.lane.b32.xlu0 %v1239, 256
      %v1242 = vpop.permute.xlu0 %1241
      %s1244 = sor.u32 256, 8
      %1245 = vbcast.lane.b32.xlu0 %v1239, %s1244
      %v1246 = vpop.permute.xlu0 %1245
      %v1247 = vlaneseq
      %v1248 = vshrl.u32 %v1247, 7
      %v1249 = vsub.s32 2, %v1248
      %v1250 = vrot.slane %v1224, %v1249
      %1252 = vbcast.lane.b32.xlu0 %v1250, 256
      %v1253 = vpop.permute.xlu0 %1252
      %s1255 = sor.u32 256, 8
      %1256 = vbcast.lane.b32.xlu0 %v1250, %s1255
      %v1257 = vpop.permute.xlu0 %1256
      %v1258 = vlaneseq
      %v1259 = vshrl.u32 %v1258, 7
      %v1260 = vsub.s32 3, %v1259
      %v1261 = vrot.slane %v1224, %v1260
      %1263 = vbcast.lane.b32.xlu0 %v1261, 256
      %v1264 = vpop.permute.xlu0 %1263
      %s1266 = sor.u32 256, 8
      %1267 = vbcast.lane.b32.xlu0 %v1261, %s1266
      %v1268 = vpop.permute.xlu0 %1267
      %v1269 = vlaneseq
      %v1270 = vshrl.u32 %v1269, 7
      %v1271 = vsub.s32 4, %v1270
      %v1272 = vrot.slane %v1224, %v1271
      %1274 = vbcast.lane.b32.xlu0 %v1272, 256
      %v1275 = vpop.permute.xlu0 %1274
      %s1277 = sor.u32 256, 8
      %1278 = vbcast.lane.b32.xlu0 %v1272, %s1277
      %v1279 = vpop.permute.xlu0 %1278
      %v1280 = vlaneseq
      %v1281 = vshrl.u32 %v1280, 7
      %v1282 = vsub.s32 5, %v1281
      %v1283 = vrot.slane %v1224, %v1282
      %1285 = vbcast.lane.b32.xlu0 %v1283, 256
      %v1286 = vpop.permute.xlu0 %1285
      %s1288 = sor.u32 256, 8
      %1289 = vbcast.lane.b32.xlu0 %v1283, %s1288
      %v1290 = vpop.permute.xlu0 %1289
      %v1291 = vlaneseq
      %v1292 = vshrl.u32 %v1291, 7
      %v1293 = vsub.s32 6, %v1292
      %v1294 = vrot.slane %v1224, %v1293
      %1296 = vbcast.lane.b32.xlu0 %v1294, 256
      %v1297 = vpop.permute.xlu0 %1296
      %s1299 = sor.u32 256, 8
      %1300 = vbcast.lane.b32.xlu0 %v1294, %s1299
      %v1301 = vpop.permute.xlu0 %1300
      %v1302 = vlaneseq
      %v1303 = vshrl.u32 %v1302, 7
      %v1304 = vsub.s32 7, %v1303
      %v1305 = vrot.slane %v1224, %v1304
      %1307 = vbcast.lane.b32.xlu0 %v1305, 256
      %v1308 = vpop.permute.xlu0 %1307
      %s1310 = sor.u32 256, 8
      %1311 = vbcast.lane.b32.xlu0 %v1305, %s1310
      %v1312 = vpop.permute.xlu0 %1311
      %v1313 = vadd.f32 %v1146, %v1231
      %v1314 = vadd.f32 %v1151, %v1235
      %v1315 = vadd.f32 %v1156, %v1242
      %v1316 = vadd.f32 %v1161, %v1246
      %v1317 = vadd.f32 %v1166, %v1253
      %v1318 = vadd.f32 %v1171, %v1257
      %v1319 = vadd.f32 %v1176, %v1264
      %v1320 = vadd.f32 %v1181, %v1268
      %v1321 = vadd.f32 %v1186, %v1275
      %v1322 = vadd.f32 %v1191, %v1279
      %v1323 = vadd.f32 %v1196, %v1286
      %v1324 = vadd.f32 %v1201, %v1290
      %v1325 = vadd.f32 %v1206, %v1297
      %v1326 = vadd.f32 %v1211, %v1301
      %v1327 = vadd.f32 %v1216, %v1308
      %v1328 = vadd.f32 %v1221, %v1312
      %v1329 = vsel %vm731, %v1313, -inf
      %v1330 = vsel %vm731, %v1314, -inf
      %v1331 = vmax.f32 %v1329, %v1330
      %v1332 = vrot.slane %v1331, 4
      %v1333 = vmax.f32 %v1331, %v1332
      %v1334 = vrot.slane %v1333, 2
      %v1335 = vmax.f32 %v1333, %v1334
      %v1336 = vrot.slane %v1335, 1
      %v1337 = vmax.f32 %v1335, %v1336
      %v1338 = vsel %vm731, %v1315, -inf
      %v1339 = vsel %vm731, %v1316, -inf
      %v1340 = vmax.f32 %v1338, %v1339
      %v1341 = vrot.slane %v1340, 4
      %v1342 = vmax.f32 %v1340, %v1341
      %v1343 = vrot.slane %v1342, 2
      %v1344 = vmax.f32 %v1342, %v1343
      %v1345 = vrot.slane %v1344, 1
      %v1346 = vmax.f32 %v1344, %v1345
      %v1347 = vsel %vm731, %v1317, -inf
      %v1348 = vsel %vm731, %v1318, -inf
      %v1349 = vmax.f32 %v1347, %v1348
      %v1350 = vrot.slane %v1349, 4
      %v1351 = vmax.f32 %v1349, %v1350
      %v1352 = vrot.slane %v1351, 2
      %v1353 = vmax.f32 %v1351, %v1352
      %v1354 = vrot.slane %v1353, 1
      %v1355 = vmax.f32 %v1353, %v1354
      %v1356 = vsel %vm731, %v1319, -inf
      %v1357 = vsel %vm731, %v1320, -inf
      %v1358 = vmax.f32 %v1356, %v1357
      %v1359 = vrot.slane %v1358, 4
      %v1360 = vmax.f32 %v1358, %v1359
      %v1361 = vrot.slane %v1360, 2
      %v1362 = vmax.f32 %v1360, %v1361
      %v1363 = vrot.slane %v1362, 1
      %v1364 = vmax.f32 %v1362, %v1363
      %v1365 = vsel %vm731, %v1321, -inf
      %v1366 = vsel %vm731, %v1322, -inf
      %v1367 = vmax.f32 %v1365, %v1366
      %v1368 = vrot.slane %v1367, 4
      %v1369 = vmax.f32 %v1367, %v1368
      %v1370 = vrot.slane %v1369, 2
      %v1371 = vmax.f32 %v1369, %v1370
      %v1372 = vrot.slane %v1371, 1
      %v1373 = vmax.f32 %v1371, %v1372
      %v1374 = vsel %vm731, %v1323, -inf
      %v1375 = vsel %vm731, %v1324, -inf
      %v1376 = vmax.f32 %v1374, %v1375
      %v1377 = vrot.slane %v1376, 4
      %v1378 = vmax.f32 %v1376, %v1377
      %v1379 = vrot.slane %v1378, 2
      %v1380 = vmax.f32 %v1378, %v1379
      %v1381 = vrot.slane %v1380, 1
      %v1382 = vmax.f32 %v1380, %v1381
      %v1383 = vsel %vm731, %v1325, -inf
      %v1384 = vsel %vm731, %v1326, -inf
      %v1385 = vmax.f32 %v1383, %v1384
      %v1386 = vrot.slane %v1385, 4
      %v1387 = vmax.f32 %v1385, %v1386
      %v1388 = vrot.slane %v1387, 2
      %v1389 = vmax.f32 %v1387, %v1388
      %v1390 = vrot.slane %v1389, 1
      %v1391 = vmax.f32 %v1389, %v1390
      %v1392 = vsel %vm731, %v1327, -inf
      %v1393 = vsel %vm731, %v1328, -inf
      %v1394 = vmax.f32 %v1392, %v1393
      %v1395 = vrot.slane %v1394, 4
      %v1396 = vmax.f32 %v1394, %v1395
      %v1397 = vrot.slane %v1396, 2
      %v1398 = vmax.f32 %v1396, %v1397
      %v1399 = vrot.slane %v1398, 1
      %v1400 = vmax.f32 %v1398, %v1399
      %v1401 = vlaneseq
      %v1402 = vshrl.u32 %v1401, 7
      %v1403 = vsub.s32 0, %v1402
      %v1404 = vrot.slane %v260, %v1403
      %vm1413 = vcmask 1041409
      %v1414 = vsel %vm1413, %v1346, %v1337
      %vm1415 = vcmask 1042434
      %v1416 = vsel %vm1415, %v1355, %v1414
      %vm1417 = vcmask 1043459
      %v1418 = vsel %vm1417, %v1364, %v1416
      %vm1419 = vcmask 1044484
      %v1420 = vsel %vm1419, %v1373, %v1418
      %vm1421 = vcmask 1045509
      %v1422 = vsel %vm1421, %v1382, %v1420
      %vm1423 = vcmask 1046534
      %v1424 = vsel %vm1423, %v1391, %v1422
      %vm1425 = vcmask 1047559
      %v1426 = vsel %vm1425, %v1400, %v1424
      %v1427 = vsel %vm731, %v1426, 0
      %v1430 = vsel %vm285, %v259, 0
      %1432 = vmatprep.subr.mxu0 0.0
      %1433 = vmatpush1.msra.mxu0 %v255
      %1434 = vmatprep.subr.mxu0 0.0
      %1435 = vmatpush1.msra.mxu0 %v256
      %1436 = vmatprep.subr.mxu0 0.0
      %1437 = vmatpush1.msra.mxu0 %v257
      %1438 = vmatprep.subr.mxu0 0.0
      %1439 = vmatpush1.msra.mxu0 %v258
      %1440 = vmatprep.subr.mxu0 0.0
      %1441 = vmatpush1.msra.mxu0 %v1430
      %1442 = vmatprep.subr.mxu0 0.0
      %1443 = vmatpush1.msra.mxu0 0.0
      %1444 = vmatprep.subr.mxu0 0.0
      %1445 = vmatpush1.msra.mxu0 0.0
      %1446 = vmatprep.subr.mxu0 0.0
      %1447 = vmatpush1.msra.mxu0 0.0
      %1448 = vmatprep.subr.mxu0 0.0
      %1449 = vmatpush1.msra.mxu0 0.0
      %1450 = vmatprep.subr.mxu0 0.0
      %1451 = vmatpush1.msra.mxu0 0.0
      %1452 = vmatprep.subr.mxu0 0.0
      %1453 = vmatpush1.msra.mxu0 0.0
      %1454 = vmatprep.subr.mxu0 0.0
      %1455 = vmatpush1.msra.mxu0 0.0
      %1456 = vmatprep.subr.mxu0 0.0
      %1457 = vmatpush1.msra.mxu0 0.0
      %1458 = vmatprep.subr.mxu0 0.0
      %1459 = vmatpush1.msra.mxu0 0.0
      %1460 = vmatprep.subr.mxu0 0.0
      %1461 = vmatpush1.msra.mxu0 0.0
      %1462 = vmatprep.subr.mxu0 0.0
      %1463 = vmatpush1.msra.mxu0 0.0
      %1464 = vmatprep.subr.mxu0 0.0
      %1465 = vmatpush1.msra.mxu0 0.0
      %1466 = vmatprep.subr.mxu0 0.0
      %1467 = vmatpush1.msra.mxu0 0.0
      %1468 = vmatprep.subr.mxu0 0.0
      %1469 = vmatpush1.msra.mxu0 0.0
      %1470 = vmatprep.subr.mxu0 0.0
      %1471 = vmatpush1.msra.mxu0 0.0
      %1472 = vmatprep.subr.mxu0 0.0
      %1473 = vmatpush1.msra.mxu0 0.0
      %1474 = vmatprep.subr.mxu0 0.0
      %1475 = vmatpush1.msra.mxu0 0.0
      %1476 = vmatprep.subr.mxu0 0.0
      %1477 = vmatpush1.msra.mxu0 0.0
      %1478 = vmatprep.subr.mxu0 0.0
      %1479 = vmatpush1.msra.mxu0 0.0
      %1480 = vmatprep.subr.mxu0 0.0
      %1481 = vmatpush1.msra.mxu0 0.0
      %1482 = vmatprep.subr.mxu0 0.0
      %1483 = vmatpush1.msra.mxu0 0.0
      %1484 = vmatprep.subr.mxu0 0.0
      %1485 = vmatpush1.msra.mxu0 0.0
      %1486 = vmatprep.subr.mxu0 0.0
      %1487 = vmatpush1.msra.mxu0 0.0
      %1488 = vmatprep.subr.mxu0 0.0
      %1489 = vmatpush1.msra.mxu0 0.0
      %1490 = vmatprep.subr.mxu0 0.0
      %1491 = vmatpush1.msra.mxu0 0.0
      %1492 = vmatprep.subr.mxu0 0.0
      %1493 = vmatpush1.msra.mxu0 0.0
      %1494 = vmatprep.subr.mxu0 0.0
      %1495 = vmatpush1.msra.mxu0 0.0
      %1496 = vmatprep.mubr.f32.mxu0 0.0
      %1497 = vmatmul.mubr.f32.gmra.mrb[0].mxu0 %v1427
      %v1498 = vpop.f32.mrb[0].mxu0
      %v1499 = vadd.f32 %v1404, %v1498
      %v1500 = vpop.f32.mrb[0].mxu0
      %1501 = vdwg.mxu0
      %vm1502 = vcmp.gt.f32.partialorder %v1499, 0.0
      %v1503 = vmin.f32 %v1499, 0.0
      %v1504 = vmul.f32 %v1503, 1.442695
      %v1505 = vpow.pop %v1504
      %v1506 = vsub.f32 %v1505, 1.0
      %v1507 = vsel %vm1502, %v1499, %v1506
      %v1508 = vlaneseq
      %v1509 = vshrl.u32 %v1508, 7
      %v1510 = vsub.s32 0, %v1509
      %v1511 = vrot.slane %v266, %v1510
      %v1513 = vsel %vm731, %v1507, 0
      %v1516 = vsel %vm285, %v265, 0
      %1518 = vmatprep.subr.mxu0 0.0
      %1519 = vmatpush1.msra.mxu0 %v261
      %1520 = vmatprep.subr.mxu0 0.0
      %1521 = vmatpush1.msra.mxu0 %v262
      %1522 = vmatprep.subr.mxu0 0.0
      %1523 = vmatpush1.msra.mxu0 %v263
      %1524 = vmatprep.subr.mxu0 0.0
      %1525 = vmatpush1.msra.mxu0 %v264
      %1526 = vmatprep.subr.mxu0 0.0
      %1527 = vmatpush1.msra.mxu0 %v1516
      %1528 = vmatprep.subr.mxu0 0.0
      %1529 = vmatpush1.msra.mxu0 0.0
      %1530 = vmatprep.subr.mxu0 0.0
      %1531 = vmatpush1.msra.mxu0 0.0
      %1532 = vmatprep.subr.mxu0 0.0
      %1533 = vmatpush1.msra.mxu0 0.0
      %1534 = vmatprep.subr.mxu0 0.0
      %1535 = vmatpush1.msra.mxu0 0.0
      %1536 = vmatprep.subr.mxu0 0.0
      %1537 = vmatpush1.msra.mxu0 0.0
      %1538 = vmatprep.subr.mxu0 0.0
      %1539 = vmatpush1.msra.mxu0 0.0
      %1540 = vmatprep.subr.mxu0 0.0
      %1541 = vmatpush1.msra.mxu0 0.0
      %1542 = vmatprep.subr.mxu0 0.0
      %1543 = vmatpush1.msra.mxu0 0.0
      %1544 = vmatprep.subr.mxu0 0.0
      %1545 = vmatpush1.msra.mxu0 0.0
      %1546 = vmatprep.subr.mxu0 0.0
      %1547 = vmatpush1.msra.mxu0 0.0
      %1548 = vmatprep.subr.mxu0 0.0
      %1549 = vmatpush1.msra.mxu0 0.0
      %1550 = vmatprep.subr.mxu0 0.0
      %1551 = vmatpush1.msra.mxu0 0.0
      %1552 = vmatprep.subr.mxu0 0.0
      %1553 = vmatpush1.msra.mxu0 0.0
      %1554 = vmatprep.subr.mxu0 0.0
      %1555 = vmatpush1.msra.mxu0 0.0
      %1556 = vmatprep.subr.mxu0 0.0
      %1557 = vmatpush1.msra.mxu0 0.0
      %1558 = vmatprep.subr.mxu0 0.0
      %1559 = vmatpush1.msra.mxu0 0.0
      %1560 = vmatprep.subr.mxu0 0.0
      %1561 = vmatpush1.msra.mxu0 0.0
      %1562 = vmatprep.subr.mxu0 0.0
      %1563 = vmatpush1.msra.mxu0 0.0
      %1564 = vmatprep.subr.mxu0 0.0
      %1565 = vmatpush1.msra.mxu0 0.0
      %1566 = vmatprep.subr.mxu0 0.0
      %1567 = vmatpush1.msra.mxu0 0.0
      %1568 = vmatprep.subr.mxu0 0.0
      %1569 = vmatpush1.msra.mxu0 0.0
      %1570 = vmatprep.subr.mxu0 0.0
      %1571 = vmatpush1.msra.mxu0 0.0
      %1572 = vmatprep.subr.mxu0 0.0
      %1573 = vmatpush1.msra.mxu0 0.0
      %1574 = vmatprep.subr.mxu0 0.0
      %1575 = vmatpush1.msra.mxu0 0.0
      %1576 = vmatprep.subr.mxu0 0.0
      %1577 = vmatpush1.msra.mxu0 0.0
      %1578 = vmatprep.subr.mxu0 0.0
      %1579 = vmatpush1.msra.mxu0 0.0
      %1580 = vmatprep.subr.mxu0 0.0
      %1581 = vmatpush1.msra.mxu0 0.0
      %1582 = vmatprep.mubr.f32.mxu0 0.0
      %1583 = vmatmul.mubr.f32.gmra.mrb[0].mxu0 %v1513
      %v1584 = vpop.f32.mrb[0].mxu0
      %v1585 = vadd.f32 %v1511, %v1584
      %v1586 = vpop.f32.mrb[0].mxu0
      %1587 = vdwg.mxu0
      %vm1588 = vcmp.gt.f32.partialorder %v1585, 0.0
      %v1589 = vmin.f32 %v1585, 0.0
      %v1590 = vmul.f32 %v1589, 1.442695
      %v1591 = vpow.pop %v1590
      %v1592 = vsub.f32 %v1591, 1.0
      %v1593 = vsel %vm1588, %v1585, %v1592
      %v1594 = vlaneseq
      %v1595 = vshrl.u32 %v1594, 7
      %v1596 = vsub.s32 0, %v1595
      %v1597 = vrot.slane %v272, %v1596
      %v1599 = vsel %vm731, %v1593, 0
      %v1602 = vsel %vm285, %v271, 0
      %1604 = vmatprep.subr.mxu0 0.0
      %1605 = vmatpush1.msra.mxu0 %v267
      %1606 = vmatprep.subr.mxu0 0.0
      %1607 = vmatpush1.msra.mxu0 %v268
      %1608 = vmatprep.subr.mxu0 0.0
      %1609 = vmatpush1.msra.mxu0 %v269
      %1610 = vmatprep.subr.mxu0 0.0
      %1611 = vmatpush1.msra.mxu0 %v270
      %1612 = vmatprep.subr.mxu0 0.0
      %1613 = vmatpush1.msra.mxu0 %v1602
      %1614 = vmatprep.subr.mxu0 0.0
      %1615 = vmatpush1.msra.mxu0 0.0
      %1616 = vmatprep.subr.mxu0 0.0
      %1617 = vmatpush1.msra.mxu0 0.0
      %1618 = vmatprep.subr.mxu0 0.0
      %1619 = vmatpush1.msra.mxu0 0.0
      %1620 = vmatprep.subr.mxu0 0.0
      %1621 = vmatpush1.msra.mxu0 0.0
      %1622 = vmatprep.subr.mxu0 0.0
      %1623 = vmatpush1.msra.mxu0 0.0
      %1624 = vmatprep.subr.mxu0 0.0
      %1625 = vmatpush1.msra.mxu0 0.0
      %1626 = vmatprep.subr.mxu0 0.0
      %1627 = vmatpush1.msra.mxu0 0.0
      %1628 = vmatprep.subr.mxu0 0.0
      %1629 = vmatpush1.msra.mxu0 0.0
      %1630 = vmatprep.subr.mxu0 0.0
      %1631 = vmatpush1.msra.mxu0 0.0
      %1632 = vmatprep.subr.mxu0 0.0
      %1633 = vmatpush1.msra.mxu0 0.0
      %1634 = vmatprep.subr.mxu0 0.0
      %1635 = vmatpush1.msra.mxu0 0.0
      %1636 = vmatprep.subr.mxu0 0.0
      %1637 = vmatpush1.msra.mxu0 0.0
      %1638 = vmatprep.subr.mxu0 0.0
      %1639 = vmatpush1.msra.mxu0 0.0
      %1640 = vmatprep.subr.mxu0 0.0
      %1641 = vmatpush1.msra.mxu0 0.0
      %1642 = vmatprep.subr.mxu0 0.0
      %1643 = vmatpush1.msra.mxu0 0.0
      %1644 = vmatprep.subr.mxu0 0.0
      %1645 = vmatpush1.msra.mxu0 0.0
      %1646 = vmatprep.subr.mxu0 0.0
      %1647 = vmatpush1.msra.mxu0 0.0
      %1648 = vmatprep.subr.mxu0 0.0
      %1649 = vmatpush1.msra.mxu0 0.0
      %1650 = vmatprep.subr.mxu0 0.0
      %1651 = vmatpush1.msra.mxu0 0.0
      %1652 = vmatprep.subr.mxu0 0.0
      %1653 = vmatpush1.msra.mxu0 0.0
      %1654 = vmatprep.subr.mxu0 0.0
      %1655 = vmatpush1.msra.mxu0 0.0
      %1656 = vmatprep.subr.mxu0 0.0
      %1657 = vmatpush1.msra.mxu0 0.0
      %1658 = vmatprep.subr.mxu0 0.0
      %1659 = vmatpush1.msra.mxu0 0.0
      %1660 = vmatprep.subr.mxu0 0.0
      %1661 = vmatpush1.msra.mxu0 0.0
      %1662 = vmatprep.subr.mxu0 0.0
      %1663 = vmatpush1.msra.mxu0 0.0
      %1664 = vmatprep.subr.mxu0 0.0
      %1665 = vmatpush1.msra.mxu0 0.0
      %1666 = vmatprep.subr.mxu0 0.0
      %1667 = vmatpush1.msra.mxu0 0.0
      %1668 = vmatprep.mubr.f32.mxu0 0.0
      %1669 = vmatmul.mubr.f32.gmra.mrb[0].mxu0 %v1599
      %v1670 = vpop.f32.mrb[0].mxu0
      %v1671 = vadd.f32 %v1597, %v1670
      %v1672 = vpop.f32.mrb[0].mxu0
      %1673 = vdwg.mxu0
      %vm1674 = vcmp.gt.f32.partialorder %v1671, 0.0
      %v1675 = vmin.f32 %v1671, 0.0
      %v1676 = vmul.f32 %v1675, 1.442695
      %v1677 = vpow.pop %v1676
      %v1678 = vsub.f32 %v1677, 1.0
      %v1679 = vsel %vm1674, %v1671, %v1678
      %1680 = vst.msk [vmem:[%s236] sm:$0xff] %vm731, %v1679
      %p1681 = scmp.lt.s32.totalorder %s16, 1
      %s1682 = scalar_select %p1681, %s16, 1
      %s1683 = smul.addr %s1682, 8
      %s1684 = scalar_lea.vmem %s5, %s1683
      // Predicated region
      $region41: #{forward.4} parent=39 // pred_check
        %p1685 = pneg %p149
      $region42: #{forward.4} parent=39 // pred_check_branch
        %1687 = sbr.rel (%p1685) target = $region44
      $region43: #{forward.4} parent=39 // pred_region
        _
      $region44: #{forward.4} parent=39 // pred_fallthru
        _
    $region40: #{forward.4} parent=5 // pred_fallthru
      _
    %p1688 = scmp.le.s32.totalorder 2, %s11
    // Predicated region
    $region45: #{forward.4} parent=5 // pred_check
      %p1689 = pneg %p1688
    $region46: #{forward.4} parent=5 // pred_check_branch
      %1691 = sbr.rel (%p1689) target = $region48
    $region47: #{forward.4} parent=5 // pred_region
      %s1692 = ssub.s32 %s11, 2
      // Predicated region
      $region49: #{forward.4} parent=47 // pred_check
        %p1693 = pneg %p155
      $region50: #{forward.4} parent=47 // pred_check_branch
        %1695 = sbr.rel (%p1693) target = $region52
      $region51: #{forward.4} parent=47 // pred_region
        %p1696 = scmp.lt.s32.totalorder %s17, 1
        %s1697 = scalar_select %p1696, %s17, 1
        %s1698 = smul.addr %s1697, 8
        %s1699 = scalar_lea.vmem %s5, %s1698
      $region52: #{forward.4} parent=47 // pred_fallthru
        _
    $region48: #{forward.4} parent=5 // pred_fallthru
      _
  $region6: #{forward.4} parent=0 // loop_footer
    %s15 = sadd.s32 1, %s11
  $region7: #{forward.4} parent=0 // loop_footer_branch
    %10 = sbr.rel target = $region3
  $region8: #{forward.4} parent=0 // loop_exit
    _

// kernel: forward.3
$region0: #{forward.3}
  #allocation0 [shape = 'u32[]', space=smem, size = 0x4, offset = 0x4, fixed_abs, tag = 'smem constant byte address 0x4 - core index']
  #allocation1 [shape = 'u32[144,128]{1,0:T(1,128)}', space=vmem, size = 0x12000, scoped, tag = 'internal scratch']
  %s0 = inlined_call_operand.vmem [shape: f32[16,3], index: 0, kind: input, shape index: {}]
  %s1 = inlined_call_operand.vmem [shape: f32[16,3], index: 1, kind: input, shape index: {}, may-alias: {1,2}]
  %s2 = inlined_call_operand.vmem [shape: f32[16,3], index: 2, kind: input, shape index: {}, may-alias: {1,2}]
  %s3 = inlined_call_operand.vmem [shape: f32[16,16], index: 3, kind: input, shape index: {}]
  %s4 = inlined_call_operand.vmem [shape: f32[224,32], index: 4, kind: input, shape index: {}]
  %s5 = inlined_call_operand.vmem [shape: f32[16,32], index: 5, kind: output, shape index: {}]
  %s6 = sld [smem:[#allocation0]]
  $region53: #{forward.3} parent=0
    _
  %s8 = ssub.s32 1, %s6
  %s9 = scalar_select 0, %s8, %s6
  loop: start=0, step=1, limit=4
  $region2: #{forward.3} parent=0 // loop_pre_header
    _
  $region3: #{forward.3} parent=0 // loop_header
    %s11 = sphi 0, %s15
    %p12 = scmp.ge.s32.totalorder %s11, 4
    %s19 = sphi 0, %s19
    %s21 = sphi 0, %s19
    %s22 = sphi 0, %s21
    %s36 = sphi 0, %s22
    %s40 = sphi 0, %s40
    %s42 = sphi 0, %s40
    %s43 = sphi 0, %s42
    %s57 = sphi 0, %s43
    %s63 = sphi 0, %s65
    %s66 = sphi 0, %s63
    %s67 = sphi 0, %s66
    %s83 = sphi 0, %s67
    %s89 = sphi 0, %s91
    %s92 = sphi 0, %s89
    %s93 = sphi 0, %s92
    %s109 = sphi 0, %s93
    %s113 = sphi 0, %s113
    %s115 = sphi 0, %s113
    %s116 = sphi 0, %s115
    %s130 = sphi 0, %s116
    %s136 = sphi 0, %s138
    %s139 = sphi 0, %s136
    %s140 = sphi 0, %s139
    %s156 = sphi 0, %s140
  $region4: #{forward.3} parent=0 // loop_header_branch
    %14 = sbr.rel (%p12) target = $region8
  $region5: #{forward.3} parent=0 // loop_body
    %s16 = ssub.s32 %s11, 1
    %s17 = ssub.s32 %s11, 2
    %s18 = sadd.s32 %s11, 1
    %s20 = sadd.s32 %s19, 1
    %p23 = scmp.eq.s32.totalorder %s11, 1
    %p24 = scmp.ne.s32.totalorder %s19, %s21
    %p25 = scmp.eq.s32.totalorder %s11, 0
    %p26 = por %p24, %p25
    %p27 = scmp.ne.s32.totalorder %s19, %s21
    %p28 = scmp.eq.s32.totalorder %s16, 1
    %p29 = por %p27, %p28
    %p30 = scmp.ne.s32.totalorder %s21, %s22
    %p31 = scmp.eq.s32.totalorder %s16, 0
    %p32 = por %p30, %p31
    %p33 = scmp.ne.s32.totalorder %s21, %s22
    %p34 = scmp.eq.s32.totalorder %s17, 1
    %p35 = por %p33, %p34
    %p37 = scmp.ne.s32.totalorder %s22, %s36
    %p38 = scmp.eq.s32.totalorder %s17, 0
    %p39 = por %p37, %p38
    %s41 = sadd.s32 %s40, 1
    %p44 = scmp.eq.s32.totalorder %s11, 1
    %p45 = scmp.ne.s32.totalorder %s40, %s42
    %p46 = scmp.eq.s32.totalorder %s11, 0
    %p47 = por %p45, %p46
    %p48 = scmp.ne.s32.totalorder %s40, %s42
    %p49 = scmp.eq.s32.totalorder %s16, 1
    %p50 = por %p48, %p49
    %p51 = scmp.ne.s32.totalorder %s42, %s43
    %p52 = scmp.eq.s32.totalorder %s16, 0
    %p53 = por %p51, %p52
    %p54 = scmp.ne.s32.totalorder %s42, %s43
    %p55 = scmp.eq.s32.totalorder %s17, 1
    %p56 = por %p54, %p55
    %p58 = scmp.ne.s32.totalorder %s43, %s57
    %p59 = scmp.eq.s32.totalorder %s17, 0
    %p60 = por %p58, %p59
    %s61 = ssub.s32 %s11, %s18
    %p62 = scmp.eq.s32.totalorder %s61, 0
    %s64 = sadd.s32 %s63, 1
    %s65 = scalar_select %p62, %s63, %s64
    %p68 = pneg %p62
    %p69 = scmp.eq.s32.totalorder %s11, 1
    %p70 = por %p68, %p69
    %p71 = scmp.ne.s32.totalorder %s63, %s66
    %p72 = scmp.eq.s32.totalorder %s11, 0
    %p73 = por %p71, %p72
    %p74 = scmp.ne.s32.totalorder %s63, %s66
    %p75 = scmp.eq.s32.totalorder %s16, 1
    %p76 = por %p74, %p75
    %p77 = scmp.ne.s32.totalorder %s66, %s67
    %p78 = scmp.eq.s32.totalorder %s16, 0
    %p79 = por %p77, %p78
    %p80 = scmp.ne.s32.totalorder %s66, %s67
    %p81 = scmp.eq.s32.totalorder %s17, 1
    %p82 = por %p80, %p81
    %p84 = scmp.ne.s32.totalorder %s67, %s83
    %p85 = scmp.eq.s32.totalorder %s17, 0
    %p86 = por %p84, %p85
    %s87 = ssub.s32 %s11, %s18
    %p88 = scmp.eq.s32.totalorder %s87, 0
    %s90 = sadd.s32 %s89, 1
    %s91 = scalar_select %p88, %s89, %s90
    %p94 = pneg %p88
    %p95 = scmp.eq.s32.totalorder %s11, 1
    %p96 = por %p94, %p95
    %p97 = scmp.ne.s32.totalorder %s89, %s92
    %p98 = scmp.eq.s32.totalorder %s11, 0
    %p99 = por %p97, %p98
    %p100 = scmp.ne.s32.totalorder %s89, %s92
    %p101 = scmp.eq.s32.totalorder %s16, 1
    %p102 = por %p100, %p101
    %p103 = scmp.ne.s32.totalorder %s92, %s93
    %p104 = scmp.eq.s32.totalorder %s16, 0
    %p105 = por %p103, %p104
    %p106 = scmp.ne.s32.totalorder %s92, %s93
    %p107 = scmp.eq.s32.totalorder %s17, 1
    %p108 = por %p106, %p107
    %p110 = scmp.ne.s32.totalorder %s93, %s109
    %p111 = scmp.eq.s32.totalorder %s17, 0
    %p112 = por %p110, %p111
    %s114 = sadd.s32 %s113, 1
    %p117 = scmp.eq.s32.totalorder %s11, 1
    %p118 = scmp.ne.s32.totalorder %s113, %s115
    %p119 = scmp.eq.s32.totalorder %s11, 0
    %p120 = por %p118, %p119
    %p121 = scmp.ne.s32.totalorder %s113, %s115
    %p122 = scmp.eq.s32.totalorder %s16, 1
    %p123 = por %p121, %p122
    %p124 = scmp.ne.s32.totalorder %s115, %s116
    %p125 = scmp.eq.s32.totalorder %s16, 0
    %p126 = por %p124, %p125
    %p127 = scmp.ne.s32.totalorder %s115, %s116
    %p128 = scmp.eq.s32.totalorder %s17, 1
    %p129 = por %p127, %p128
    %p131 = scmp.ne.s32.totalorder %s116, %s130
    %p132 = scmp.eq.s32.totalorder %s17, 0
    %p133 = por %p131, %p132
    %s134 = ssub.s32 %s11, %s18
    %p135 = scmp.eq.s32.totalorder %s134, 0
    %s137 = sadd.s32 %s136, 1
    %s138 = scalar_select %p135, %s136, %s137
    %p141 = pneg %p135
    %p142 = scmp.eq.s32.totalorder %s11, 1
    %p143 = por %p141, %p142
    %p144 = scmp.ne.s32.totalorder %s136, %s139
    %p145 = scmp.eq.s32.totalorder %s11, 0
    %p146 = por %p144, %p145
    %p147 = scmp.ne.s32.totalorder %s136, %s139
    %p148 = scmp.eq.s32.totalorder %s16, 1
    %p149 = por %p147, %p148
    %p150 = scmp.ne.s32.totalorder %s139, %s140
    %p151 = scmp.eq.s32.totalorder %s16, 0
    %p152 = por %p150, %p151
    %p153 = scmp.ne.s32.totalorder %s139, %s140
    %p154 = scmp.eq.s32.totalorder %s17, 1
    %p155 = por %p153, %p154
    %p157 = scmp.ne.s32.totalorder %s140, %s156
    %p158 = scmp.eq.s32.totalorder %s17, 0
    %p159 = por %p157, %p158
    %p160 = scmp.le.s32.totalorder 1, %s11
    %p161 = scmp.lt.s32.totalorder %s11, 3
    %p162 = pnand %p160, %p161
    %p163 = pneg %p162
    // Predicated region
    $region9: #{forward.3} parent=5 // pred_check
      _
    $region10: #{forward.3} parent=5 // pred_check_branch
      %165 = sbr.rel (%p162) target = $region12
    $region11: #{forward.3} parent=5 // pred_region
      %s166 = ssub.s32 %s11, 1
      // Predicated region
      $region13: #{forward.3} parent=11 // pred_check
        %p167 = pneg %p32
      $region14: #{forward.3} parent=11 // pred_check_branch
        %169 = sbr.rel (%p167) target = $region16
      $region15: #{forward.3} parent=11 // pred_region
        _
      $region16: #{forward.3} parent=11 // pred_fallthru
        _
      // Predicated region
      $region17: #{forward.3} parent=11 // pred_check
        %p170 = pneg %p53
      $region18: #{forward.3} parent=11 // pred_check_branch
        %172 = sbr.rel (%p170) target = $region20
      $region19: #{forward.3} parent=11 // pred_region
        _
      $region20: #{forward.3} parent=11 // pred_fallthru
        _
      // Predicated region
      $region21: #{forward.3} parent=11 // pred_check
        %p173 = pneg %p126
      $region22: #{forward.3} parent=11 // pred_check_branch
        %175 = sbr.rel (%p173) target = $region24
      $region23: #{forward.3} parent=11 // pred_region
        _
      $region24: #{forward.3} parent=11 // pred_fallthru
        _
    $region12: #{forward.3} parent=5 // pred_fallthru
      _
    %p176 = scmp.lt.s32.totalorder %s11, 2
    // Predicated region
    $region25: #{forward.3} parent=5 // pred_check
      %p177 = pneg %p176
    $region26: #{forward.3} parent=5 // pred_check_branch
      %179 = sbr.rel (%p177) target = $region28
    $region27: #{forward.3} parent=5 // pred_region
      // Predicated region
      $region29: #{forward.3} parent=27 // pred_check
        %p180 = pneg %p73
      $region30: #{forward.3} parent=27 // pred_check_branch
        %182 = sbr.rel (%p180) target = $region32
      $region31: #{forward.3} parent=27 // pred_region
        %p183 = scmp.lt.s32.totalorder %s11, 1
        %s184 = scalar_select %p183, %s11, 1
        %s185 = smul.addr %s184, 8
        %s186 = scalar_lea.vmem %s2, %s185
      $region32: #{forward.3} parent=27 // pred_fallthru
        _
      // Predicated region
      $region33: #{forward.3} parent=27 // pred_check
        %p187 = pneg %p99
      $region34: #{forward.3} parent=27 // pred_check_branch
        %189 = sbr.rel (%p187) target = $region36
      $region35: #{forward.3} parent=27 // pred_region
        %p190 = scmp.lt.s32.totalorder %s11, 1
        %s191 = scalar_select %p190, %s11, 1
        %s192 = smul.addr %s191, 8
        %s193 = scalar_lea.vmem %s3, %s192
      $region36: #{forward.3} parent=27 // pred_fallthru
        _
    $region28: #{forward.3} parent=5 // pred_fallthru
      _
    %p194 = scmp.le.s32.totalorder 1, %s11
    %p195 = scmp.lt.s32.totalorder %s11, 3
    %p196 = pnand %p194, %p195
    %p197 = pneg %p196
    // Predicated region
    $region37: #{forward.3} parent=5 // pred_check
      _
    $region38: #{forward.3} parent=5 // pred_check_branch
      %199 = sbr.rel (%p196) target = $region40
    $region39: #{forward.3} parent=5 // pred_region
      %s200 = ssub.s32 %s11, 1
      %p201 = pneg %p32
      %p202 = pneg %p29
      %p203 = pneg %p53
      %p204 = pneg %p50
      %p205 = scmp.lt.s32.totalorder %s16, 1
      %s206 = scalar_select %p205, %s16, 1
      %s207 = smul.addr %s206, 8
      %s208 = scalar_lea.vmem %s2, %s207
      %p209 = pneg %p79
      %p210 = pneg %p76
      %p211 = scmp.lt.s32.totalorder %s16, 1
      %s212 = scalar_select %p211, %s16, 1
      %s213 = smul.addr %s212, 8
      %s214 = scalar_lea.vmem %s3, %s213
      %p215 = pneg %p105
      %p216 = pneg %p102
      %p217 = pneg %p126
      %p218 = pneg %p123
      %p219 = pneg %p152
      %p220 = pneg %p149
      %p221 = scmp.lt.s32.totalorder %s16, 1
      %s222 = scalar_select %p221, %s16, 1
      %s223 = smul.addr %s222, 8
      %s224 = scalar_lea.vmem %s5, %s223
      %p225 = scmp.lt.s32.totalorder %s16, 1
      %s226 = scalar_select %p225, %s16, 1
      %s227 = smul.addr %s226, 8
      %s228 = scalar_lea.vmem %s2, %s227
      %p229 = scmp.lt.s32.totalorder %s16, 1
      %s230 = scalar_select %p229, %s16, 1
      %s231 = smul.addr %s230, 8
      %s232 = scalar_lea.vmem %s3, %s231
      %p233 = scmp.lt.s32.totalorder %s16, 1
      %s234 = scalar_select %p233, %s16, 1
      %s235 = smul.addr %s234, 8
      %s236 = scalar_lea.vmem %s5, %s235
      %v237 = vld [vmem:[%s4] sm:$0x7]
      %v238 = vld [vmem:[%s4 + $0x8] sm:$0x7]
      %v239 = vld [vmem:[%s4 + $0x10] sm:$0x1]
      %v240 = vld [vmem:[%s4 + $0x18] sm:$0xff]
      %v241 = vld [vmem:[%s4 + $0x20] sm:$0xff]
      %v242 = vld [vmem:[%s4 + $0x28] sm:$0xff]
      %v243 = vld [vmem:[%s4 + $0x30] sm:$0xff]
      %v244 = vld [vmem:[%s4 + $0x38] sm:$0x1]
      %v245 = vld [vmem:[%s4 + $0x40] sm:$0xff]
      %v246 = vld [vmem:[%s4 + $0x48] sm:$0xff]
      %v247 = vld [vmem:[%s4 + $0x50] sm:$0xff]
      %v248 = vld [vmem:[%s4 + $0x58] sm:$0xff]
      %v249 = vld [vmem:[%s4 + $0x60] sm:$0x1]
      %v250 = vld [vmem:[%s4 + $0x68] sm:$0xff]
      %v251 = vld [vmem:[%s4 + $0x70] sm:$0xff]
      %v252 = vld [vmem:[%s4 + $0x78] sm:$0xff]
      %v253 = vld [vmem:[%s4 + $0x80] sm:$0xff]
      %v254 = vld [vmem:[%s4 + $0x88] sm:$0x1]
      %v255 = vld [vmem:[%s4 + $0x90] sm:$0xff]
      %v256 = vld [vmem:[%s4 + $0x98] sm:$0xff]
      %v257 = vld [vmem:[%s4 + $0xa0] sm:$0xff]
      %v258 = vld [vmem:[%s4 + $0xa8] sm:$0xff]
      %v259 = vld [vmem:[%s4 + $0xb0] sm:$0x1]
      %v260 = vld [vmem:[%s4 + $0xb8] sm:$0xff]
      %v261 = vld [vmem:[%s4 + $0xc0] sm:$0xff]
      %v262 = vld [vmem:[%s4 + $0xc8] sm:$0xff]
      %v263 = vld [vmem:[%s4 + $0xd0] sm:$0xff]
      %v264 = vld [vmem:[%s4 + $0xd8] sm:$0x1]
      %v265 = vld [vmem:[%s0] sm:$0xff]
      %v266 = vld [vmem:[%s0 + $0x8] sm:$0xff]
      %v267 = vld [vmem:[%s1] sm:$0xff]
      %v268 = vld [vmem:[%s1 + $0x8] sm:$0xff]
      %v269 = vld [vmem:[%s228] sm:$0xff]
      %vm270 = vcmask 23552
      %v272 = vsel %vm270, %v267, 0
      %v275 = vsel %vm270, %v268, 0
      %vm277 = vcmask 1042432
      %v279 = vsel %vm277, %v238, 0
      %281 = vmatprep.subr.mxu0 0.0
      %282 = vmatpush1.msra.mxu0 %v279
      %283 = vmatprep.subr.mxu0 0.0
      %284 = vmatpush1.msra.mxu0 0.0
      %285 = vmatprep.subr.mxu0 0.0
      %286 = vmatpush1.msra.mxu0 0.0
      %287 = vmatprep.subr.mxu0 0.0
      %288 = vmatpush1.msra.mxu0 0.0
      %289 = vmatprep.subr.mxu0 0.0
      %290 = vmatpush1.msra.mxu0 0.0
      %291 = vmatprep.subr.mxu0 0.0
      %292 = vmatpush1.msra.mxu0 0.0
      %293 = vmatprep.subr.mxu0 0.0
      %294 = vmatpush1.msra.mxu0 0.0
      %295 = vmatprep.subr.mxu0 0.0
      %296 = vmatpush1.msra.mxu0 0.0
      %297 = vmatprep.subr.mxu0 0.0
      %298 = vmatpush1.msra.mxu0 0.0
      %299 = vmatprep.subr.mxu0 0.0
      %300 = vmatpush1.msra.mxu0 0.0
      %301 = vmatprep.subr.mxu0 0.0
      %302 = vmatpush1.msra.mxu0 0.0
      %303 = vmatprep.subr.mxu0 0.0
      %304 = vmatpush1.msra.mxu0 0.0
      %305 = vmatprep.subr.mxu0 0.0
      %306 = vmatpush1.msra.mxu0 0.0
      %307 = vmatprep.subr.mxu0 0.0
      %308 = vmatpush1.msra.mxu0 0.0
      %309 = vmatprep.subr.mxu0 0.0
      %310 = vmatpush1.msra.mxu0 0.0
      %311 = vmatprep.subr.mxu0 0.0
      %312 = vmatpush1.msra.mxu0 0.0
      %313 = vmatprep.subr.mxu0 0.0
      %314 = vmatpush1.msra.mxu0 0.0
      %315 = vmatprep.subr.mxu0 0.0
      %316 = vmatpush1.msra.mxu0 0.0
      %317 = vmatprep.subr.mxu0 0.0
      %318 = vmatpush1.msra.mxu0 0.0
      %319 = vmatprep.subr.mxu0 0.0
      %320 = vmatpush1.msra.mxu0 0.0
      %321 = vmatprep.subr.mxu0 0.0
      %322 = vmatpush1.msra.mxu0 0.0
      %323 = vmatprep.subr.mxu0 0.0
      %324 = vmatpush1.msra.mxu0 0.0
      %325 = vmatprep.subr.mxu0 0.0
      %326 = vmatpush1.msra.mxu0 0.0
      %327 = vmatprep.subr.mxu0 0.0
      %328 = vmatpush1.msra.mxu0 0.0
      %329 = vmatprep.subr.mxu0 0.0
      %330 = vmatpush1.msra.mxu0 0.0
      %331 = vmatprep.subr.mxu0 0.0
      %332 = vmatpush1.msra.mxu0 0.0
      %333 = vmatprep.subr.mxu0 0.0
      %334 = vmatpush1.msra.mxu0 0.0
      %335 = vmatprep.subr.mxu0 0.0
      %336 = vmatpush1.msra.mxu0 0.0
      %337 = vmatprep.subr.mxu0 0.0
      %338 = vmatpush1.msra.mxu0 0.0
      %339 = vmatprep.subr.mxu0 0.0
      %340 = vmatpush1.msra.mxu0 0.0
      %341 = vmatprep.subr.mxu0 0.0
      %342 = vmatpush1.msra.mxu0 0.0
      %343 = vmatprep.subr.mxu0 0.0
      %344 = vmatpush1.msra.mxu0 0.0
      %345 = vmatprep.mubr.f32.mxu0 0.0
      %346 = vmatmul.mubr.f32.gmra.mrb[0].mxu0 %v272
      %v347 = vpop.f32.mrb[0].mxu0
      %v348 = vadd.f32 0.0, %v347
      %v349 = vpop.f32.mrb[0].mxu0
      %350 = vmatprep.mubr.f32.mxu0 0.0
      %351 = vmatmul.mubr.f32.gmra.mrb[0].mxu0 %v275
      %v352 = vpop.f32.mrb[0].mxu0
      %v353 = vadd.f32 0.0, %v352
      %v354 = vpop.f32.mrb[0].mxu0
      %355 = vdwg.mxu0
      %v357 = vsel %vm270, %v265, 0
      %v360 = vsel %vm270, %v266, 0
      %v363 = vsel %vm277, %v237, 0
      %365 = vmatprep.subr.mxu0 0.0
      %366 = vmatpush1.msra.mxu0 %v363
      %367 = vmatprep.subr.mxu0 0.0
      %368 = vmatpush1.msra.mxu0 0.0
      %369 = vmatprep.subr.mxu0 0.0
      %370 = vmatpush1.msra.mxu0 0.0
      %371 = vmatprep.subr.mxu0 0.0
      %372 = vmatpush1.msra.mxu0 0.0
      %373 = vmatprep.subr.mxu0 0.0
      %374 = vmatpush1.msra.mxu0 0.0
      %375 = vmatprep.subr.mxu0 0.0
      %376 = vmatpush1.msra.mxu0 0.0
      %377 = vmatprep.subr.mxu0 0.0
      %378 = vmatpush1.msra.mxu0 0.0
      %379 = vmatprep.subr.mxu0 0.0
      %380 = vmatpush1.msra.mxu0 0.0
      %381 = vmatprep.subr.mxu0 0.0
      %382 = vmatpush1.msra.mxu0 0.0
      %383 = vmatprep.subr.mxu0 0.0
      %384 = vmatpush1.msra.mxu0 0.0
      %385 = vmatprep.subr.mxu0 0.0
      %386 = vmatpush1.msra.mxu0 0.0
      %387 = vmatprep.subr.mxu0 0.0
      %388 = vmatpush1.msra.mxu0 0.0
      %389 = vmatprep.subr.mxu0 0.0
      %390 = vmatpush1.msra.mxu0 0.0
      %391 = vmatprep.subr.mxu0 0.0
      %392 = vmatpush1.msra.mxu0 0.0
      %393 = vmatprep.subr.mxu0 0.0
      %394 = vmatpush1.msra.mxu0 0.0
      %395 = vmatprep.subr.mxu0 0.0
      %396 = vmatpush1.msra.mxu0 0.0
      %397 = vmatprep.subr.mxu0 0.0
      %398 = vmatpush1.msra.mxu0 0.0
      %399 = vmatprep.subr.mxu0 0.0
      %400 = vmatpush1.msra.mxu0 0.0
      %401 = vmatprep.subr.mxu0 0.0
      %402 = vmatpush1.msra.mxu0 0.0
      %403 = vmatprep.subr.mxu0 0.0
      %404 = vmatpush1.msra.mxu0 0.0
      %405 = vmatprep.subr.mxu0 0.0
      %406 = vmatpush1.msra.mxu0 0.0
      %407 = vmatprep.subr.mxu0 0.0
      %408 = vmatpush1.msra.mxu0 0.0
      %409 = vmatprep.subr.mxu0 0.0
      %410 = vmatpush1.msra.mxu0 0.0
      %411 = vmatprep.subr.mxu0 0.0
      %412 = vmatpush1.msra.mxu0 0.0
      %413 = vmatprep.subr.mxu0 0.0
      %414 = vmatpush1.msra.mxu0 0.0
      %415 = vmatprep.subr.mxu0 0.0
      %416 = vmatpush1.msra.mxu0 0.0
      %417 = vmatprep.subr.mxu0 0.0
      %418 = vmatpush1.msra.mxu0 0.0
      %419 = vmatprep.subr.mxu0 0.0
      %420 = vmatpush1.msra.mxu0 0.0
      %421 = vmatprep.subr.mxu0 0.0
      %422 = vmatpush1.msra.mxu0 0.0
      %423 = vmatprep.subr.mxu0 0.0
      %424 = vmatpush1.msra.mxu0 0.0
      %425 = vmatprep.subr.mxu0 0.0
      %426 = vmatpush1.msra.mxu0 0.0
      %427 = vmatprep.subr.mxu0 0.0
      %428 = vmatpush1.msra.mxu0 0.0
      %429 = vmatprep.mubr.f32.mxu0 0.0
      %430 = vmatmul.mubr.f32.gmra.mrb[0].mxu0 %v357
      %v431 = vpop.f32.mrb[0].mxu0
      %v432 = vadd.f32 %v348, %v431
      %v433 = vpop.f32.mrb[0].mxu0
      %434 = vmatprep.mubr.f32.mxu0 0.0
      %435 = vmatmul.mubr.f32.gmra.mrb[0].mxu0 %v360
      %v436 = vpop.f32.mrb[0].mxu0
      %v437 = vadd.f32 %v353, %v436
      %v438 = vpop.f32.mrb[0].mxu0
      %439 = vdwg.mxu0
      %v440 = vlaneseq
      %v441 = vshrl.u32 %v440, 7
      %v442 = vsub.s32 0, %v441
      %v443 = vrot.slane %v239, %v442
      %v444 = vadd.f32 %v432, %v443
      %v445 = vadd.f32 %v437, %v443
      %v447 = vsel %vm270, %v269, 0
      %449 = vmatprep.subr.mxu0 0.0
      %450 = vmatpush1.msra.mxu0 %v279
      %451 = vmatprep.subr.mxu0 0.0
      %452 = vmatpush1.msra.mxu0 0.0
      %453 = vmatprep.subr.mxu0 0.0
      %454 = vmatpush1.msra.mxu0 0.0
      %455 = vmatprep.subr.mxu0 0.0
      %456 = vmatpush1.msra.mxu0 0.0
      %457 = vmatprep.subr.mxu0 0.0
      %458 = vmatpush1.msra.mxu0 0.0
      %459 = vmatprep.subr.mxu0 0.0
      %460 = vmatpush1.msra.mxu0 0.0
      %461 = vmatprep.subr.mxu0 0.0
      %462 = vmatpush1.msra.mxu0 0.0
      %463 = vmatprep.subr.mxu0 0.0
      %464 = vmatpush1.msra.mxu0 0.0
      %465 = vmatprep.subr.mxu0 0.0
      %466 = vmatpush1.msra.mxu0 0.0
      %467 = vmatprep.subr.mxu0 0.0
      %468 = vmatpush1.msra.mxu0 0.0
      %469 = vmatprep.subr.mxu0 0.0
      %470 = vmatpush1.msra.mxu0 0.0
      %471 = vmatprep.subr.mxu0 0.0
      %472 = vmatpush1.msra.mxu0 0.0
      %473 = vmatprep.subr.mxu0 0.0
      %474 = vmatpush1.msra.mxu0 0.0
      %475 = vmatprep.subr.mxu0 0.0
      %476 = vmatpush1.msra.mxu0 0.0
      %477 = vmatprep.subr.mxu0 0.0
      %478 = vmatpush1.msra.mxu0 0.0
      %479 = vmatprep.subr.mxu0 0.0
      %480 = vmatpush1.msra.mxu0 0.0
      %481 = vmatprep.subr.mxu0 0.0
      %482 = vmatpush1.msra.mxu0 0.0
      %483 = vmatprep.subr.mxu0 0.0
      %484 = vmatpush1.msra.mxu0 0.0
      %485 = vmatprep.subr.mxu0 0.0
      %486 = vmatpush1.msra.mxu0 0.0
      %487 = vmatprep.subr.mxu0 0.0
      %488 = vmatpush1.msra.mxu0 0.0
      %489 = vmatprep.subr.mxu0 0.0
      %490 = vmatpush1.msra.mxu0 0.0
      %491 = vmatprep.subr.mxu0 0.0
      %492 = vmatpush1.msra.mxu0 0.0
      %493 = vmatprep.subr.mxu0 0.0
      %494 = vmatpush1.msra.mxu0 0.0
      %495 = vmatprep.subr.mxu0 0.0
      %496 = vmatpush1.msra.mxu0 0.0
      %497 = vmatprep.subr.mxu0 0.0
      %498 = vmatpush1.msra.mxu0 0.0
      %499 = vmatprep.subr.mxu0 0.0
      %500 = vmatpush1.msra.mxu0 0.0
      %501 = vmatprep.subr.mxu0 0.0
      %502 = vmatpush1.msra.mxu0 0.0
      %503 = vmatprep.subr.mxu0 0.0
      %504 = vmatpush1.msra.mxu0 0.0
      %505 = vmatprep.subr.mxu0 0.0
      %506 = vmatpush1.msra.mxu0 0.0
      %507 = vmatprep.subr.mxu0 0.0
      %508 = vmatpush1.msra.mxu0 0.0
      %509 = vmatprep.subr.mxu0 0.0
      %510 = vmatpush1.msra.mxu0 0.0
      %511 = vmatprep.subr.mxu0 0.0
      %512 = vmatpush1.msra.mxu0 0.0
      %513 = vmatprep.mubr.f32.mxu0 0.0
      %514 = vmatmul.mubr.f32.gmra.mrb[0].mxu0 %v447
      %v515 = vpop.f32.mrb[0].mxu0
      %v516 = vadd.f32 0.0, %v515
      %v517 = vpop.f32.mrb[0].mxu0
      %518 = vdwg.mxu0
      %v520 = vcombine.high %v516, %v516
      %v522 = vunpack.c.l.s4 1966171168
      %v523 = vunpack.c.0.s8 %v522
      %v524 = vlaneseq
      %v525 = vshrl.u32 %v524, 7
      %v526 = vsub.s32 %v523, %v525
      %v527 = vrot.slane %v516, %v526
      %v529 = vunpack.c.l.s4 1966171168
      %v530 = vunpack.c.0.s8 %v529
      %v531 = vlaneseq
      %v532 = vshrl.u32 %v531, 7
      %v533 = vsub.s32 %v530, %v532
      %v534 = vrot.slane %v520, %v533
      %v535 = vcombine.high %v527, %v527
      %v536 = vcombine.high %v534, %v534
      %v538 = vunpack.c.l.s4 1966171168
      %v539 = vunpack.c.0.s8 %v538
      %v540 = vlaneseq
      %v541 = vshrl.u32 %v540, 7
      %v542 = vsub.s32 %v539, %v541
      %v543 = vrot.slane %v527, %v542
      %v545 = vunpack.c.l.s4 1966171168
      %v546 = vunpack.c.0.s8 %v545
      %v547 = vlaneseq
      %v548 = vshrl.u32 %v547, 7
      %v549 = vsub.s32 %v546, %v548
      %v550 = vrot.slane %v534, %v549
      %v552 = vunpack.c.l.s4 1966171168
      %v553 = vunpack.c.0.s8 %v552
      %v554 = vlaneseq
      %v555 = vshrl.u32 %v554, 7
      %v556 = vsub.s32 %v553, %v555
      %v557 = vrot.slane %v535, %v556
      %v559 = vunpack.c.l.s4 1966171168
      %v560 = vunpack.c.0.s8 %v559
      %v561 = vlaneseq
      %v562 = vshrl.u32 %v561, 7
      %v563 = vsub.s32 %v560, %v562
      %v564 = vrot.slane %v536, %v563
      %v565 = vcombine.high %v543, %v543
      %v566 = vcombine.high %v550, %v550
      %v567 = vcombine.high %v557, %v557
      %v568 = vcombine.high %v564, %v564
      %v569 = vlaneseq
      %v570 = vshrl.u32 %v569, 7
      %v571 = vsub.s32 0, %v570
      %v572 = vrot.slane %v543, %v571
      %v573 = vlaneseq
      %v574 = vshrl.u32 %v573, 7
      %v575 = vsub.s32 0, %v574
      %v576 = vrot.slane %v557, %v575
      %v577 = vlaneseq
      %v578 = vshrl.u32 %v577, 7
      %v579 = vsub.s32 0, %v578
      %v580 = vrot.slane %v565, %v579
      %v581 = vlaneseq
      %v582 = vshrl.u32 %v581, 7
      %v583 = vsub.s32 0, %v582
      %v584 = vrot.slane %v567, %v583
      %v585 = vlaneseq
      %v586 = vshrl.u32 %v585, 7
      %v587 = vsub.s32 0, %v586
      %v588 = vrot.slane %v550, %v587
      %v589 = vlaneseq
      %v590 = vshrl.u32 %v589, 7
      %v591 = vsub.s32 0, %v590
      %v592 = vrot.slane %v564, %v591
      %v593 = vlaneseq
      %v594 = vshrl.u32 %v593, 7
      %v595 = vsub.s32 0, %v594
      %v596 = vrot.slane %v566, %v595
      %v597 = vlaneseq
      %v598 = vshrl.u32 %v597, 7
      %v599 = vsub.s32 0, %v598
      %v600 = vrot.slane %v568, %v599
      %v609 = vsub.f32 %v444, %v572
      %v610 = vsub.f32 %v445, %v572
      %v611 = vsub.f32 %v444, %v576
      %v612 = vsub.f32 %v445, %v576
      %v613 = vsub.f32 %v444, %v580
      %v614 = vsub.f32 %v445, %v580
      %v615 = vsub.f32 %v444, %v584
      %v616 = vsub.f32 %v445, %v584
      %v617 = vsub.f32 %v444, %v588
      %v618 = vsub.f32 %v445, %v588
      %v619 = vsub.f32 %v444, %v592
      %v620 = vsub.f32 %v445, %v592
      %v621 = vsub.f32 %v444, %v596
      %v622 = vsub.f32 %v445, %v596
      %v623 = vsub.f32 %v444, %v600
      %v624 = vsub.f32 %v445, %v600
      %vm625 = vcmp.gt.f32.partialorder %v609, 0.0
      %vm626 = vcmp.gt.f32.partialorder %v610, 0.0
      %vm627 = vcmp.gt.f32.partialorder %v611, 0.0
      %vm628 = vcmp.gt.f32.partialorder %v612, 0.0
      %vm629 = vcmp.gt.f32.partialorder %v613, 0.0
      %vm630 = vcmp.gt.f32.partialorder %v614, 0.0
      %vm631 = vcmp.gt.f32.partialorder %v615, 0.0
      %vm632 = vcmp.gt.f32.partialorder %v616, 0.0
      %vm633 = vcmp.gt.f32.partialorder %v617, 0.0
      %vm634 = vcmp.gt.f32.partialorder %v618, 0.0
      %vm635 = vcmp.gt.f32.partialorder %v619, 0.0
      %vm636 = vcmp.gt.f32.partialorder %v620, 0.0
      %vm637 = vcmp.gt.f32.partialorder %v621, 0.0
      %vm638 = vcmp.gt.f32.partialorder %v622, 0.0
      %vm639 = vcmp.gt.f32.partialorder %v623, 0.0
      %vm640 = vcmp.gt.f32.partialorder %v624, 0.0
      %v641 = vmin.f32 %v609, 0.0
      %v642 = vmin.f32 %v610, 0.0
      %v643 = vmin.f32 %v611, 0.0
      %v644 = vmin.f32 %v612, 0.0
      %v645 = vmin.f32 %v613, 0.0
      %v646 = vmin.f32 %v614, 0.0
      %v647 = vmin.f32 %v615, 0.0
      %v648 = vmin.f32 %v616, 0.0
      %v649 = vmin.f32 %v617, 0.0
      %v650 = vmin.f32 %v618, 0.0
      %v651 = vmin.f32 %v619, 0.0
      %v652 = vmin.f32 %v620, 0.0
      %v653 = vmin.f32 %v621, 0.0
      %v654 = vmin.f32 %v622, 0.0
      %v655 = vmin.f32 %v623, 0.0
      %v656 = vmin.f32 %v624, 0.0
      %v657 = vmul.f32 %v641, 1.442695
      %v658 = vpow.pop %v657
      %v659 = vmul.f32 %v642, 1.442695
      %v660 = vpow.pop %v659
      %v661 = vmul.f32 %v643, 1.442695
      %v662 = vpow.pop %v661
      %v663 = vmul.f32 %v644, 1.442695
      %v664 = vpow.pop %v663
      %v665 = vmul.f32 %v645, 1.442695
      %v666 = vpow.pop %v665
      %v667 = vmul.f32 %v646, 1.442695
      %v668 = vpow.pop %v667
      %v669 = vmul.f32 %v647, 1.442695
      %v670 = vpow.pop %v669
      %v671 = vmul.f32 %v648, 1.442695
      %v672 = vpow.pop %v671
      %v673 = vmul.f32 %v649, 1.442695
      %v674 = vpow.pop %v673
      %v675 = vmul.f32 %v650, 1.442695
      %v676 = vpow.pop %v675
      %v677 = vmul.f32 %v651, 1.442695
      %v678 = vpow.pop %v677
      %v679 = vmul.f32 %v652, 1.442695
      %v680 = vpow.pop %v679
      %v681 = vmul.f32 %v653, 1.442695
      %v682 = vpow.pop %v681
      %v683 = vmul.f32 %v654, 1.442695
      %v684 = vpow.pop %v683
      %v685 = vmul.f32 %v655, 1.442695
      %v686 = vpow.pop %v685
      %v687 = vmul.f32 %v656, 1.442695
      %v688 = vpow.pop %v687
      %v689 = vsub.f32 %v658, 1.0
      %v690 = vsub.f32 %v660, 1.0
      %v691 = vsub.f32 %v662, 1.0
      %v692 = vsub.f32 %v664, 1.0
      %v693 = vsub.f32 %v666, 1.0
      %v694 = vsub.f32 %v668, 1.0
      %v695 = vsub.f32 %v670, 1.0
      %v696 = vsub.f32 %v672, 1.0
      %v697 = vsub.f32 %v674, 1.0
      %v698 = vsub.f32 %v676, 1.0
      %v699 = vsub.f32 %v678, 1.0
      %v700 = vsub.f32 %v680, 1.0
      %v701 = vsub.f32 %v682, 1.0
      %v702 = vsub.f32 %v684, 1.0
      %v703 = vsub.f32 %v686, 1.0
      %v704 = vsub.f32 %v688, 1.0
      %v705 = vsel %vm625, %v609, %v689
      %v706 = vsel %vm626, %v610, %v690
      %v707 = vsel %vm627, %v611, %v691
      %v708 = vsel %vm628, %v612, %v692
      %v709 = vsel %vm629, %v613, %v693
      %v710 = vsel %vm630, %v614, %v694
      %v711 = vsel %vm631, %v615, %v695
      %v712 = vsel %vm632, %v616, %v696
      %v713 = vsel %vm633, %v617, %v697
      %v714 = vsel %vm634, %v618, %v698
      %v715 = vsel %vm635, %v619, %v699
      %v716 = vsel %vm636, %v620, %v700
      %v717 = vsel %vm637, %v621, %v701
      %v718 = vsel %vm638, %v622, %v702
      %v719 = vsel %vm639, %v623, %v703
      %v720 = vsel %vm640, %v624, %v704
      %v721 = vlaneseq
      %v722 = vshrl.u32 %v721, 7
      %v723 = vsub.s32 0, %v722
      %v724 = vrot.slane %v244, %v723
      %vm725 = vcmask 261120
      %v727 = vsel %vm725, %v705, 0
      %v730 = vsel %vm725, %v706, 0
      %v733 = vsel %vm725, %v707, 0
      %v736 = vsel %vm725, %v708, 0
      %v739 = vsel %vm725, %v709, 0
      %v742 = vsel %vm725, %v710, 0
      %v745 = vsel %vm725, %v711, 0
      %v748 = vsel %vm725, %v712, 0
      %v751 = vsel %vm725, %v713, 0
      %v754 = vsel %vm725, %v714, 0
      %v757 = vsel %vm725, %v715, 0
      %v760 = vsel %vm725, %v716, 0
      %v763 = vsel %vm725, %v717, 0
      %v766 = vsel %vm725, %v718, 0
      %v769 = vsel %vm725, %v719, 0
      %v772 = vsel %vm725, %v720, 0
      %774 = vmatprep.subr.mxu0 0.0
      %775 = vmatpush1.msra.mxu0 %v240
      %776 = vmatprep.subr.mxu0 0.0
      %777 = vmatpush1.msra.mxu0 %v241
      %778 = vmatprep.subr.mxu0 0.0
      %779 = vmatpush1.msra.mxu0 %v242
      %780 = vmatprep.subr.mxu0 0.0
      %781 = vmatpush1.msra.mxu0 %v243
      %782 = vmatprep.subr.mxu0 0.0
      %783 = vmatpush1.msra.mxu0 0.0
      %784 = vmatprep.subr.mxu0 0.0
      %785 = vmatpush1.msra.mxu0 0.0
      %786 = vmatprep.subr.mxu0 0.0
      %787 = vmatpush1.msra.mxu0 0.0
      %788 = vmatprep.subr.mxu0 0.0
      %789 = vmatpush1.msra.mxu0 0.0
      %790 = vmatprep.subr.mxu0 0.0
      %791 = vmatpush1.msra.mxu0 0.0
      %792 = vmatprep.subr.mxu0 0.0
      %793 = vmatpush1.msra.mxu0 0.0
      %794 = vmatprep.subr.mxu0 0.0
      %795 = vmatpush1.msra.mxu0 0.0
      %796 = vmatprep.subr.mxu0 0.0
      %797 = vmatpush1.msra.mxu0 0.0
      %798 = vmatprep.subr.mxu0 0.0
      %799 = vmatpush1.msra.mxu0 0.0
      %800 = vmatprep.subr.mxu0 0.0
      %801 = vmatpush1.msra.mxu0 0.0
      %802 = vmatprep.subr.mxu0 0.0
      %803 = vmatpush1.msra.mxu0 0.0
      %804 = vmatprep.subr.mxu0 0.0
      %805 = vmatpush1.msra.mxu0 0.0
      %806 = vmatprep.subr.mxu0 0.0
      %807 = vmatpush1.msra.mxu0 0.0
      %808 = vmatprep.subr.mxu0 0.0
      %809 = vmatpush1.msra.mxu0 0.0
      %810 = vmatprep.subr.mxu0 0.0
      %811 = vmatpush1.msra.mxu0 0.0
      %812 = vmatprep.subr.mxu0 0.0
      %813 = vmatpush1.msra.mxu0 0.0
      %814 = vmatprep.subr.mxu0 0.0
      %815 = vmatpush1.msra.mxu0 0.0
      %816 = vmatprep.subr.mxu0 0.0
      %817 = vmatpush1.msra.mxu0 0.0
      %818 = vmatprep.subr.mxu0 0.0
      %819 = vmatpush1.msra.mxu0 0.0
      %820 = vmatprep.subr.mxu0 0.0
      %821 = vmatpush1.msra.mxu0 0.0
      %822 = vmatprep.subr.mxu0 0.0
      %823 = vmatpush1.msra.mxu0 0.0
      %824 = vmatprep.subr.mxu0 0.0
      %825 = vmatpush1.msra.mxu0 0.0
      %826 = vmatprep.subr.mxu0 0.0
      %827 = vmatpush1.msra.mxu0 0.0
      %828 = vmatprep.subr.mxu0 0.0
      %829 = vmatpush1.msra.mxu0 0.0
      %830 = vmatprep.subr.mxu0 0.0
      %831 = vmatpush1.msra.mxu0 0.0
      %832 = vmatprep.subr.mxu0 0.0
      %833 = vmatpush1.msra.mxu0 0.0
      %834 = vmatprep.subr.mxu0 0.0
      %835 = vmatpush1.msra.mxu0 0.0
      %836 = vmatprep.subr.mxu0 0.0
      %837 = vmatpush1.msra.mxu0 0.0
      %838 = vmatprep.mubr.f32.mxu0 0.0
      %839 = vmatmul.mubr.f32.gmra.mrb[0].mxu0 %v727
      %v840 = vpop.f32.mrb[0].mxu0
      %v841 = vadd.f32 %v724, %v840
      %v842 = vpop.f32.mrb[0].mxu0
      %843 = vmatprep.mubr.f32.mxu0 0.0
      %844 = vmatmul.mubr.f32.gmra.mrb[0].mxu0 %v730
      %v845 = vpop.f32.mrb[0].mxu0
      %v846 = vadd.f32 %v724, %v845
      %v847 = vpop.f32.mrb[0].mxu0
      %848 = vmatprep.mubr.f32.mxu0 0.0
      %849 = vmatmul.mubr.f32.gmra.mrb[0].mxu0 %v733
      %v850 = vpop.f32.mrb[0].mxu0
      %v851 = vadd.f32 %v724, %v850
      %v852 = vpop.f32.mrb[0].mxu0
      %853 = vmatprep.mubr.f32.mxu0 0.0
      %854 = vmatmul.mubr.f32.gmra.mrb[0].mxu0 %v736
      %v855 = vpop.f32.mrb[0].mxu0
      %v856 = vadd.f32 %v724, %v855
      %v857 = vpop.f32.mrb[0].mxu0
      %858 = vmatprep.mubr.f32.mxu0 0.0
      %859 = vmatmul.mubr.f32.gmra.mrb[0].mxu0 %v739
      %v860 = vpop.f32.mrb[0].mxu0
      %v861 = vadd.f32 %v724, %v860
      %v862 = vpop.f32.mrb[0].mxu0
      %863 = vmatprep.mubr.f32.mxu0 0.0
      %864 = vmatmul.mubr.f32.gmra.mrb[0].mxu0 %v742
      %v865 = vpop.f32.mrb[0].mxu0
      %v866 = vadd.f32 %v724, %v865
      %v867 = vpop.f32.mrb[0].mxu0
      %868 = vmatprep.mubr.f32.mxu0 0.0
      %869 = vmatmul.mubr.f32.gmra.mrb[0].mxu0 %v745
      %v870 = vpop.f32.mrb[0].mxu0
      %v871 = vadd.f32 %v724, %v870
      %v872 = vpop.f32.mrb[0].mxu0
      %873 = vmatprep.mubr.f32.mxu0 0.0
      %874 = vmatmul.mubr.f32.gmra.mrb[0].mxu0 %v748
      %v875 = vpop.f32.mrb[0].mxu0
      %v876 = vadd.f32 %v724, %v875
      %v877 = vpop.f32.mrb[0].mxu0
      %878 = vmatprep.mubr.f32.mxu0 0.0
      %879 = vmatmul.mubr.f32.gmra.mrb[0].mxu0 %v751
      %v880 = vpop.f32.mrb[0].mxu0
      %v881 = vadd.f32 %v724, %v880
      %v882 = vpop.f32.mrb[0].mxu0
      %883 = vmatprep.mubr.f32.mxu0 0.0
      %884 = vmatmul.mubr.f32.gmra.mrb[0].mxu0 %v754
      %v885 = vpop.f32.mrb[0].mxu0
      %v886 = vadd.f32 %v724, %v885
      %v887 = vpop.f32.mrb[0].mxu0
      %888 = vmatprep.mubr.f32.mxu0 0.0
      %889 = vmatmul.mubr.f32.gmra.mrb[0].mxu0 %v757
      %v890 = vpop.f32.mrb[0].mxu0
      %v891 = vadd.f32 %v724, %v890
      %v892 = vpop.f32.mrb[0].mxu0
      %893 = vmatprep.mubr.f32.mxu0 0.0
      %894 = vmatmul.mubr.f32.gmra.mrb[0].mxu0 %v760
      %v895 = vpop.f32.mrb[0].mxu0
      %v896 = vadd.f32 %v724, %v895
      %v897 = vpop.f32.mrb[0].mxu0
      %898 = vmatprep.mubr.f32.mxu0 0.0
      %899 = vmatmul.mubr.f32.gmra.mrb[0].mxu0 %v763
      %v900 = vpop.f32.mrb[0].mxu0
      %v901 = vadd.f32 %v724, %v900
      %v902 = vpop.f32.mrb[0].mxu0
      %903 = vmatprep.mubr.f32.mxu0 0.0
      %904 = vmatmul.mubr.f32.gmra.mrb[0].mxu0 %v766
      %v905 = vpop.f32.mrb[0].mxu0
      %v906 = vadd.f32 %v724, %v905
      %v907 = vpop.f32.mrb[0].mxu0
      %908 = vmatprep.mubr.f32.mxu0 0.0
      %909 = vmatmul.mubr.f32.gmra.mrb[0].mxu0 %v769
      %v910 = vpop.f32.mrb[0].mxu0
      %v911 = vadd.f32 %v724, %v910
      %v912 = vpop.f32.mrb[0].mxu0
      %913 = vmatprep.mubr.f32.mxu0 0.0
      %914 = vmatmul.mubr.f32.gmra.mrb[0].mxu0 %v772
      %v915 = vpop.f32.mrb[0].mxu0
      %v916 = vadd.f32 %v724, %v915
      %v917 = vpop.f32.mrb[0].mxu0
      %918 = vdwg.mxu0
      %vm919 = vcmp.gt.f32.partialorder %v841, 0.0
      %vm920 = vcmp.gt.f32.partialorder %v846, 0.0
      %vm921 = vcmp.gt.f32.partialorder %v851, 0.0
      %vm922 = vcmp.gt.f32.partialorder %v856, 0.0
      %vm923 = vcmp.gt.f32.partialorder %v861, 0.0
      %vm924 = vcmp.gt.f32.partialorder %v866, 0.0
      %vm925 = vcmp.gt.f32.partialorder %v871, 0.0
      %vm926 = vcmp.gt.f32.partialorder %v876, 0.0
      %vm927 = vcmp.gt.f32.partialorder %v881, 0.0
      %vm928 = vcmp.gt.f32.partialorder %v886, 0.0
      %vm929 = vcmp.gt.f32.partialorder %v891, 0.0
      %vm930 = vcmp.gt.f32.partialorder %v896, 0.0
      %vm931 = vcmp.gt.f32.partialorder %v901, 0.0
      %vm932 = vcmp.gt.f32.partialorder %v906, 0.0
      %vm933 = vcmp.gt.f32.partialorder %v911, 0.0
      %vm934 = vcmp.gt.f32.partialorder %v916, 0.0
      %v935 = vmin.f32 %v841, 0.0
      %v936 = vmin.f32 %v846, 0.0
      %v937 = vmin.f32 %v851, 0.0
      %v938 = vmin.f32 %v856, 0.0
      %v939 = vmin.f32 %v861, 0.0
      %v940 = vmin.f32 %v866, 0.0
      %v941 = vmin.f32 %v871, 0.0
      %v942 = vmin.f32 %v876, 0.0
      %v943 = vmin.f32 %v881, 0.0
      %v944 = vmin.f32 %v886, 0.0
      %v945 = vmin.f32 %v891, 0.0
      %v946 = vmin.f32 %v896, 0.0
      %v947 = vmin.f32 %v901, 0.0
      %v948 = vmin.f32 %v906, 0.0
      %v949 = vmin.f32 %v911, 0.0
      %v950 = vmin.f32 %v916, 0.0
      %v951 = vmul.f32 %v935, 1.442695
      %v952 = vpow.pop %v951
      %v953 = vmul.f32 %v936, 1.442695
      %v954 = vpow.pop %v953
      %v955 = vmul.f32 %v937, 1.442695
      %v956 = vpow.pop %v955
      %v957 = vmul.f32 %v938, 1.442695
      %v958 = vpow.pop %v957
      %v959 = vmul.f32 %v939, 1.442695
      %v960 = vpow.pop %v959
      %v961 = vmul.f32 %v940, 1.442695
      %v962 = vpow.pop %v961
      %v963 = vmul.f32 %v941, 1.442695
      %v964 = vpow.pop %v963
      %v965 = vmul.f32 %v942, 1.442695
      %v966 = vpow.pop %v965
      %v967 = vmul.f32 %v943, 1.442695
      %v968 = vpow.pop %v967
      %v969 = vmul.f32 %v944, 1.442695
      %v970 = vpow.pop %v969
      %v971 = vmul.f32 %v945, 1.442695
      %v972 = vpow.pop %v971
      %v973 = vmul.f32 %v946, 1.442695
      %v974 = vpow.pop %v973
      %v975 = vmul.f32 %v947, 1.442695
      %v976 = vpow.pop %v975
      %v977 = vmul.f32 %v948, 1.442695
      %v978 = vpow.pop %v977
      %v979 = vmul.f32 %v949, 1.442695
      %v980 = vpow.pop %v979
      %v981 = vmul.f32 %v950, 1.442695
      %v982 = vpow.pop %v981
      %v983 = vsub.f32 %v952, 1.0
      %v984 = vsub.f32 %v954, 1.0
      %v985 = vsub.f32 %v956, 1.0
      %v986 = vsub.f32 %v958, 1.0
      %v987 = vsub.f32 %v960, 1.0
      %v988 = vsub.f32 %v962, 1.0
      %v989 = vsub.f32 %v964, 1.0
      %v990 = vsub.f32 %v966, 1.0
      %v991 = vsub.f32 %v968, 1.0
      %v992 = vsub.f32 %v970, 1.0
      %v993 = vsub.f32 %v972, 1.0
      %v994 = vsub.f32 %v974, 1.0
      %v995 = vsub.f32 %v976, 1.0
      %v996 = vsub.f32 %v978, 1.0
      %v997 = vsub.f32 %v980, 1.0
      %v998 = vsub.f32 %v982, 1.0
      %v999 = vsel %vm919, %v841, %v983
      %v1000 = vsel %vm920, %v846, %v984
      %v1001 = vsel %vm921, %v851, %v985
      %v1002 = vsel %vm922, %v856, %v986
      %v1003 = vsel %vm923, %v861, %v987
      %v1004 = vsel %vm924, %v866, %v988
      %v1005 = vsel %vm925, %v871, %v989
      %v1006 = vsel %vm926, %v876, %v990
      %v1007 = vsel %vm927, %v881, %v991
      %v1008 = vsel %vm928, %v886, %v992
      %v1009 = vsel %vm929, %v891, %v993
      %v1010 = vsel %vm930, %v896, %v994
      %v1011 = vsel %vm931, %v901, %v995
      %v1012 = vsel %vm932, %v906, %v996
      %v1013 = vsel %vm933, %v911, %v997
      %v1014 = vsel %vm934, %v916, %v998
      %v1015 = vlaneseq
      %v1016 = vshrl.u32 %v1015, 7
      %v1017 = vsub.s32 0, %v1016
      %v1018 = vrot.slane %v249, %v1017
      %v1020 = vsel %vm725, %v999, 0
      %v1023 = vsel %vm725, %v1000, 0
      %v1026 = vsel %vm725, %v1001, 0
      %v1029 = vsel %vm725, %v1002, 0
      %v1032 = vsel %vm725, %v1003, 0
      %v1035 = vsel %vm725, %v1004, 0
      %v1038 = vsel %vm725, %v1005, 0
      %v1041 = vsel %vm725, %v1006, 0
      %v1044 = vsel %vm725, %v1007, 0
      %v1047 = vsel %vm725, %v1008, 0
      %v1050 = vsel %vm725, %v1009, 0
      %v1053 = vsel %vm725, %v1010, 0
      %v1056 = vsel %vm725, %v1011, 0
      %v1059 = vsel %vm725, %v1012, 0
      %v1062 = vsel %vm725, %v1013, 0
      %v1065 = vsel %vm725, %v1014, 0
      %1067 = vmatprep.subr.mxu0 0.0
      %1068 = vmatpush1.msra.mxu0 %v245
      %1069 = vmatprep.subr.mxu0 0.0
      %1070 = vmatpush1.msra.mxu0 %v246
      %1071 = vmatprep.subr.mxu0 0.0
      %1072 = vmatpush1.msra.mxu0 %v247
      %1073 = vmatprep.subr.mxu0 0.0
      %1074 = vmatpush1.msra.mxu0 %v248
      %1075 = vmatprep.subr.mxu0 0.0
      %1076 = vmatpush1.msra.mxu0 0.0
      %1077 = vmatprep.subr.mxu0 0.0
      %1078 = vmatpush1.msra.mxu0 0.0
      %1079 = vmatprep.subr.mxu0 0.0
      %1080 = vmatpush1.msra.mxu0 0.0
      %1081 = vmatprep.subr.mxu0 0.0
      %1082 = vmatpush1.msra.mxu0 0.0
      %1083 = vmatprep.subr.mxu0 0.0
      %1084 = vmatpush1.msra.mxu0 0.0
      %1085 = vmatprep.subr.mxu0 0.0
      %1086 = vmatpush1.msra.mxu0 0.0
      %1087 = vmatprep.subr.mxu0 0.0
      %1088 = vmatpush1.msra.mxu0 0.0
      %1089 = vmatprep.subr.mxu0 0.0
      %1090 = vmatpush1.msra.mxu0 0.0
      %1091 = vmatprep.subr.mxu0 0.0
      %1092 = vmatpush1.msra.mxu0 0.0
      %1093 = vmatprep.subr.mxu0 0.0
      %1094 = vmatpush1.msra.mxu0 0.0
      %1095 = vmatprep.subr.mxu0 0.0
      %1096 = vmatpush1.msra.mxu0 0.0
      %1097 = vmatprep.subr.mxu0 0.0
      %1098 = vmatpush1.msra.mxu0 0.0
      %1099 = vmatprep.subr.mxu0 0.0
      %1100 = vmatpush1.msra.mxu0 0.0
      %1101 = vmatprep.subr.mxu0 0.0
      %1102 = vmatpush1.msra.mxu0 0.0
      %1103 = vmatprep.subr.mxu0 0.0
      %1104 = vmatpush1.msra.mxu0 0.0
      %1105 = vmatprep.subr.mxu0 0.0
      %1106 = vmatpush1.msra.mxu0 0.0
      %1107 = vmatprep.subr.mxu0 0.0
      %1108 = vmatpush1.msra.mxu0 0.0
      %1109 = vmatprep.subr.mxu0 0.0
      %1110 = vmatpush1.msra.mxu0 0.0
      %1111 = vmatprep.subr.mxu0 0.0
      %1112 = vmatpush1.msra.mxu0 0.0
      %1113 = vmatprep.subr.mxu0 0.0
      %1114 = vmatpush1.msra.mxu0 0.0
      %1115 = vmatprep.subr.mxu0 0.0
      %1116 = vmatpush1.msra.mxu0 0.0
      %1117 = vmatprep.subr.mxu0 0.0
      %1118 = vmatpush1.msra.mxu0 0.0
      %1119 = vmatprep.subr.mxu0 0.0
      %1120 = vmatpush1.msra.mxu0 0.0
      %1121 = vmatprep.subr.mxu0 0.0
      %1122 = vmatpush1.msra.mxu0 0.0
      %1123 = vmatprep.subr.mxu0 0.0
      %1124 = vmatpush1.msra.mxu0 0.0
      %1125 = vmatprep.subr.mxu0 0.0
      %1126 = vmatpush1.msra.mxu0 0.0
      %1127 = vmatprep.subr.mxu0 0.0
      %1128 = vmatpush1.msra.mxu0 0.0
      %1129 = vmatprep.subr.mxu0 0.0
      %1130 = vmatpush1.msra.mxu0 0.0
      %1131 = vmatprep.mubr.f32.mxu0 0.0
      %1132 = vmatmul.mubr.f32.gmra.mrb[0].mxu0 %v1020
      %v1133 = vpop.f32.mrb[0].mxu0
      %v1134 = vadd.f32 %v1018, %v1133
      %v1135 = vpop.f32.mrb[0].mxu0
      %1136 = vmatprep.mubr.f32.mxu0 0.0
      %1137 = vmatmul.mubr.f32.gmra.mrb[0].mxu0 %v1023
      %v1138 = vpop.f32.mrb[0].mxu0
      %v1139 = vadd.f32 %v1018, %v1138
      %v1140 = vpop.f32.mrb[0].mxu0
      %1141 = vmatprep.mubr.f32.mxu0 0.0
      %1142 = vmatmul.mubr.f32.gmra.mrb[0].mxu0 %v1026
      %v1143 = vpop.f32.mrb[0].mxu0
      %v1144 = vadd.f32 %v1018, %v1143
      %v1145 = vpop.f32.mrb[0].mxu0
      %1146 = vmatprep.mubr.f32.mxu0 0.0
      %1147 = vmatmul.mubr.f32.gmra.mrb[0].mxu0 %v1029
      %v1148 = vpop.f32.mrb[0].mxu0
      %v1149 = vadd.f32 %v1018, %v1148
      %v1150 = vpop.f32.mrb[0].mxu0
      %1151 = vmatprep.mubr.f32.mxu0 0.0
      %1152 = vmatmul.mubr.f32.gmra.mrb[0].mxu0 %v1032
      %v1153 = vpop.f32.mrb[0].mxu0
      %v1154 = vadd.f32 %v1018, %v1153
      %v1155 = vpop.f32.mrb[0].mxu0
      %1156 = vmatprep.mubr.f32.mxu0 0.0
      %1157 = vmatmul.mubr.f32.gmra.mrb[0].mxu0 %v1035
      %v1158 = vpop.f32.mrb[0].mxu0
      %v1159 = vadd.f32 %v1018, %v1158
      %v1160 = vpop.f32.mrb[0].mxu0
      %1161 = vmatprep.mubr.f32.mxu0 0.0
      %1162 = vmatmul.mubr.f32.gmra.mrb[0].mxu0 %v1038
      %v1163 = vpop.f32.mrb[0].mxu0
      %v1164 = vadd.f32 %v1018, %v1163
      %v1165 = vpop.f32.mrb[0].mxu0
      %1166 = vmatprep.mubr.f32.mxu0 0.0
      %1167 = vmatmul.mubr.f32.gmra.mrb[0].mxu0 %v1041
      %v1168 = vpop.f32.mrb[0].mxu0
      %v1169 = vadd.f32 %v1018, %v1168
      %v1170 = vpop.f32.mrb[0].mxu0
      %1171 = vmatprep.mubr.f32.mxu0 0.0
      %1172 = vmatmul.mubr.f32.gmra.mrb[0].mxu0 %v1044
      %v1173 = vpop.f32.mrb[0].mxu0
      %v1174 = vadd.f32 %v1018, %v1173
      %v1175 = vpop.f32.mrb[0].mxu0
      %1176 = vmatprep.mubr.f32.mxu0 0.0
      %1177 = vmatmul.mubr.f32.gmra.mrb[0].mxu0 %v1047
      %v1178 = vpop.f32.mrb[0].mxu0
      %v1179 = vadd.f32 %v1018, %v1178
      %v1180 = vpop.f32.mrb[0].mxu0
      %1181 = vmatprep.mubr.f32.mxu0 0.0
      %1182 = vmatmul.mubr.f32.gmra.mrb[0].mxu0 %v1050
      %v1183 = vpop.f32.mrb[0].mxu0
      %v1184 = vadd.f32 %v1018, %v1183
      %v1185 = vpop.f32.mrb[0].mxu0
      %1186 = vmatprep.mubr.f32.mxu0 0.0
      %1187 = vmatmul.mubr.f32.gmra.mrb[0].mxu0 %v1053
      %v1188 = vpop.f32.mrb[0].mxu0
      %v1189 = vadd.f32 %v1018, %v1188
      %v1190 = vpop.f32.mrb[0].mxu0
      %1191 = vmatprep.mubr.f32.mxu0 0.0
      %1192 = vmatmul.mubr.f32.gmra.mrb[0].mxu0 %v1056
      %v1193 = vpop.f32.mrb[0].mxu0
      %v1194 = vadd.f32 %v1018, %v1193
      %v1195 = vpop.f32.mrb[0].mxu0
      %1196 = vmatprep.mubr.f32.mxu0 0.0
      %1197 = vmatmul.mubr.f32.gmra.mrb[0].mxu0 %v1059
      %v1198 = vpop.f32.mrb[0].mxu0
      %v1199 = vadd.f32 %v1018, %v1198
      %v1200 = vpop.f32.mrb[0].mxu0
      %1201 = vmatprep.mubr.f32.mxu0 0.0
      %1202 = vmatmul.mubr.f32.gmra.mrb[0].mxu0 %v1062
      %v1203 = vpop.f32.mrb[0].mxu0
      %v1204 = vadd.f32 %v1018, %v1203
      %v1205 = vpop.f32.mrb[0].mxu0
      %1206 = vmatprep.mubr.f32.mxu0 0.0
      %1207 = vmatmul.mubr.f32.gmra.mrb[0].mxu0 %v1065
      %v1208 = vpop.f32.mrb[0].mxu0
      %v1209 = vadd.f32 %v1018, %v1208
      %v1210 = vpop.f32.mrb[0].mxu0
      %1211 = vdwg.mxu0
      %v1212 = vld [vmem:[%s232] sm:$0xff]
      %v1213 = vlaneseq
      %v1214 = vshrl.u32 %v1213, 7
      %v1215 = vsub.s32 0, %v1214
      %v1216 = vrot.slane %v1212, %v1215
      %1218 = vbcast.lane.b32.xlu0 %v1216, 256
      %v1219 = vpop.permute.xlu0 %1218
      %s1221 = sor.u32 256, 8
      %1222 = vbcast.lane.b32.xlu0 %v1216, %s1221
      %v1223 = vpop.permute.xlu0 %1222
      %v1224 = vlaneseq
      %v1225 = vshrl.u32 %v1224, 7
      %v1226 = vsub.s32 1, %v1225
      %v1227 = vrot.slane %v1212, %v1226
      %1229 = vbcast.lane.b32.xlu0 %v1227, 256
      %v1230 = vpop.permute.xlu0 %1229
      %s1232 = sor.u32 256, 8
      %1233 = vbcast.lane.b32.xlu0 %v1227, %s1232
      %v1234 = vpop.permute.xlu0 %1233
      %v1235 = vlaneseq
      %v1236 = vshrl.u32 %v1235, 7
      %v1237 = vsub.s32 2, %v1236
      %v1238 = vrot.slane %v1212, %v1237
      %1240 = vbcast.lane.b32.xlu0 %v1238, 256
      %v1241 = vpop.permute.xlu0 %1240
      %s1243 = sor.u32 256, 8
      %1244 = vbcast.lane.b32.xlu0 %v1238, %s1243
      %v1245 = vpop.permute.xlu0 %1244
      %v1246 = vlaneseq
      %v1247 = vshrl.u32 %v1246, 7
      %v1248 = vsub.s32 3, %v1247
      %v1249 = vrot.slane %v1212, %v1248
      %1251 = vbcast.lane.b32.xlu0 %v1249, 256
      %v1252 = vpop.permute.xlu0 %1251
      %s1254 = sor.u32 256, 8
      %1255 = vbcast.lane.b32.xlu0 %v1249, %s1254
      %v1256 = vpop.permute.xlu0 %1255
      %v1257 = vlaneseq
      %v1258 = vshrl.u32 %v1257, 7
      %v1259 = vsub.s32 4, %v1258
      %v1260 = vrot.slane %v1212, %v1259
      %1262 = vbcast.lane.b32.xlu0 %v1260, 256
      %v1263 = vpop.permute.xlu0 %1262
      %s1265 = sor.u32 256, 8
      %1266 = vbcast.lane.b32.xlu0 %v1260, %s1265
      %v1267 = vpop.permute.xlu0 %1266
      %v1268 = vlaneseq
      %v1269 = vshrl.u32 %v1268, 7
      %v1270 = vsub.s32 5, %v1269
      %v1271 = vrot.slane %v1212, %v1270
      %1273 = vbcast.lane.b32.xlu0 %v1271, 256
      %v1274 = vpop.permute.xlu0 %1273
      %s1276 = sor.u32 256, 8
      %1277 = vbcast.lane.b32.xlu0 %v1271, %s1276
      %v1278 = vpop.permute.xlu0 %1277
      %v1279 = vlaneseq
      %v1280 = vshrl.u32 %v1279, 7
      %v1281 = vsub.s32 6, %v1280
      %v1282 = vrot.slane %v1212, %v1281
      %1284 = vbcast.lane.b32.xlu0 %v1282, 256
      %v1285 = vpop.permute.xlu0 %1284
      %s1287 = sor.u32 256, 8
      %1288 = vbcast.lane.b32.xlu0 %v1282, %s1287
      %v1289 = vpop.permute.xlu0 %1288
      %v1290 = vlaneseq
      %v1291 = vshrl.u32 %v1290, 7
      %v1292 = vsub.s32 7, %v1291
      %v1293 = vrot.slane %v1212, %v1292
      %1295 = vbcast.lane.b32.xlu0 %v1293, 256
      %v1296 = vpop.permute.xlu0 %1295
      %s1298 = sor.u32 256, 8
      %1299 = vbcast.lane.b32.xlu0 %v1293, %s1298
      %v1300 = vpop.permute.xlu0 %1299
      %v1301 = vadd.f32 %v1134, %v1219
      %v1302 = vadd.f32 %v1139, %v1223
      %v1303 = vadd.f32 %v1144, %v1230
      %v1304 = vadd.f32 %v1149, %v1234
      %v1305 = vadd.f32 %v1154, %v1241
      %v1306 = vadd.f32 %v1159, %v1245
      %v1307 = vadd.f32 %v1164, %v1252
      %v1308 = vadd.f32 %v1169, %v1256
      %v1309 = vadd.f32 %v1174, %v1263
      %v1310 = vadd.f32 %v1179, %v1267
      %v1311 = vadd.f32 %v1184, %v1274
      %v1312 = vadd.f32 %v1189, %v1278
      %v1313 = vadd.f32 %v1194, %v1285
      %v1314 = vadd.f32 %v1199, %v1289
      %v1315 = vadd.f32 %v1204, %v1296
      %v1316 = vadd.f32 %v1209, %v1300
      %v1317 = vsel %vm725, %v1301, -inf
      %v1318 = vsel %vm725, %v1302, -inf
      %v1319 = vmax.f32 %v1317, %v1318
      %v1320 = vrot.slane %v1319, 4
      %v1321 = vmax.f32 %v1319, %v1320
      %v1322 = vrot.slane %v1321, 2
      %v1323 = vmax.f32 %v1321, %v1322
      %v1324 = vrot.slane %v1323, 1
      %v1325 = vmax.f32 %v1323, %v1324
      %v1326 = vsel %vm725, %v1303, -inf
      %v1327 = vsel %vm725, %v1304, -inf
      %v1328 = vmax.f32 %v1326, %v1327
      %v1329 = vrot.slane %v1328, 4
      %v1330 = vmax.f32 %v1328, %v1329
      %v1331 = vrot.slane %v1330, 2
      %v1332 = vmax.f32 %v1330, %v1331
      %v1333 = vrot.slane %v1332, 1
      %v1334 = vmax.f32 %v1332, %v1333
      %v1335 = vsel %vm725, %v1305, -inf
      %v1336 = vsel %vm725, %v1306, -inf
      %v1337 = vmax.f32 %v1335, %v1336
      %v1338 = vrot.slane %v1337, 4
      %v1339 = vmax.f32 %v1337, %v1338
      %v1340 = vrot.slane %v1339, 2
      %v1341 = vmax.f32 %v1339, %v1340
      %v1342 = vrot.slane %v1341, 1
      %v1343 = vmax.f32 %v1341, %v1342
      %v1344 = vsel %vm725, %v1307, -inf
      %v1345 = vsel %vm725, %v1308, -inf
      %v1346 = vmax.f32 %v1344, %v1345
      %v1347 = vrot.slane %v1346, 4
      %v1348 = vmax.f32 %v1346, %v1347
      %v1349 = vrot.slane %v1348, 2
      %v1350 = vmax.f32 %v1348, %v1349
      %v1351 = vrot.slane %v1350, 1
      %v1352 = vmax.f32 %v1350, %v1351
      %v1353 = vsel %vm725, %v1309, -inf
      %v1354 = vsel %vm725, %v1310, -inf
      %v1355 = vmax.f32 %v1353, %v1354
      %v1356 = vrot.slane %v1355, 4
      %v1357 = vmax.f32 %v1355, %v1356
      %v1358 = vrot.slane %v1357, 2
      %v1359 = vmax.f32 %v1357, %v1358
      %v1360 = vrot.slane %v1359, 1
      %v1361 = vmax.f32 %v1359, %v1360
      %v1362 = vsel %vm725, %v1311, -inf
      %v1363 = vsel %vm725, %v1312, -inf
      %v1364 = vmax.f32 %v1362, %v1363
      %v1365 = vrot.slane %v1364, 4
      %v1366 = vmax.f32 %v1364, %v1365
      %v1367 = vrot.slane %v1366, 2
      %v1368 = vmax.f32 %v1366, %v1367
      %v1369 = vrot.slane %v1368, 1
      %v1370 = vmax.f32 %v1368, %v1369
      %v1371 = vsel %vm725, %v1313, -inf
      %v1372 = vsel %vm725, %v1314, -inf
      %v1373 = vmax.f32 %v1371, %v1372
      %v1374 = vrot.slane %v1373, 4
      %v1375 = vmax.f32 %v1373, %v1374
      %v1376 = vrot.slane %v1375, 2
      %v1377 = vmax.f32 %v1375, %v1376
      %v1378 = vrot.slane %v1377, 1
      %v1379 = vmax.f32 %v1377, %v1378
      %v1380 = vsel %vm725, %v1315, -inf
      %v1381 = vsel %vm725, %v1316, -inf
      %v1382 = vmax.f32 %v1380, %v1381
      %v1383 = vrot.slane %v1382, 4
      %v1384 = vmax.f32 %v1382, %v1383
      %v1385 = vrot.slane %v1384, 2
      %v1386 = vmax.f32 %v1384, %v1385
      %v1387 = vrot.slane %v1386, 1
      %v1388 = vmax.f32 %v1386, %v1387
      %v1389 = vlaneseq
      %v1390 = vshrl.u32 %v1389, 7
      %v1391 = vsub.s32 0, %v1390
      %v1392 = vrot.slane %v254, %v1391
      %vm1401 = vcmask 1041409
      %v1402 = vsel %vm1401, %v1334, %v1325
      %vm1403 = vcmask 1042434
      %v1404 = vsel %vm1403, %v1343, %v1402
      %vm1405 = vcmask 1043459
      %v1406 = vsel %vm1405, %v1352, %v1404
      %vm1407 = vcmask 1044484
      %v1408 = vsel %vm1407, %v1361, %v1406
      %vm1409 = vcmask 1045509
      %v1410 = vsel %vm1409, %v1370, %v1408
      %vm1411 = vcmask 1046534
      %v1412 = vsel %vm1411, %v1379, %v1410
      %vm1413 = vcmask 1047559
      %v1414 = vsel %vm1413, %v1388, %v1412
      %v1415 = vsel %vm725, %v1414, 0
      %1417 = vmatprep.subr.mxu0 0.0
      %1418 = vmatpush1.msra.mxu0 %v250
      %1419 = vmatprep.subr.mxu0 0.0
      %1420 = vmatpush1.msra.mxu0 %v251
      %1421 = vmatprep.subr.mxu0 0.0
      %1422 = vmatpush1.msra.mxu0 %v252
      %1423 = vmatprep.subr.mxu0 0.0
      %1424 = vmatpush1.msra.mxu0 %v253
      %1425 = vmatprep.subr.mxu0 0.0
      %1426 = vmatpush1.msra.mxu0 0.0
      %1427 = vmatprep.subr.mxu0 0.0
      %1428 = vmatpush1.msra.mxu0 0.0
      %1429 = vmatprep.subr.mxu0 0.0
      %1430 = vmatpush1.msra.mxu0 0.0
      %1431 = vmatprep.subr.mxu0 0.0
      %1432 = vmatpush1.msra.mxu0 0.0
      %1433 = vmatprep.subr.mxu0 0.0
      %1434 = vmatpush1.msra.mxu0 0.0
      %1435 = vmatprep.subr.mxu0 0.0
      %1436 = vmatpush1.msra.mxu0 0.0
      %1437 = vmatprep.subr.mxu0 0.0
      %1438 = vmatpush1.msra.mxu0 0.0
      %1439 = vmatprep.subr.mxu0 0.0
      %1440 = vmatpush1.msra.mxu0 0.0
      %1441 = vmatprep.subr.mxu0 0.0
      %1442 = vmatpush1.msra.mxu0 0.0
      %1443 = vmatprep.subr.mxu0 0.0
      %1444 = vmatpush1.msra.mxu0 0.0
      %1445 = vmatprep.subr.mxu0 0.0
      %1446 = vmatpush1.msra.mxu0 0.0
      %1447 = vmatprep.subr.mxu0 0.0
      %1448 = vmatpush1.msra.mxu0 0.0
      %1449 = vmatprep.subr.mxu0 0.0
      %1450 = vmatpush1.msra.mxu0 0.0
      %1451 = vmatprep.subr.mxu0 0.0
      %1452 = vmatpush1.msra.mxu0 0.0
      %1453 = vmatprep.subr.mxu0 0.0
      %1454 = vmatpush1.msra.mxu0 0.0
      %1455 = vmatprep.subr.mxu0 0.0
      %1456 = vmatpush1.msra.mxu0 0.0
      %1457 = vmatprep.subr.mxu0 0.0
      %1458 = vmatpush1.msra.mxu0 0.0
      %1459 = vmatprep.subr.mxu0 0.0
      %1460 = vmatpush1.msra.mxu0 0.0
      %1461 = vmatprep.subr.mxu0 0.0
      %1462 = vmatpush1.msra.mxu0 0.0
      %1463 = vmatprep.subr.mxu0 0.0
      %1464 = vmatpush1.msra.mxu0 0.0
      %1465 = vmatprep.subr.mxu0 0.0
      %1466 = vmatpush1.msra.mxu0 0.0
      %1467 = vmatprep.subr.mxu0 0.0
      %1468 = vmatpush1.msra.mxu0 0.0
      %1469 = vmatprep.subr.mxu0 0.0
      %1470 = vmatpush1.msra.mxu0 0.0
      %1471 = vmatprep.subr.mxu0 0.0
      %1472 = vmatpush1.msra.mxu0 0.0
      %1473 = vmatprep.subr.mxu0 0.0
      %1474 = vmatpush1.msra.mxu0 0.0
      %1475 = vmatprep.subr.mxu0 0.0
      %1476 = vmatpush1.msra.mxu0 0.0
      %1477 = vmatprep.subr.mxu0 0.0
      %1478 = vmatpush1.msra.mxu0 0.0
      %1479 = vmatprep.subr.mxu0 0.0
      %1480 = vmatpush1.msra.mxu0 0.0
      %1481 = vmatprep.mubr.f32.mxu0 0.0
      %1482 = vmatmul.mubr.f32.gmra.mrb[0].mxu0 %v1415
      %v1483 = vpop.f32.mrb[0].mxu0
      %v1484 = vadd.f32 %v1392, %v1483
      %v1485 = vpop.f32.mrb[0].mxu0
      %1486 = vdwg.mxu0
      %vm1487 = vcmp.gt.f32.partialorder %v1484, 0.0
      %v1488 = vmin.f32 %v1484, 0.0
      %v1489 = vmul.f32 %v1488, 1.442695
      %v1490 = vpow.pop %v1489
      %v1491 = vsub.f32 %v1490, 1.0
      %v1492 = vsel %vm1487, %v1484, %v1491
      %v1493 = vlaneseq
      %v1494 = vshrl.u32 %v1493, 7
      %v1495 = vsub.s32 0, %v1494
      %v1496 = vrot.slane %v259, %v1495
      %v1498 = vsel %vm725, %v1492, 0
      %1500 = vmatprep.subr.mxu0 0.0
      %1501 = vmatpush1.msra.mxu0 %v255
      %1502 = vmatprep.subr.mxu0 0.0
      %1503 = vmatpush1.msra.mxu0 %v256
      %1504 = vmatprep.subr.mxu0 0.0
      %1505 = vmatpush1.msra.mxu0 %v257
      %1506 = vmatprep.subr.mxu0 0.0
      %1507 = vmatpush1.msra.mxu0 %v258
      %1508 = vmatprep.subr.mxu0 0.0
      %1509 = vmatpush1.msra.mxu0 0.0
      %1510 = vmatprep.subr.mxu0 0.0
      %1511 = vmatpush1.msra.mxu0 0.0
      %1512 = vmatprep.subr.mxu0 0.0
      %1513 = vmatpush1.msra.mxu0 0.0
      %1514 = vmatprep.subr.mxu0 0.0
      %1515 = vmatpush1.msra.mxu0 0.0
      %1516 = vmatprep.subr.mxu0 0.0
      %1517 = vmatpush1.msra.mxu0 0.0
      %1518 = vmatprep.subr.mxu0 0.0
      %1519 = vmatpush1.msra.mxu0 0.0
      %1520 = vmatprep.subr.mxu0 0.0
      %1521 = vmatpush1.msra.mxu0 0.0
      %1522 = vmatprep.subr.mxu0 0.0
      %1523 = vmatpush1.msra.mxu0 0.0
      %1524 = vmatprep.subr.mxu0 0.0
      %1525 = vmatpush1.msra.mxu0 0.0
      %1526 = vmatprep.subr.mxu0 0.0
      %1527 = vmatpush1.msra.mxu0 0.0
      %1528 = vmatprep.subr.mxu0 0.0
      %1529 = vmatpush1.msra.mxu0 0.0
      %1530 = vmatprep.subr.mxu0 0.0
      %1531 = vmatpush1.msra.mxu0 0.0
      %1532 = vmatprep.subr.mxu0 0.0
      %1533 = vmatpush1.msra.mxu0 0.0
      %1534 = vmatprep.subr.mxu0 0.0
      %1535 = vmatpush1.msra.mxu0 0.0
      %1536 = vmatprep.subr.mxu0 0.0
      %1537 = vmatpush1.msra.mxu0 0.0
      %1538 = vmatprep.subr.mxu0 0.0
      %1539 = vmatpush1.msra.mxu0 0.0
      %1540 = vmatprep.subr.mxu0 0.0
      %1541 = vmatpush1.msra.mxu0 0.0
      %1542 = vmatprep.subr.mxu0 0.0
      %1543 = vmatpush1.msra.mxu0 0.0
      %1544 = vmatprep.subr.mxu0 0.0
      %1545 = vmatpush1.msra.mxu0 0.0
      %1546 = vmatprep.subr.mxu0 0.0
      %1547 = vmatpush1.msra.mxu0 0.0
      %1548 = vmatprep.subr.mxu0 0.0
      %1549 = vmatpush1.msra.mxu0 0.0
      %1550 = vmatprep.subr.mxu0 0.0
      %1551 = vmatpush1.msra.mxu0 0.0
      %1552 = vmatprep.subr.mxu0 0.0
      %1553 = vmatpush1.msra.mxu0 0.0
      %1554 = vmatprep.subr.mxu0 0.0
      %1555 = vmatpush1.msra.mxu0 0.0
      %1556 = vmatprep.subr.mxu0 0.0
      %1557 = vmatpush1.msra.mxu0 0.0
      %1558 = vmatprep.subr.mxu0 0.0
      %1559 = vmatpush1.msra.mxu0 0.0
      %1560 = vmatprep.subr.mxu0 0.0
      %1561 = vmatpush1.msra.mxu0 0.0
      %1562 = vmatprep.subr.mxu0 0.0
      %1563 = vmatpush1.msra.mxu0 0.0
      %1564 = vmatprep.mubr.f32.mxu0 0.0
      %1565 = vmatmul.mubr.f32.gmra.mrb[0].mxu0 %v1498
      %v1566 = vpop.f32.mrb[0].mxu0
      %v1567 = vadd.f32 %v1496, %v1566
      %v1568 = vpop.f32.mrb[0].mxu0
      %1569 = vdwg.mxu0
      %vm1570 = vcmp.gt.f32.partialorder %v1567, 0.0
      %v1571 = vmin.f32 %v1567, 0.0
      %v1572 = vmul.f32 %v1571, 1.442695
      %v1573 = vpow.pop %v1572
      %v1574 = vsub.f32 %v1573, 1.0
      %v1575 = vsel %vm1570, %v1567, %v1574
      %v1576 = vlaneseq
      %v1577 = vshrl.u32 %v1576, 7
      %v1578 = vsub.s32 0, %v1577
      %v1579 = vrot.slane %v264, %v1578
      %v1581 = vsel %vm725, %v1575, 0
      %1583 = vmatprep.subr.mxu0 0.0
      %1584 = vmatpush1.msra.mxu0 %v260
      %1585 = vmatprep.subr.mxu0 0.0
      %1586 = vmatpush1.msra.mxu0 %v261
      %1587 = vmatprep.subr.mxu0 0.0
      %1588 = vmatpush1.msra.mxu0 %v262
      %1589 = vmatprep.subr.mxu0 0.0
      %1590 = vmatpush1.msra.mxu0 %v263
      %1591 = vmatprep.subr.mxu0 0.0
      %1592 = vmatpush1.msra.mxu0 0.0
      %1593 = vmatprep.subr.mxu0 0.0
      %1594 = vmatpush1.msra.mxu0 0.0
      %1595 = vmatprep.subr.mxu0 0.0
      %1596 = vmatpush1.msra.mxu0 0.0
      %1597 = vmatprep.subr.mxu0 0.0
      %1598 = vmatpush1.msra.mxu0 0.0
      %1599 = vmatprep.subr.mxu0 0.0
      %1600 = vmatpush1.msra.mxu0 0.0
      %1601 = vmatprep.subr.mxu0 0.0
      %1602 = vmatpush1.msra.mxu0 0.0
      %1603 = vmatprep.subr.mxu0 0.0
      %1604 = vmatpush1.msra.mxu0 0.0
      %1605 = vmatprep.subr.mxu0 0.0
      %1606 = vmatpush1.msra.mxu0 0.0
      %1607 = vmatprep.subr.mxu0 0.0
      %1608 = vmatpush1.msra.mxu0 0.0
      %1609 = vmatprep.subr.mxu0 0.0
      %1610 = vmatpush1.msra.mxu0 0.0
      %1611 = vmatprep.subr.mxu0 0.0
      %1612 = vmatpush1.msra.mxu0 0.0
      %1613 = vmatprep.subr.mxu0 0.0
      %1614 = vmatpush1.msra.mxu0 0.0
      %1615 = vmatprep.subr.mxu0 0.0
      %1616 = vmatpush1.msra.mxu0 0.0
      %1617 = vmatprep.subr.mxu0 0.0
      %1618 = vmatpush1.msra.mxu0 0.0
      %1619 = vmatprep.subr.mxu0 0.0
      %1620 = vmatpush1.msra.mxu0 0.0
      %1621 = vmatprep.subr.mxu0 0.0
      %1622 = vmatpush1.msra.mxu0 0.0
      %1623 = vmatprep.subr.mxu0 0.0
      %1624 = vmatpush1.msra.mxu0 0.0
      %1625 = vmatprep.subr.mxu0 0.0
      %1626 = vmatpush1.msra.mxu0 0.0
      %1627 = vmatprep.subr.mxu0 0.0
      %1628 = vmatpush1.msra.mxu0 0.0
      %1629 = vmatprep.subr.mxu0 0.0
      %1630 = vmatpush1.msra.mxu0 0.0
      %1631 = vmatprep.subr.mxu0 0.0
      %1632 = vmatpush1.msra.mxu0 0.0
      %1633 = vmatprep.subr.mxu0 0.0
      %1634 = vmatpush1.msra.mxu0 0.0
      %1635 = vmatprep.subr.mxu0 0.0
      %1636 = vmatpush1.msra.mxu0 0.0
      %1637 = vmatprep.subr.mxu0 0.0
      %1638 = vmatpush1.msra.mxu0 0.0
      %1639 = vmatprep.subr.mxu0 0.0
      %1640 = vmatpush1.msra.mxu0 0.0
      %1641 = vmatprep.subr.mxu0 0.0
      %1642 = vmatpush1.msra.mxu0 0.0
      %1643 = vmatprep.subr.mxu0 0.0
      %1644 = vmatpush1.msra.mxu0 0.0
      %1645 = vmatprep.subr.mxu0 0.0
      %1646 = vmatpush1.msra.mxu0 0.0
      %1647 = vmatprep.mubr.f32.mxu0 0.0
      %1648 = vmatmul.mubr.f32.gmra.mrb[0].mxu0 %v1581
      %v1649 = vpop.f32.mrb[0].mxu0
      %v1650 = vadd.f32 %v1579, %v1649
      %v1651 = vpop.f32.mrb[0].mxu0
      %1652 = vdwg.mxu0
      %vm1653 = vcmp.gt.f32.partialorder %v1650, 0.0
      %v1654 = vmin.f32 %v1650, 0.0
      %v1655 = vmul.f32 %v1654, 1.442695
      %v1656 = vpow.pop %v1655
      %v1657 = vsub.f32 %v1656, 1.0
      %v1658 = vsel %vm1653, %v1650, %v1657
      %1659 = vst.msk [vmem:[%s236] sm:$0xff] %vm725, %v1658
      %p1660 = scmp.lt.s32.totalorder %s16, 1
      %s1661 = scalar_select %p1660, %s16, 1
      %s1662 = smul.addr %s1661, 8
      %s1663 = scalar_lea.vmem %s5, %s1662
      // Predicated region
      $region41: #{forward.3} parent=39 // pred_check
        %p1664 = pneg %p149
      $region42: #{forward.3} parent=39 // pred_check_branch
        %1666 = sbr.rel (%p1664) target = $region44
      $region43: #{forward.3} parent=39 // pred_region
        _
      $region44: #{forward.3} parent=39 // pred_fallthru
        _
    $region40: #{forward.3} parent=5 // pred_fallthru
      _
    %p1667 = scmp.le.s32.totalorder 2, %s11
    // Predicated region
    $region45: #{forward.3} parent=5 // pred_check
      %p1668 = pneg %p1667
    $region46: #{forward.3} parent=5 // pred_check_branch
      %1670 = sbr.rel (%p1668) target = $region48
    $region47: #{forward.3} parent=5 // pred_region
      %s1671 = ssub.s32 %s11, 2
      // Predicated region
      $region49: #{forward.3} parent=47 // pred_check
        %p1672 = pneg %p155
      $region50: #{forward.3} parent=47 // pred_check_branch
        %1674 = sbr.rel (%p1672) target = $region52
      $region51: #{forward.3} parent=47 // pred_region
        %p1675 = scmp.lt.s32.totalorder %s17, 1
        %s1676 = scalar_select %p1675, %s17, 1
        %s1677 = smul.addr %s1676, 8
        %s1678 = scalar_lea.vmem %s5, %s1677
      $region52: #{forward.3} parent=47 // pred_fallthru
        _
    $region48: #{forward.3} parent=5 // pred_fallthru
      _
  $region6: #{forward.3} parent=0 // loop_footer
    %s15 = sadd.s32 1, %s11
  $region7: #{forward.3} parent=0 // loop_footer_branch
    %10 = sbr.rel target = $region3
  $region8: #{forward.3} parent=0 // loop_exit
    _

</llo_original>
